<compile_context>
chip_gen: v7x
topology: tpu7x:2x2x1
jax: 0.10.0
libtpu: 0.0.40
codegen_flags: <defaults>
</compile_context>

<pallas_src>
import functools
import math

import jax
import jax.numpy as jnp
from jax import lax
from jax.experimental import pallas as pl
from jax.experimental.pallas import tpu as pltpu

# ----------------------------- small synthetic config -----------------------------
VOCAB = 50
D_MODEL = 32       # args.bert_dim
N_HEAD = 4
D_HEAD = 8
D_INNER = 64
N_LAYER = 2
MEM_LEN = 8
HIDDEN = 32        # args.hidden_dim
MLP_LAYERS = 2     # args.mlp_layers
NUM_CLASS = 6
B = 2
L = 8              # query length
LN_EPS = 1e-5
NEG_INF = -1e9


def _vmem_spec():
    return pl.BlockSpec(memory_space=pltpu.MemorySpace.VMEM)


def _layer_norm(x, g, b):
    mu = jnp.mean(x, axis=-1, keepdims=True)
    var = jnp.mean((x - mu) ** 2, axis=-1, keepdims=True)
    return (x - mu) * lax.rsqrt(var + LN_EPS) * g + b


# --------------------- fused Transformer-XL layer (one pallas_call) ---------------------
def _xl_layer_kernel(core_ref, mem_ref, pos_ref, bias_ref,
                     qkv_w_ref, r_w_ref, o_w_ref, rwb_ref, rrb_ref,
                     ln1_g_ref, ln1_b_ref, ff1_w_ref, ff1_b_ref,
                     ff2_w_ref, ff2_b_ref, ln2_g_ref, ln2_b_ref,
                     out_ref, *, n_batch, qlen, mlen, n_head, d_head, scale):
    klen = qlen + mlen
    hd = n_head * d_head

    # Positional keys for all heads, shared across batch: (P, H*dh), one MXU matmul.
    r_head_k = jnp.dot(pos_ref[...], r_w_ref[...], preferred_element_type=jnp.float32)
    bias = bias_ref[...]                     # (qlen, klen) additive mask (0 / -1e9)
    rwb = rwb_ref[...]                       # (H, dh)
    rrb = rrb_ref[...]                       # (H, dh)

    for b in range(n_batch):                 # static unroll, B is tiny
        core_b = core_ref[b]                                          # (qlen, D)
        cat_b = jnp.concatenate([mem_ref[b], core_b], axis=0)         # (klen, D)

        # Fused qkv projection on the whole (mem || core) window.
        w_heads = jnp.dot(cat_b, qkv_w_ref[...],
                          preferred_element_type=jnp.float32)          # (klen, 3*hd)
        q_all = w_heads[mlen:, 0:hd]                                   # (qlen, hd)
        k_all = w_heads[:, hd:2 * hd]                                  # (klen, hd)
        v_all = w_heads[:, 2 * hd:3 * hd]                              # (klen, hd)

        head_outs = []
        for h in range(n_head):              # static unroll over heads (no grid steps)
            lo, hi = h * d_head, (h + 1) * d_head
            q_h = q_all[:, lo:hi]            # (qlen, dh)
            k_h = k_all[:, lo:hi]            # (klen, dh)
            v_h = v_all[:, lo:hi]            # (klen, dh)
            rk_h = r_head_k[:, lo:hi]        # (P, dh)
            rwb_h = rwb[h:h + 1, :]          # (1, dh)
            rrb_h = rrb[h:h + 1, :]          # (1, dh)

            # Content score AC[i,j] = (q_i + r_w_bias) . k_j  (MXU)
            ac = lax.dot_general(q_h + rwb_h, k_h, (((1,), (1,)), ((), ())),
                                 preferred_element_type=jnp.float32)   # (qlen, klen)
            # Position score against extended positional keys (MXU), then rel-shift
            # via static per-row slices: bd[i, j] = bd_ext[i, j + qlen - 1 - i].
            bd_ext = lax.dot_general(q_h + rrb_h, rk_h, (((1,), (1,)), ((), ())),
                                     preferred_element_type=jnp.float32)  # (qlen, P)
            rows = []
            for i in range(qlen):
                s = qlen - 1 - i
                rows.append(bd_ext[i:i + 1, s:s + klen])
            bd = jnp.concatenate(rows, axis=0)                          # (qlen, klen)

            score = (ac + bd) * scale + bias
            score = score - jnp.max(score, axis=-1, keepdims=True)
            p = jnp.exp(score)
            p = p * pl.reciprocal(jnp.sum(p, axis=-1, keepdims=True), approx=True)
            head_outs.append(jnp.dot(p, v_h, preferred_element_type=jnp.float32))

        # Lane-dense (qlen, H*dh) slab, head-major features (matches HF layout).
        attn_vec = jnp.concatenate(head_outs, axis=1)
        attn_out = jnp.dot(attn_vec, o_w_ref[...],
                           preferred_element_type=jnp.float32)          # (qlen, D)
        x = _layer_norm(core_b + attn_out, ln1_g_ref[...], ln1_b_ref[...])  # post-LN

        h1 = jnp.maximum(
            jnp.dot(x, ff1_w_ref[...], preferred_element_type=jnp.float32)
            + ff1_b_ref[...], 0.0)
        h2 = jnp.dot(h1, ff2_w_ref[...],
                     preferred_element_type=jnp.float32) + ff2_b_ref[...]
        out_ref[b] = _layer_norm(x + h2, ln2_g_ref[...], ln2_b_ref[...])


def pallas_xl_layer(core, mem, pos_emb, attn_bias, lp):
    Bq, qlen, d = core.shape
    mlen = mem.shape[1]
    inputs = [core, mem, pos_emb, attn_bias,
              lp["qkv_w"], lp["r_w"], lp["o_w"],
              lp["r_w_bias"], lp["r_r_bias"],
              lp["ln1_g"].reshape(1, d), lp["ln1_b"].reshape(1, d),
              lp["ff1_w"], lp["ff1_b"].reshape(1, -1),
              lp["ff2_w"], lp["ff2_b"].reshape(1, d),
              lp["ln2_g"].reshape(1, d), lp["ln2_b"].reshape(1, d)]
    kern = functools.partial(
        _xl_layer_kernel, n_batch=Bq, qlen=qlen, mlen=mlen,
        n_head=N_HEAD, d_head=D_HEAD, scale=1.0 / math.sqrt(D_HEAD))
    return pl.pallas_call(
        kern,
        out_shape=jax.ShapeDtypeStruct((Bq, qlen, d), jnp.float32),
        in_specs=[_vmem_spec()] * len(inputs),
        out_specs=_vmem_spec(),
    )(*inputs)


# -------------------- fused ERC head: pool_fc + masked max + out_mlp --------------------
def _erc_head_kernel(feat_ref, mask_ref, *refs, n_batch, seq_len):
    out_ref = refs[-1]
    wrefs = refs[:-1]
    wp_ref, bp_ref = wrefs[0], wrefs[1]
    mlp_refs = wrefs[2:-2]
    wo_ref, bo_ref = wrefs[-2], wrefs[-1]

    # One (B*L, D) x (D, H) matmul instead of a per-batch loop.
    h = jnp.dot(feat_ref[...], wp_ref[...],
                preferred_element_type=jnp.float32) + bp_ref[...]
    h = jnp.maximum(h, 0.0)                       # pool_fc: Linear + ReLU
    h = h * mask_ref[...]                         # (B*L, H) * (B*L, 1)

    # Masked max over L per batch; results built in registers (no scratch stores).
    rows = []
    for b in range(n_batch):
        rows.append(jnp.max(h[b * seq_len:(b + 1) * seq_len, :], axis=0, keepdims=True))
    t = jnp.concatenate(rows, axis=0)             # (B, H); dropout = identity (eval)

    for li in range(0, len(mlp_refs), 2):
        t = jnp.maximum(
            jnp.dot(t, mlp_refs[li][...], preferred_element_type=jnp.float32)
            + mlp_refs[li + 1][...], 0.0)
    out_ref[...] = (jnp.dot(t, wo_ref[...], preferred_element_type=jnp.float32)
                    + bo_ref[...])


def pallas_erc_head(feat, mask, params):
    Bn, Ln, D = feat.shape
    C = params["out_w"].shape[1]
    inputs = [feat.reshape(Bn * Ln, D), mask.reshape(Bn * Ln, 1),
              params["pool_w"], params["pool_b"].reshape(1, -1)]
    for wi, bi in params["mlp"]:
        inputs += [wi, bi.reshape(1, -1)]
    inputs += [params["out_w"], params["out_b"].reshape(1, -1)]
    kern = functools.partial(_erc_head_kernel, n_batch=Bn, seq_len=Ln)
    return pl.pallas_call(
        kern,
        out_shape=jax.ShapeDtypeStruct((Bn, C), jnp.float32),
        in_specs=[_vmem_spec()] * len(inputs),
        out_specs=_vmem_spec(),
    )(*inputs)


# ----------------------------- JAX glue: Transformer-XL core -----------------------------
def transfo_xl_forward(params, content_ids, mems):
    Bq, qlen = content_ids.shape
    mlen = mems[0].shape[1]
    klen = mlen + qlen
    P = klen + qlen - 1                       # extended relative-position range
    d = D_MODEL

    # adaptive embedding (single cluster) with sqrt(d_model) scaling
    core = params["embedding"][content_ids] * (d ** 0.5)              # (B, qlen, d)

    # sinusoidal relative positional embedding over positions klen-1 .. -(qlen-1);
    # first klen rows match HF's pos_seq, extra rows only hit masked positions.
    pos_seq = jnp.arange(klen - 1, klen - 1 - P, -1).astype(jnp.float32)   # (P,)
    inv_freq = 1.0 / (10000.0 ** (jnp.arange(0, d, 2, dtype=jnp.float32) / d))
    sin_inp = pos_seq[:, None] * inv_freq[None, :]
    pos_emb = jnp.concatenate([jnp.sin(sin_inp), jnp.cos(sin_inp)], axis=-1)  # (P, d)

    # causal mask with memory as an additive bias: query i may attend keys j <= i + mlen
    attn_bias = jnp.triu(jnp.ones((qlen, klen), jnp.float32), k=1 + mlen) * NEG_INF

    hids = []
    x = core
    for i in range(N_LAYER):
        hids.append(x)
        x = pallas_xl_layer(x, mems[i], pos_emb, attn_bias, params["layers"][i])

    new_mems = []
    for i in range(N_LAYER):
        cat = jnp.concatenate([mems[i], hids[i]], axis=1)
        new_mems.append(lax.stop_gradient(cat[:, cat.shape[1] - MEM_LEN:, :]))

    return x, tuple(new_mems)


def erc_transfo_xl_forward(params, content_ids, mems, content_mask):
    text_feature, new_mems = transfo_xl_forward(params, content_ids, mems)
    outputs = pallas_erc_head(text_feature, content_mask.astype(jnp.float32), params)
    return outputs, new_mems


# ----------------------------- deterministic parameter init -----------------------------
def init_params(key):
    def nrm(k, shape, scale=0.02):
        return scale * jax.random.normal(k, shape, dtype=jnp.float32)

    keys = iter(jax.random.split(key, 64))
    params = {
        "embedding": nrm(next(keys), (VOCAB, D_MODEL)),
        "pool_w": nrm(next(keys), (D_MODEL, HIDDEN)),
        "pool_b": jnp.zeros((HIDDEN,), jnp.float32),
        "mlp": [],
        "out_w": nrm(next(keys), (HIDDEN, NUM_CLASS)),
        "out_b": jnp.zeros((NUM_CLASS,), jnp.float32),
        "layers": [],
    }
    for _ in range(MLP_LAYERS):
        params["mlp"].append((nrm(next(keys), (HIDDEN, HIDDEN)),
                              nrm(next(keys), (HIDDEN,))))
    for _ in range(N_LAYER):
        params["layers"].append({
            "qkv_w": nrm(next(keys), (D_MODEL, 3 * N_HEAD * D_HEAD)),
            "r_w": nrm(next(keys), (D_MODEL, N_HEAD * D_HEAD)),
            "o_w": nrm(next(keys), (N_HEAD * D_HEAD, D_MODEL)),
            "r_w_bias": nrm(next(keys), (N_HEAD, D_HEAD)),
            "r_r_bias": nrm(next(keys), (N_HEAD, D_HEAD)),
            "ln1_g": jnp.ones((D_MODEL,), jnp.float32),
            "ln1_b": jnp.zeros((D_MODEL,), jnp.float32),
            "ff1_w": nrm(next(keys), (D_MODEL, D_INNER)),
            "ff1_b": jnp.zeros((D_INNER,), jnp.float32),
            "ff2_w": nrm(next(keys), (D_INNER, D_MODEL)),
            "ff2_b": jnp.zeros((D_MODEL,), jnp.float32),
            "ln2_g": jnp.ones((D_MODEL,), jnp.float32),
            "ln2_b": jnp.zeros((D_MODEL,), jnp.float32),
        })
    return params


if __name__ == "__main__":
    key = jax.random.PRNGKey(0)
    pkey, ikey, mkey = jax.random.split(key, 3)
    params = init_params(pkey)

    content_ids = jax.random.randint(ikey, (B, L), 0, VOCAB)                 # (B, L)
    content_mask = (jax.random.uniform(mkey, (B, L)) > 0.2).astype(jnp.float32)
    mems = tuple(jnp.zeros((B, MEM_LEN, D_MODEL), jnp.float32) for _ in range(N_LAYER))

    fwd = jax.jit(erc_transfo_xl_forward)
    outputs, new_mems = fwd(params, content_ids, mems, content_mask)
    jax.block_until_ready((outputs, new_mems))

    assert outputs.shape == (B, NUM_CLASS)
    assert len(new_mems) == N_LAYER and new_mems[0].shape == (B, MEM_LEN, D_MODEL)
    assert bool(jnp.all(jnp.isfinite(outputs)))
    print("KERNEL_OK")
</pallas_src>

<mosaic_0001>
module attributes {stable_mosaic.version = 11 : i64} {
  func.func @_erc_head_kernel(%arg0: memref<16x32xf32, #tpu.memory_space<vmem>>, %arg1: memref<16x1xf32, #tpu.memory_space<vmem>>, %arg2: memref<32x32xf32, #tpu.memory_space<vmem>>, %arg3: memref<1x32xf32, #tpu.memory_space<vmem>>, %arg4: memref<32x32xf32, #tpu.memory_space<vmem>>, %arg5: memref<1x32xf32, #tpu.memory_space<vmem>>, %arg6: memref<32x32xf32, #tpu.memory_space<vmem>>, %arg7: memref<1x32xf32, #tpu.memory_space<vmem>>, %arg8: memref<32x6xf32, #tpu.memory_space<vmem>>, %arg9: memref<1x6xf32, #tpu.memory_space<vmem>>, %arg10: memref<2x6xf32, #tpu.memory_space<vmem>>) attributes {dimension_semantics = [], scalar_prefetch = 0 : i64, scratch_operands = 0 : i64, tpu.core_type = #tpu.core_type<tc>} {
    %c0 = arith.constant 0 : index
    %c0_0 = arith.constant 0 : index
    %0 = vector.load %arg0[%c0, %c0_0] : memref<16x32xf32, #tpu.memory_space<vmem>>, vector<16x32xf32>
    %c0_1 = arith.constant 0 : index
    %c0_2 = arith.constant 0 : index
    %1 = vector.load %arg2[%c0_1, %c0_2] : memref<32x32xf32, #tpu.memory_space<vmem>>, vector<32x32xf32>
    %cst = arith.constant dense<0.000000e+00> : vector<16x32xf32>
    %2 = tpu.matmul %0, %1, %cst {dimension_numbers = #tpu.dot_dimension_numbers<[1], [0], [0], [1], [0, 0, 1, 1], [], []>} : vector<16x32xf32>, vector<32x32xf32>, vector<16x32xf32> -> vector<16x32xf32>
    %c0_3 = arith.constant 0 : index
    %c0_4 = arith.constant 0 : index
    %3 = vector.load %arg3[%c0_3, %c0_4] : memref<1x32xf32, #tpu.memory_space<vmem>>, vector<1x32xf32>
    %4 = vector.broadcast %3 : vector<1x32xf32> to vector<16x32xf32>
    %5 = arith.addf %2, %4 : vector<16x32xf32>
    %cst_5 = arith.constant 0.000000e+00 : f32
    %6 = vector.broadcast %cst_5 : f32 to vector<16x32xf32>
    %7 = arith.maximumf %5, %6 : vector<16x32xf32>
    %c0_6 = arith.constant 0 : index
    %c0_7 = arith.constant 0 : index
    %8 = vector.load %arg1[%c0_6, %c0_7] : memref<16x1xf32, #tpu.memory_space<vmem>>, vector<16x1xf32>
    %9 = vector.broadcast %8 : vector<16x1xf32> to vector<16x32xf32>
    %10 = arith.mulf %7, %9 : vector<16x32xf32>
    %11 = vector.extract_strided_slice %10 {offsets = [0, 0], sizes = [8, 32], strides = [1, 1]} : vector<16x32xf32> to vector<8x32xf32>
    %cst_8 = arith.constant dense<0xFF800000> : vector<32xf32>
    %12 = vector.multi_reduction <maximumf>, %11, %cst_8 [0] : vector<8x32xf32> to vector<32xf32>
    %13 = vector.shape_cast %12 : vector<32xf32> to vector<1x32xf32>
    %14 = vector.extract_strided_slice %10 {offsets = [8, 0], sizes = [8, 32], strides = [1, 1]} : vector<16x32xf32> to vector<8x32xf32>
    %cst_9 = arith.constant dense<0xFF800000> : vector<32xf32>
    %15 = vector.multi_reduction <maximumf>, %14, %cst_9 [0] : vector<8x32xf32> to vector<32xf32>
    %16 = vector.shape_cast %15 : vector<32xf32> to vector<1x32xf32>
    %17 = tpu.concatenate %13, %16 in 0 : vector<1x32xf32>, vector<1x32xf32> -> vector<2x32xf32>
    %c0_10 = arith.constant 0 : index
    %c0_11 = arith.constant 0 : index
    %18 = vector.load %arg4[%c0_10, %c0_11] : memref<32x32xf32, #tpu.memory_space<vmem>>, vector<32x32xf32>
    %cst_12 = arith.constant dense<0.000000e+00> : vector<2x32xf32>
    %19 = tpu.matmul %17, %18, %cst_12 {dimension_numbers = #tpu.dot_dimension_numbers<[1], [0], [0], [1], [0, 0, 1, 1], [], []>} : vector<2x32xf32>, vector<32x32xf32>, vector<2x32xf32> -> vector<2x32xf32>
    %c0_13 = arith.constant 0 : index
    %c0_14 = arith.constant 0 : index
    %20 = vector.load %arg5[%c0_13, %c0_14] : memref<1x32xf32, #tpu.memory_space<vmem>>, vector<1x32xf32>
    %21 = vector.broadcast %20 : vector<1x32xf32> to vector<2x32xf32>
    %22 = arith.addf %19, %21 : vector<2x32xf32>
    %cst_15 = arith.constant 0.000000e+00 : f32
    %23 = vector.broadcast %cst_15 : f32 to vector<2x32xf32>
    %24 = arith.maximumf %22, %23 : vector<2x32xf32>
    %c0_16 = arith.constant 0 : index
    %c0_17 = arith.constant 0 : index
    %25 = vector.load %arg6[%c0_16, %c0_17] : memref<32x32xf32, #tpu.memory_space<vmem>>, vector<32x32xf32>
    %cst_18 = arith.constant dense<0.000000e+00> : vector<2x32xf32>
    %26 = tpu.matmul %24, %25, %cst_18 {dimension_numbers = #tpu.dot_dimension_numbers<[1], [0], [0], [1], [0, 0, 1, 1], [], []>} : vector<2x32xf32>, vector<32x32xf32>, vector<2x32xf32> -> vector<2x32xf32>
    %c0_19 = arith.constant 0 : index
    %c0_20 = arith.constant 0 : index
    %27 = vector.load %arg7[%c0_19, %c0_20] : memref<1x32xf32, #tpu.memory_space<vmem>>, vector<1x32xf32>
    %28 = vector.broadcast %27 : vector<1x32xf32> to vector<2x32xf32>
    %29 = arith.addf %26, %28 : vector<2x32xf32>
    %cst_21 = arith.constant 0.000000e+00 : f32
    %30 = vector.broadcast %cst_21 : f32 to vector<2x32xf32>
    %31 = arith.maximumf %29, %30 : vector<2x32xf32>
    %c0_22 = arith.constant 0 : index
    %c0_23 = arith.constant 0 : index
    %32 = vector.load %arg8[%c0_22, %c0_23] : memref<32x6xf32, #tpu.memory_space<vmem>>, vector<32x6xf32>
    %cst_24 = arith.constant dense<0.000000e+00> : vector<2x6xf32>
    %33 = tpu.matmul %31, %32, %cst_24 {dimension_numbers = #tpu.dot_dimension_numbers<[1], [0], [0], [1], [0, 0, 1, 1], [], []>} : vector<2x32xf32>, vector<32x6xf32>, vector<2x6xf32> -> vector<2x6xf32>
    %c0_25 = arith.constant 0 : index
    %c0_26 = arith.constant 0 : index
    %34 = vector.load %arg9[%c0_25, %c0_26] : memref<1x6xf32, #tpu.memory_space<vmem>>, vector<1x6xf32>
    %35 = vector.broadcast %34 : vector<1x6xf32> to vector<2x6xf32>
    %36 = arith.addf %33, %35 : vector<2x6xf32>
    %c0_27 = arith.constant 0 : index
    %c0_28 = arith.constant 0 : index
    %37 = vector.load %arg10[%c0_27, %c0_28] : memref<2x6xf32, #tpu.memory_space<vmem>>, vector<2x6xf32>
    tpu.vector_store %arg10[%c0_27, %c0_28], %36 {strides = array<i32>} : memref<2x6xf32, #tpu.memory_space<vmem>>, vector<2x6xf32>,
    return
  }
}

module attributes {stable_mosaic.version = 11 : i64} {
  func.func @_xl_layer_kernel(%arg0: memref<2x8x32xf32, #tpu.memory_space<vmem>>, %arg1: memref<2x8x32xf32, #tpu.memory_space<vmem>>, %arg2: memref<23x32xf32, #tpu.memory_space<vmem>>, %arg3: memref<8x16xf32, #tpu.memory_space<vmem>>, %arg4: memref<32x96xf32, #tpu.memory_space<vmem>>, %arg5: memref<32x32xf32, #tpu.memory_space<vmem>>, %arg6: memref<32x32xf32, #tpu.memory_space<vmem>>, %arg7: memref<4x8xf32, #tpu.memory_space<vmem>>, %arg8: memref<4x8xf32, #tpu.memory_space<vmem>>, %arg9: memref<1x32xf32, #tpu.memory_space<vmem>>, %arg10: memref<1x32xf32, #tpu.memory_space<vmem>>, %arg11: memref<32x64xf32, #tpu.memory_space<vmem>>, %arg12: memref<1x64xf32, #tpu.memory_space<vmem>>, %arg13: memref<64x32xf32, #tpu.memory_space<vmem>>, %arg14: memref<1x32xf32, #tpu.memory_space<vmem>>, %arg15: memref<1x32xf32, #tpu.memory_space<vmem>>, %arg16: memref<1x32xf32, #tpu.memory_space<vmem>>, %arg17: memref<2x8x32xf32, #tpu.memory_space<vmem>>) attributes {dimension_semantics = [], scalar_prefetch = 0 : i64, scratch_operands = 0 : i64, tpu.core_type = #tpu.core_type<tc>} {
    %c0 = arith.constant 0 : index
    %c0_0 = arith.constant 0 : index
    %0 = vector.load %arg2[%c0, %c0_0] : memref<23x32xf32, #tpu.memory_space<vmem>>, vector<23x32xf32>
    %c0_1 = arith.constant 0 : index
    %c0_2 = arith.constant 0 : index
    %1 = vector.load %arg5[%c0_1, %c0_2] : memref<32x32xf32, #tpu.memory_space<vmem>>, vector<32x32xf32>
    %cst = arith.constant dense<0.000000e+00> : vector<23x32xf32>
    %2 = tpu.matmul %0, %1, %cst {dimension_numbers = #tpu.dot_dimension_numbers<[1], [0], [0], [1], [0, 0, 1, 1], [], []>} : vector<23x32xf32>, vector<32x32xf32>, vector<23x32xf32> -> vector<23x32xf32>
    %c0_3 = arith.constant 0 : index
    %c0_4 = arith.constant 0 : index
    %3 = vector.load %arg3[%c0_3, %c0_4] : memref<8x16xf32, #tpu.memory_space<vmem>>, vector<8x16xf32>
    %c0_5 = arith.constant 0 : index
    %c0_6 = arith.constant 0 : index
    %4 = vector.load %arg7[%c0_5, %c0_6] : memref<4x8xf32, #tpu.memory_space<vmem>>, vector<4x8xf32>
    %c0_7 = arith.constant 0 : index
    %c0_8 = arith.constant 0 : index
    %5 = vector.load %arg8[%c0_7, %c0_8] : memref<4x8xf32, #tpu.memory_space<vmem>>, vector<4x8xf32>
    %c0_9 = arith.constant 0 : index
    %c0_10 = arith.constant 0 : index
    %c0_11 = arith.constant 0 : index
    %6 = vector.load %arg0[%c0_9, %c0_10, %c0_11] : memref<2x8x32xf32, #tpu.memory_space<vmem>>, vector<1x8x32xf32>
    %7 = vector.shape_cast %6 : vector<1x8x32xf32> to vector<8x32xf32>
    %c0_12 = arith.constant 0 : index
    %c0_13 = arith.constant 0 : index
    %c0_14 = arith.constant 0 : index
    %8 = vector.load %arg1[%c0_12, %c0_13, %c0_14] : memref<2x8x32xf32, #tpu.memory_space<vmem>>, vector<1x8x32xf32>
    %9 = vector.shape_cast %8 : vector<1x8x32xf32> to vector<8x32xf32>
    %10 = tpu.concatenate %9, %7 in 0 : vector<8x32xf32>, vector<8x32xf32> -> vector<16x32xf32>
    %c0_15 = arith.constant 0 : index
    %c0_16 = arith.constant 0 : index
    %11 = vector.load %arg4[%c0_15, %c0_16] : memref<32x96xf32, #tpu.memory_space<vmem>>, vector<32x96xf32>
    %cst_17 = arith.constant dense<0.000000e+00> : vector<16x96xf32>
    %12 = tpu.matmul %10, %11, %cst_17 {dimension_numbers = #tpu.dot_dimension_numbers<[1], [0], [0], [1], [0, 0, 1, 1], [], []>} : vector<16x32xf32>, vector<32x96xf32>, vector<16x96xf32> -> vector<16x96xf32>
    %13 = vector.extract_strided_slice %12 {offsets = [8, 0], sizes = [8, 32], strides = [1, 1]} : vector<16x96xf32> to vector<8x32xf32>
    %14 = vector.extract_strided_slice %12 {offsets = [0, 32], sizes = [16, 32], strides = [1, 1]} : vector<16x96xf32> to vector<16x32xf32>
    %15 = vector.extract_strided_slice %12 {offsets = [0, 64], sizes = [16, 32], strides = [1, 1]} : vector<16x96xf32> to vector<16x32xf32>
    %16 = vector.extract_strided_slice %13 {offsets = [0, 0], sizes = [8, 8], strides = [1, 1]} : vector<8x32xf32> to vector<8x8xf32>
    %17 = vector.extract_strided_slice %14 {offsets = [0, 0], sizes = [16, 8], strides = [1, 1]} : vector<16x32xf32> to vector<16x8xf32>
    %18 = vector.extract_strided_slice %15 {offsets = [0, 0], sizes = [16, 8], strides = [1, 1]} : vector<16x32xf32> to vector<16x8xf32>
    %19 = vector.extract_strided_slice %2 {offsets = [0, 0], sizes = [23, 8], strides = [1, 1]} : vector<23x32xf32> to vector<23x8xf32>
    %20 = vector.extract_strided_slice %4 {offsets = [0, 0], sizes = [1, 8], strides = [1, 1]} : vector<4x8xf32> to vector<1x8xf32>
    %21 = vector.extract_strided_slice %5 {offsets = [0, 0], sizes = [1, 8], strides = [1, 1]} : vector<4x8xf32> to vector<1x8xf32>
    %22 = vector.broadcast %20 : vector<1x8xf32> to vector<8x8xf32>
    %23 = arith.addf %16, %22 : vector<8x8xf32>
    %cst_18 = arith.constant dense<0.000000e+00> : vector<8x16xf32>
    %24 = tpu.matmul %23, %17, %cst_18 {dimension_numbers = #tpu.dot_dimension_numbers<[1], [1], [0], [0], [0, 0, 1, 0], [], []>} : vector<8x8xf32>, vector<16x8xf32>, vector<8x16xf32> -> vector<8x16xf32>
    %25 = vector.broadcast %21 : vector<1x8xf32> to vector<8x8xf32>
    %26 = arith.addf %16, %25 : vector<8x8xf32>
    %cst_19 = arith.constant dense<0.000000e+00> : vector<8x23xf32>
    %27 = tpu.matmul %26, %19, %cst_19 {dimension_numbers = #tpu.dot_dimension_numbers<[1], [1], [0], [0], [0, 0, 1, 0], [], []>} : vector<8x8xf32>, vector<23x8xf32>, vector<8x23xf32> -> vector<8x23xf32>
    %28 = vector.extract_strided_slice %27 {offsets = [0, 7], sizes = [1, 16], strides = [1, 1]} : vector<8x23xf32> to vector<1x16xf32>
    %29 = vector.extract_strided_slice %27 {offsets = [1, 6], sizes = [1, 16], strides = [1, 1]} : vector<8x23xf32> to vector<1x16xf32>
    %30 = vector.extract_strided_slice %27 {offsets = [2, 5], sizes = [1, 16], strides = [1, 1]} : vector<8x23xf32> to vector<1x16xf32>
    %31 = vector.extract_strided_slice %27 {offsets = [3, 4], sizes = [1, 16], strides = [1, 1]} : vector<8x23xf32> to vector<1x16xf32>
    %32 = vector.extract_strided_slice %27 {offsets = [4, 3], sizes = [1, 16], strides = [1, 1]} : vector<8x23xf32> to vector<1x16xf32>
    %33 = vector.extract_strided_slice %27 {offsets = [5, 2], sizes = [1, 16], strides = [1, 1]} : vector<8x23xf32> to vector<1x16xf32>
    %34 = vector.extract_strided_slice %27 {offsets = [6, 1], sizes = [1, 16], strides = [1, 1]} : vector<8x23xf32> to vector<1x16xf32>
    %35 = vector.extract_strided_slice %27 {offsets = [7, 0], sizes = [1, 16], strides = [1, 1]} : vector<8x23xf32> to vector<1x16xf32>
    %36 = tpu.concatenate %28, %29, %30, %31, %32, %33, %34, %35 in 0 : vector<1x16xf32>, vector<1x16xf32>, vector<1x16xf32>, vector<1x16xf32>, vector<1x16xf32>, vector<1x16xf32>, vector<1x16xf32>, vector<1x16xf32> -> vector<8x16xf32>
    %37 = arith.addf %24, %36 : vector<8x16xf32>
    %cst_20 = arith.constant 0.353553385 : f32
    %38 = vector.broadcast %cst_20 : f32 to vector<8x16xf32>
    %39 = arith.mulf %37, %38 : vector<8x16xf32>
    %40 = arith.addf %39, %3 : vector<8x16xf32>
    %cst_21 = arith.constant dense<0xFF800000> : vector<8xf32>
    %41 = vector.multi_reduction <maximumf>, %40, %cst_21 [1] : vector<8x16xf32> to vector<8xf32>
    %42 = vector.shape_cast %41 : vector<8xf32> to vector<8x1xf32>
    %43 = vector.broadcast %42 : vector<8x1xf32> to vector<8x16xf32>
    %44 = arith.subf %40, %43 : vector<8x16xf32>
    %45 = math.exp %44 : vector<8x16xf32>
    %cst_22 = arith.constant dense<0.000000e+00> : vector<8xf32>
    %46 = vector.multi_reduction <add>, %45, %cst_22 [1] : vector<8x16xf32> to vector<8xf32>
    %47 = vector.shape_cast %46 : vector<8xf32> to vector<8x1xf32>
    %48 = tpu.reciprocal %47 {approx = true} : vector<8x1xf32> -> vector<8x1xf32>
    %49 = vector.broadcast %48 : vector<8x1xf32> to vector<8x16xf32>
    %50 = arith.mulf %45, %49 : vector<8x16xf32>
    %cst_23 = arith.constant dense<0.000000e+00> : vector<8x8xf32>
    %51 = tpu.matmul %50, %18, %cst_23 {dimension_numbers = #tpu.dot_dimension_numbers<[1], [0], [0], [1], [0, 0, 1, 1], [], []>} : vector<8x16xf32>, vector<16x8xf32>, vector<8x8xf32> -> vector<8x8xf32>
    %52 = vector.extract_strided_slice %13 {offsets = [0, 8], sizes = [8, 8], strides = [1, 1]} : vector<8x32xf32> to vector<8x8xf32>
    %53 = vector.extract_strided_slice %14 {offsets = [0, 8], sizes = [16, 8], strides = [1, 1]} : vector<16x32xf32> to vector<16x8xf32>
    %54 = vector.extract_strided_slice %15 {offsets = [0, 8], sizes = [16, 8], strides = [1, 1]} : vector<16x32xf32> to vector<16x8xf32>
    %55 = vector.extract_strided_slice %2 {offsets = [0, 8], sizes = [23, 8], strides = [1, 1]} : vector<23x32xf32> to vector<23x8xf32>
    %56 = vector.extract_strided_slice %4 {offsets = [1, 0], sizes = [1, 8], strides = [1, 1]} : vector<4x8xf32> to vector<1x8xf32>
    %57 = vector.extract_strided_slice %5 {offsets = [1, 0], sizes = [1, 8], strides = [1, 1]} : vector<4x8xf32> to vector<1x8xf32>
    %58 = vector.broadcast %56 : vector<1x8xf32> to vector<8x8xf32>
    %59 = arith.addf %52, %58 : vector<8x8xf32>
    %cst_24 = arith.constant dense<0.000000e+00> : vector<8x16xf32>
    %60 = tpu.matmul %59, %53, %cst_24 {dimension_numbers = #tpu.dot_dimension_numbers<[1], [1], [0], [0], [0, 0, 1, 0], [], []>} : vector<8x8xf32>, vector<16x8xf32>, vector<8x16xf32> -> vector<8x16xf32>
    %61 = vector.broadcast %57 : vector<1x8xf32> to vector<8x8xf32>
    %62 = arith.addf %52, %61 : vector<8x8xf32>
    %cst_25 = arith.constant dense<0.000000e+00> : vector<8x23xf32>
    %63 = tpu.matmul %62, %55, %cst_25 {dimension_numbers = #tpu.dot_dimension_numbers<[1], [1], [0], [0], [0, 0, 1, 0], [], []>} : vector<8x8xf32>, vector<23x8xf32>, vector<8x23xf32> -> vector<8x23xf32>
    %64 = vector.extract_strided_slice %63 {offsets = [0, 7], sizes = [1, 16], strides = [1, 1]} : vector<8x23xf32> to vector<1x16xf32>
    %65 = vector.extract_strided_slice %63 {offsets = [1, 6], sizes = [1, 16], strides = [1, 1]} : vector<8x23xf32> to vector<1x16xf32>
    %66 = vector.extract_strided_slice %63 {offsets = [2, 5], sizes = [1, 16], strides = [1, 1]} : vector<8x23xf32> to vector<1x16xf32>
    %67 = vector.extract_strided_slice %63 {offsets = [3, 4], sizes = [1, 16], strides = [1, 1]} : vector<8x23xf32> to vector<1x16xf32>
    %68 = vector.extract_strided_slice %63 {offsets = [4, 3], sizes = [1, 16], strides = [1, 1]} : vector<8x23xf32> to vector<1x16xf32>
    %69 = vector.extract_strided_slice %63 {offsets = [5, 2], sizes = [1, 16], strides = [1, 1]} : vector<8x23xf32> to vector<1x16xf32>
    %70 = vector.extract_strided_slice %63 {offsets = [6, 1], sizes = [1, 16], strides = [1, 1]} : vector<8x23xf32> to vector<1x16xf32>
    %71 = vector.extract_strided_slice %63 {offsets = [7, 0], sizes = [1, 16], strides = [1, 1]} : vector<8x23xf32> to vector<1x16xf32>
    %72 = tpu.concatenate %64, %65, %66, %67, %68, %69, %70, %71 in 0 : vector<1x16xf32>, vector<1x16xf32>, vector<1x16xf32>, vector<1x16xf32>, vector<1x16xf32>, vector<1x16xf32>, vector<1x16xf32>, vector<1x16xf32> -> vector<8x16xf32>
    %73 = arith.addf %60, %72 : vector<8x16xf32>
    %cst_26 = arith.constant 0.353553385 : f32
    %74 = vector.broadcast %cst_26 : f32 to vector<8x16xf32>
    %75 = arith.mulf %73, %74 : vector<8x16xf32>
    %76 = arith.addf %75, %3 : vector<8x16xf32>
    %cst_27 = arith.constant dense<0xFF800000> : vector<8xf32>
    %77 = vector.multi_reduction <maximumf>, %76, %cst_27 [1] : vector<8x16xf32> to vector<8xf32>
    %78 = vector.shape_cast %77 : vector<8xf32> to vector<8x1xf32>
    %79 = vector.broadcast %78 : vector<8x1xf32> to vector<8x16xf32>
    %80 = arith.subf %76, %79 : vector<8x16xf32>
    %81 = math.exp %80 : vector<8x16xf32>
    %cst_28 = arith.constant dense<0.000000e+00> : vector<8xf32>
    %82 = vector.multi_reduction <add>, %81, %cst_28 [1] : vector<8x16xf32> to vector<8xf32>
    %83 = vector.shape_cast %82 : vector<8xf32> to vector<8x1xf32>
    %84 = tpu.reciprocal %83 {approx = true} : vector<8x1xf32> -> vector<8x1xf32>
    %85 = vector.broadcast %84 : vector<8x1xf32> to vector<8x16xf32>
    %86 = arith.mulf %81, %85 : vector<8x16xf32>
    %cst_29 = arith.constant dense<0.000000e+00> : vector<8x8xf32>
    %87 = tpu.matmul %86, %54, %cst_29 {dimension_numbers = #tpu.dot_dimension_numbers<[1], [0], [0], [1], [0, 0, 1, 1], [], []>} : vector<8x16xf32>, vector<16x8xf32>, vector<8x8xf32> -> vector<8x8xf32>
    %88 = vector.extract_strided_slice %13 {offsets = [0, 16], sizes = [8, 8], strides = [1, 1]} : vector<8x32xf32> to vector<8x8xf32>
    %89 = vector.extract_strided_slice %14 {offsets = [0, 16], sizes = [16, 8], strides = [1, 1]} : vector<16x32xf32> to vector<16x8xf32>
    %90 = vector.extract_strided_slice %15 {offsets = [0, 16], sizes = [16, 8], strides = [1, 1]} : vector<16x32xf32> to vector<16x8xf32>
    %91 = vector.extract_strided_slice %2 {offsets = [0, 16], sizes = [23, 8], strides = [1, 1]} : vector<23x32xf32> to vector<23x8xf32>
    %92 = vector.extract_strided_slice %4 {offsets = [2, 0], sizes = [1, 8], strides = [1, 1]} : vector<4x8xf32> to vector<1x8xf32>
    %93 = vector.extract_strided_slice %5 {offsets = [2, 0], sizes = [1, 8], strides = [1, 1]} : vector<4x8xf32> to vector<1x8xf32>
    %94 = vector.broadcast %92 : vector<1x8xf32> to vector<8x8xf32>
    %95 = arith.addf %88, %94 : vector<8x8xf32>
    %cst_30 = arith.constant dense<0.000000e+00> : vector<8x16xf32>
    %96 = tpu.matmul %95, %89, %cst_30 {dimension_numbers = #tpu.dot_dimension_numbers<[1], [1], [0], [0], [0, 0, 1, 0], [], []>} : vector<8x8xf32>, vector<16x8xf32>, vector<8x16xf32> -> vector<8x16xf32>
    %97 = vector.broadcast %93 : vector<1x8xf32> to vector<8x8xf32>
    %98 = arith.addf %88, %97 : vector<8x8xf32>
    %cst_31 = arith.constant dense<0.000000e+00> : vector<8x23xf32>
    %99 = tpu.matmul %98, %91, %cst_31 {dimension_numbers = #tpu.dot_dimension_numbers<[1], [1], [0], [0], [0, 0, 1, 0], [], []>} : vector<8x8xf32>, vector<23x8xf32>, vector<8x23xf32> -> vector<8x23xf32>
    %100 = vector.extract_strided_slice %99 {offsets = [0, 7], sizes = [1, 16], strides = [1, 1]} : vector<8x23xf32> to vector<1x16xf32>
    %101 = vector.extract_strided_slice %99 {offsets = [1, 6], sizes = [1, 16], strides = [1, 1]} : vector<8x23xf32> to vector<1x16xf32>
    %102 = vector.extract_strided_slice %99 {offsets = [2, 5], sizes = [1, 16], strides = [1, 1]} : vector<8x23xf32> to vector<1x16xf32>
    %103 = vector.extract_strided_slice %99 {offsets = [3, 4], sizes = [1, 16], strides = [1, 1]} : vector<8x23xf32> to vector<1x16xf32>
    %104 = vector.extract_strided_slice %99 {offsets = [4, 3], sizes = [1, 16], strides = [1, 1]} : vector<8x23xf32> to vector<1x16xf32>
    %105 = vector.extract_strided_slice %99 {offsets = [5, 2], sizes = [1, 16], strides = [1, 1]} : vector<8x23xf32> to vector<1x16xf32>
    %106 = vector.extract_strided_slice %99 {offsets = [6, 1], sizes = [1, 16], strides = [1, 1]} : vector<8x23xf32> to vector<1x16xf32>
    %107 = vector.extract_strided_slice %99 {offsets = [7, 0], sizes = [1, 16], strides = [1, 1]} : vector<8x23xf32> to vector<1x16xf32>
    %108 = tpu.concatenate %100, %101, %102, %103, %104, %105, %106, %107 in 0 : vector<1x16xf32>, vector<1x16xf32>, vector<1x16xf32>, vector<1x16xf32>, vector<1x16xf32>, vector<1x16xf32>, vector<1x16xf32>, vector<1x16xf32> -> vector<8x16xf32>
    %109 = arith.addf %96, %108 : vector<8x16xf32>
    %cst_32 = arith.constant 0.353553385 : f32
    %110 = vector.broadcast %cst_32 : f32 to vector<8x16xf32>
    %111 = arith.mulf %109, %110 : vector<8x16xf32>
    %112 = arith.addf %111, %3 : vector<8x16xf32>
    %cst_33 = arith.constant dense<0xFF800000> : vector<8xf32>
    %113 = vector.multi_reduction <maximumf>, %112, %cst_33 [1] : vector<8x16xf32> to vector<8xf32>
    %114 = vector.shape_cast %113 : vector<8xf32> to vector<8x1xf32>
    %115 = vector.broadcast %114 : vector<8x1xf32> to vector<8x16xf32>
    %116 = arith.subf %112, %115 : vector<8x16xf32>
    %117 = math.exp %116 : vector<8x16xf32>
    %cst_34 = arith.constant dense<0.000000e+00> : vector<8xf32>
    %118 = vector.multi_reduction <add>, %117, %cst_34 [1] : vector<8x16xf32> to vector<8xf32>
    %119 = vector.shape_cast %118 : vector<8xf32> to vector<8x1xf32>
    %120 = tpu.reciprocal %119 {approx = true} : vector<8x1xf32> -> vector<8x1xf32>
    %121 = vector.broadcast %120 : vector<8x1xf32> to vector<8x16xf32>
    %122 = arith.mulf %117, %121 : vector<8x16xf32>
    %cst_35 = arith.constant dense<0.000000e+00> : vector<8x8xf32>
    %123 = tpu.matmul %122, %90, %cst_35 {dimension_numbers = #tpu.dot_dimension_numbers<[1], [0], [0], [1], [0, 0, 1, 1], [], []>} : vector<8x16xf32>, vector<16x8xf32>, vector<8x8xf32> -> vector<8x8xf32>
    %124 = vector.extract_strided_slice %13 {offsets = [0, 24], sizes = [8, 8], strides = [1, 1]} : vector<8x32xf32> to vector<8x8xf32>
    %125 = vector.extract_strided_slice %14 {offsets = [0, 24], sizes = [16, 8], strides = [1, 1]} : vector<16x32xf32> to vector<16x8xf32>
    %126 = vector.extract_strided_slice %15 {offsets = [0, 24], sizes = [16, 8], strides = [1, 1]} : vector<16x32xf32> to vector<16x8xf32>
    %127 = vector.extract_strided_slice %2 {offsets = [0, 24], sizes = [23, 8], strides = [1, 1]} : vector<23x32xf32> to vector<23x8xf32>
    %128 = vector.extract_strided_slice %4 {offsets = [3, 0], sizes = [1, 8], strides = [1, 1]} : vector<4x8xf32> to vector<1x8xf32>
    %129 = vector.extract_strided_slice %5 {offsets = [3, 0], sizes = [1, 8], strides = [1, 1]} : vector<4x8xf32> to vector<1x8xf32>
    %130 = vector.broadcast %128 : vector<1x8xf32> to vector<8x8xf32>
    %131 = arith.addf %124, %130 : vector<8x8xf32>
    %cst_36 = arith.constant dense<0.000000e+00> : vector<8x16xf32>
    %132 = tpu.matmul %131, %125, %cst_36 {dimension_numbers = #tpu.dot_dimension_numbers<[1], [1], [0], [0], [0, 0, 1, 0], [], []>} : vector<8x8xf32>, vector<16x8xf32>, vector<8x16xf32> -> vector<8x16xf32>
    %133 = vector.broadcast %129 : vector<1x8xf32> to vector<8x8xf32>
    %134 = arith.addf %124, %133 : vector<8x8xf32>
    %cst_37 = arith.constant dense<0.000000e+00> : vector<8x23xf32>
    %135 = tpu.matmul %134, %127, %cst_37 {dimension_numbers = #tpu.dot_dimension_numbers<[1], [1], [0], [0], [0, 0, 1, 0], [], []>} : vector<8x8xf32>, vector<23x8xf32>, vector<8x23xf32> -> vector<8x23xf32>
    %136 = vector.extract_strided_slice %135 {offsets = [0, 7], sizes = [1, 16], strides = [1, 1]} : vector<8x23xf32> to vector<1x16xf32>
    %137 = vector.extract_strided_slice %135 {offsets = [1, 6], sizes = [1, 16], strides = [1, 1]} : vector<8x23xf32> to vector<1x16xf32>
    %138 = vector.extract_strided_slice %135 {offsets = [2, 5], sizes = [1, 16], strides = [1, 1]} : vector<8x23xf32> to vector<1x16xf32>
    %139 = vector.extract_strided_slice %135 {offsets = [3, 4], sizes = [1, 16], strides = [1, 1]} : vector<8x23xf32> to vector<1x16xf32>
    %140 = vector.extract_strided_slice %135 {offsets = [4, 3], sizes = [1, 16], strides = [1, 1]} : vector<8x23xf32> to vector<1x16xf32>
    %141 = vector.extract_strided_slice %135 {offsets = [5, 2], sizes = [1, 16], strides = [1, 1]} : vector<8x23xf32> to vector<1x16xf32>
    %142 = vector.extract_strided_slice %135 {offsets = [6, 1], sizes = [1, 16], strides = [1, 1]} : vector<8x23xf32> to vector<1x16xf32>
    %143 = vector.extract_strided_slice %135 {offsets = [7, 0], sizes = [1, 16], strides = [1, 1]} : vector<8x23xf32> to vector<1x16xf32>
    %144 = tpu.concatenate %136, %137, %138, %139, %140, %141, %142, %143 in 0 : vector<1x16xf32>, vector<1x16xf32>, vector<1x16xf32>, vector<1x16xf32>, vector<1x16xf32>, vector<1x16xf32>, vector<1x16xf32>, vector<1x16xf32> -> vector<8x16xf32>
    %145 = arith.addf %132, %144 : vector<8x16xf32>
    %cst_38 = arith.constant 0.353553385 : f32
    %146 = vector.broadcast %cst_38 : f32 to vector<8x16xf32>
    %147 = arith.mulf %145, %146 : vector<8x16xf32>
    %148 = arith.addf %147, %3 : vector<8x16xf32>
    %cst_39 = arith.constant dense<0xFF800000> : vector<8xf32>
    %149 = vector.multi_reduction <maximumf>, %148, %cst_39 [1] : vector<8x16xf32> to vector<8xf32>
    %150 = vector.shape_cast %149 : vector<8xf32> to vector<8x1xf32>
    %151 = vector.broadcast %150 : vector<8x1xf32> to vector<8x16xf32>
    %152 = arith.subf %148, %151 : vector<8x16xf32>
    %153 = math.exp %152 : vector<8x16xf32>
    %cst_40 = arith.constant dense<0.000000e+00> : vector<8xf32>
    %154 = vector.multi_reduction <add>, %153, %cst_40 [1] : vector<8x16xf32> to vector<8xf32>
    %155 = vector.shape_cast %154 : vector<8xf32> to vector<8x1xf32>
    %156 = tpu.reciprocal %155 {approx = true} : vector<8x1xf32> -> vector<8x1xf32>
    %157 = vector.broadcast %156 : vector<8x1xf32> to vector<8x16xf32>
    %158 = arith.mulf %153, %157 : vector<8x16xf32>
    %cst_41 = arith.constant dense<0.000000e+00> : vector<8x8xf32>
    %159 = tpu.matmul %158, %126, %cst_41 {dimension_numbers = #tpu.dot_dimension_numbers<[1], [0], [0], [1], [0, 0, 1, 1], [], []>} : vector<8x16xf32>, vector<16x8xf32>, vector<8x8xf32> -> vector<8x8xf32>
    %160 = tpu.concatenate %51, %87, %123, %159 in 1 : vector<8x8xf32>, vector<8x8xf32>, vector<8x8xf32>, vector<8x8xf32> -> vector<8x32xf32>
    %c0_42 = arith.constant 0 : index
    %c0_43 = arith.constant 0 : index
    %161 = vector.load %arg6[%c0_42, %c0_43] : memref<32x32xf32, #tpu.memory_space<vmem>>, vector<32x32xf32>
    %cst_44 = arith.constant dense<0.000000e+00> : vector<8x32xf32>
    %162 = tpu.matmul %160, %161, %cst_44 {dimension_numbers = #tpu.dot_dimension_numbers<[1], [0], [0], [1], [0, 0, 1, 1], [], []>} : vector<8x32xf32>, vector<32x32xf32>, vector<8x32xf32> -> vector<8x32xf32>
    %163 = arith.addf %7, %162 : vector<8x32xf32>
    %c0_45 = arith.constant 0 : index
    %c0_46 = arith.constant 0 : index
    %164 = vector.load %arg9[%c0_45, %c0_46] : memref<1x32xf32, #tpu.memory_space<vmem>>, vector<1x32xf32>
    %c0_47 = arith.constant 0 : index
    %c0_48 = arith.constant 0 : index
    %165 = vector.load %arg10[%c0_47, %c0_48] : memref<1x32xf32, #tpu.memory_space<vmem>>, vector<1x32xf32>
    %cst_49 = arith.constant dense<0.000000e+00> : vector<8xf32>
    %166 = vector.multi_reduction <add>, %163, %cst_49 [1] : vector<8x32xf32> to vector<8xf32>
    %167 = vector.shape_cast %166 : vector<8xf32> to vector<8x1xf32>
    %cst_50 = arith.constant 3.200000e+01 : f32
    %168 = vector.broadcast %cst_50 : f32 to vector<8x1xf32>
    %169 = arith.divf %167, %168 : vector<8x1xf32>
    %170 = vector.broadcast %169 : vector<8x1xf32> to vector<8x32xf32>
    %171 = arith.subf %163, %170 : vector<8x32xf32>
    %172 = arith.mulf %171, %171 : vector<8x32xf32>
    %cst_51 = arith.constant dense<0.000000e+00> : vector<8xf32>
    %173 = vector.multi_reduction <add>, %172, %cst_51 [1] : vector<8x32xf32> to vector<8xf32>
    %174 = vector.shape_cast %173 : vector<8xf32> to vector<8x1xf32>
    %cst_52 = arith.constant 3.200000e+01 : f32
    %175 = vector.broadcast %cst_52 : f32 to vector<8x1xf32>
    %176 = arith.divf %174, %175 : vector<8x1xf32>
    %177 = vector.broadcast %169 : vector<8x1xf32> to vector<8x32xf32>
    %178 = arith.subf %163, %177 : vector<8x32xf32>
    %cst_53 = arith.constant 9.99999974E-6 : f32
    %179 = vector.broadcast %cst_53 : f32 to vector<8x1xf32>
    %180 = arith.addf %176, %179 : vector<8x1xf32>
    %181 = math.rsqrt %180 : vector<8x1xf32>
    %182 = vector.broadcast %181 : vector<8x1xf32> to vector<8x32xf32>
    %183 = arith.mulf %178, %182 : vector<8x32xf32>
    %184 = vector.broadcast %164 : vector<1x32xf32> to vector<8x32xf32>
    %185 = arith.mulf %183, %184 : vector<8x32xf32>
    %186 = vector.broadcast %165 : vector<1x32xf32> to vector<8x32xf32>
    %187 = arith.addf %185, %186 : vector<8x32xf32>
    %c0_54 = arith.constant 0 : index
    %c0_55 = arith.constant 0 : index
    %188 = vector.load %arg11[%c0_54, %c0_55] : memref<32x64xf32, #tpu.memory_space<vmem>>, vector<32x64xf32>
    %cst_56 = arith.constant dense<0.000000e+00> : vector<8x64xf32>
    %189 = tpu.matmul %187, %188, %cst_56 {dimension_numbers = #tpu.dot_dimension_numbers<[1], [0], [0], [1], [0, 0, 1, 1], [], []>} : vector<8x32xf32>, vector<32x64xf32>, vector<8x64xf32> -> vector<8x64xf32>
    %c0_57 = arith.constant 0 : index
    %c0_58 = arith.constant 0 : index
    %190 = vector.load %arg12[%c0_57, %c0_58] : memref<1x64xf32, #tpu.memory_space<vmem>>, vector<1x64xf32>
    %191 = vector.broadcast %190 : vector<1x64xf32> to vector<8x64xf32>
    %192 = arith.addf %189, %191 : vector<8x64xf32>
    %cst_59 = arith.constant 0.000000e+00 : f32
    %193 = vector.broadcast %cst_59 : f32 to vector<8x64xf32>
    %194 = arith.maximumf %192, %193 : vector<8x64xf32>
    %c0_60 = arith.constant 0 : index
    %c0_61 = arith.constant 0 : index
    %195 = vector.load %arg13[%c0_60, %c0_61] : memref<64x32xf32, #tpu.memory_space<vmem>>, vector<64x32xf32>
    %cst_62 = arith.constant dense<0.000000e+00> : vector<8x32xf32>
    %196 = tpu.matmul %194, %195, %cst_62 {dimension_numbers = #tpu.dot_dimension_numbers<[1], [0], [0], [1], [0, 0, 1, 1], [], []>} : vector<8x64xf32>, vector<64x32xf32>, vector<8x32xf32> -> vector<8x32xf32>
    %c0_63 = arith.constant 0 : index
    %c0_64 = arith.constant 0 : index
    %197 = vector.load %arg14[%c0_63, %c0_64] : memref<1x32xf32, #tpu.memory_space<vmem>>, vector<1x32xf32>
    %198 = vector.broadcast %197 : vector<1x32xf32> to vector<8x32xf32>
    %199 = arith.addf %196, %198 : vector<8x32xf32>
    %200 = arith.addf %187, %199 : vector<8x32xf32>
    %c0_65 = arith.constant 0 : index
    %c0_66 = arith.constant 0 : index
    %201 = vector.load %arg15[%c0_65, %c0_66] : memref<1x32xf32, #tpu.memory_space<vmem>>, vector<1x32xf32>
    %c0_67 = arith.constant 0 : index
    %c0_68 = arith.constant 0 : index
    %202 = vector.load %arg16[%c0_67, %c0_68] : memref<1x32xf32, #tpu.memory_space<vmem>>, vector<1x32xf32>
    %cst_69 = arith.constant dense<0.000000e+00> : vector<8xf32>
    %203 = vector.multi_reduction <add>, %200, %cst_69 [1] : vector<8x32xf32> to vector<8xf32>
    %204 = vector.shape_cast %203 : vector<8xf32> to vector<8x1xf32>
    %cst_70 = arith.constant 3.200000e+01 : f32
    %205 = vector.broadcast %cst_70 : f32 to vector<8x1xf32>
    %206 = arith.divf %204, %205 : vector<8x1xf32>
    %207 = vector.broadcast %206 : vector<8x1xf32> to vector<8x32xf32>
    %208 = arith.subf %200, %207 : vector<8x32xf32>
    %209 = arith.mulf %208, %208 : vector<8x32xf32>
    %cst_71 = arith.constant dense<0.000000e+00> : vector<8xf32>
    %210 = vector.multi_reduction <add>, %209, %cst_71 [1] : vector<8x32xf32> to vector<8xf32>
    %211 = vector.shape_cast %210 : vector<8xf32> to vector<8x1xf32>
    %cst_72 = arith.constant 3.200000e+01 : f32
    %212 = vector.broadcast %cst_72 : f32 to vector<8x1xf32>
    %213 = arith.divf %211, %212 : vector<8x1xf32>
    %214 = vector.broadcast %206 : vector<8x1xf32> to vector<8x32xf32>
    %215 = arith.subf %200, %214 : vector<8x32xf32>
    %cst_73 = arith.constant 9.99999974E-6 : f32
    %216 = vector.broadcast %cst_73 : f32 to vector<8x1xf32>
    %217 = arith.addf %213, %216 : vector<8x1xf32>
    %218 = math.rsqrt %217 : vector<8x1xf32>
    %219 = vector.broadcast %218 : vector<8x1xf32> to vector<8x32xf32>
    %220 = arith.mulf %215, %219 : vector<8x32xf32>
    %221 = vector.broadcast %201 : vector<1x32xf32> to vector<8x32xf32>
    %222 = arith.mulf %220, %221 : vector<8x32xf32>
    %223 = vector.broadcast %202 : vector<1x32xf32> to vector<8x32xf32>
    %224 = arith.addf %222, %223 : vector<8x32xf32>
    %c0_74 = arith.constant 0 : index
    %c0_75 = arith.constant 0 : index
    %c0_76 = arith.constant 0 : index
    %225 = vector.load %arg17[%c0_74, %c0_75, %c0_76] : memref<2x8x32xf32, #tpu.memory_space<vmem>>, vector<1x8x32xf32>
    %226 = vector.shape_cast %225 : vector<1x8x32xf32> to vector<8x32xf32>
    %227 = vector.shape_cast %224 : vector<8x32xf32> to vector<1x8x32xf32>
    tpu.vector_store %arg17[%c0_74, %c0_75, %c0_76], %227 {strides = array<i32>} : memref<2x8x32xf32, #tpu.memory_space<vmem>>, vector<1x8x32xf32>,
    %c1 = arith.constant 1 : index
    %c0_77 = arith.constant 0 : index
    %c0_78 = arith.constant 0 : index
    %228 = vector.load %arg0[%c1, %c0_77, %c0_78] : memref<2x8x32xf32, #tpu.memory_space<vmem>>, vector<1x8x32xf32>
    %229 = vector.shape_cast %228 : vector<1x8x32xf32> to vector<8x32xf32>
    %c1_79 = arith.constant 1 : index
    %c0_80 = arith.constant 0 : index
    %c0_81 = arith.constant 0 : index
    %230 = vector.load %arg1[%c1_79, %c0_80, %c0_81] : memref<2x8x32xf32, #tpu.memory_space<vmem>>, vector<1x8x32xf32>
    %231 = vector.shape_cast %230 : vector<1x8x32xf32> to vector<8x32xf32>
    %232 = tpu.concatenate %231, %229 in 0 : vector<8x32xf32>, vector<8x32xf32> -> vector<16x32xf32>
    %c0_82 = arith.constant 0 : index
    %c0_83 = arith.constant 0 : index
    %233 = vector.load %arg4[%c0_82, %c0_83] : memref<32x96xf32, #tpu.memory_space<vmem>>, vector<32x96xf32>
    %cst_84 = arith.constant dense<0.000000e+00> : vector<16x96xf32>
    %234 = tpu.matmul %232, %233, %cst_84 {dimension_numbers = #tpu.dot_dimension_numbers<[1], [0], [0], [1], [0, 0, 1, 1], [], []>} : vector<16x32xf32>, vector<32x96xf32>, vector<16x96xf32> -> vector<16x96xf32>
    %235 = vector.extract_strided_slice %234 {offsets = [8, 0], sizes = [8, 32], strides = [1, 1]} : vector<16x96xf32> to vector<8x32xf32>
    %236 = vector.extract_strided_slice %234 {offsets = [0, 32], sizes = [16, 32], strides = [1, 1]} : vector<16x96xf32> to vector<16x32xf32>
    %237 = vector.extract_strided_slice %234 {offsets = [0, 64], sizes = [16, 32], strides = [1, 1]} : vector<16x96xf32> to vector<16x32xf32>
    %238 = vector.extract_strided_slice %235 {offsets = [0, 0], sizes = [8, 8], strides = [1, 1]} : vector<8x32xf32> to vector<8x8xf32>
    %239 = vector.extract_strided_slice %236 {offsets = [0, 0], sizes = [16, 8], strides = [1, 1]} : vector<16x32xf32> to vector<16x8xf32>
    %240 = vector.extract_strided_slice %237 {offsets = [0, 0], sizes = [16, 8], strides = [1, 1]} : vector<16x32xf32> to vector<16x8xf32>
    %241 = vector.extract_strided_slice %2 {offsets = [0, 0], sizes = [23, 8], strides = [1, 1]} : vector<23x32xf32> to vector<23x8xf32>
    %242 = vector.extract_strided_slice %4 {offsets = [0, 0], sizes = [1, 8], strides = [1, 1]} : vector<4x8xf32> to vector<1x8xf32>
    %243 = vector.extract_strided_slice %5 {offsets = [0, 0], sizes = [1, 8], strides = [1, 1]} : vector<4x8xf32> to vector<1x8xf32>
    %244 = vector.broadcast %242 : vector<1x8xf32> to vector<8x8xf32>
    %245 = arith.addf %238, %244 : vector<8x8xf32>
    %cst_85 = arith.constant dense<0.000000e+00> : vector<8x16xf32>
    %246 = tpu.matmul %245, %239, %cst_85 {dimension_numbers = #tpu.dot_dimension_numbers<[1], [1], [0], [0], [0, 0, 1, 0], [], []>} : vector<8x8xf32>, vector<16x8xf32>, vector<8x16xf32> -> vector<8x16xf32>
    %247 = vector.broadcast %243 : vector<1x8xf32> to vector<8x8xf32>
    %248 = arith.addf %238, %247 : vector<8x8xf32>
    %cst_86 = arith.constant dense<0.000000e+00> : vector<8x23xf32>
    %249 = tpu.matmul %248, %241, %cst_86 {dimension_numbers = #tpu.dot_dimension_numbers<[1], [1], [0], [0], [0, 0, 1, 0], [], []>} : vector<8x8xf32>, vector<23x8xf32>, vector<8x23xf32> -> vector<8x23xf32>
    %250 = vector.extract_strided_slice %249 {offsets = [0, 7], sizes = [1, 16], strides = [1, 1]} : vector<8x23xf32> to vector<1x16xf32>
    %251 = vector.extract_strided_slice %249 {offsets = [1, 6], sizes = [1, 16], strides = [1, 1]} : vector<8x23xf32> to vector<1x16xf32>
    %252 = vector.extract_strided_slice %249 {offsets = [2, 5], sizes = [1, 16], strides = [1, 1]} : vector<8x23xf32> to vector<1x16xf32>
    %253 = vector.extract_strided_slice %249 {offsets = [3, 4], sizes = [1, 16], strides = [1, 1]} : vector<8x23xf32> to vector<1x16xf32>
    %254 = vector.extract_strided_slice %249 {offsets = [4, 3], sizes = [1, 16], strides = [1, 1]} : vector<8x23xf32> to vector<1x16xf32>
    %255 = vector.extract_strided_slice %249 {offsets = [5, 2], sizes = [1, 16], strides = [1, 1]} : vector<8x23xf32> to vector<1x16xf32>
    %256 = vector.extract_strided_slice %249 {offsets = [6, 1], sizes = [1, 16], strides = [1, 1]} : vector<8x23xf32> to vector<1x16xf32>
    %257 = vector.extract_strided_slice %249 {offsets = [7, 0], sizes = [1, 16], strides = [1, 1]} : vector<8x23xf32> to vector<1x16xf32>
    %258 = tpu.concatenate %250, %251, %252, %253, %254, %255, %256, %257 in 0 : vector<1x16xf32>, vector<1x16xf32>, vector<1x16xf32>, vector<1x16xf32>, vector<1x16xf32>, vector<1x16xf32>, vector<1x16xf32>, vector<1x16xf32> -> vector<8x16xf32>
    %259 = arith.addf %246, %258 : vector<8x16xf32>
    %cst_87 = arith.constant 0.353553385 : f32
    %260 = vector.broadcast %cst_87 : f32 to vector<8x16xf32>
    %261 = arith.mulf %259, %260 : vector<8x16xf32>
    %262 = arith.addf %261, %3 : vector<8x16xf32>
    %cst_88 = arith.constant dense<0xFF800000> : vector<8xf32>
    %263 = vector.multi_reduction <maximumf>, %262, %cst_88 [1] : vector<8x16xf32> to vector<8xf32>
    %264 = vector.shape_cast %263 : vector<8xf32> to vector<8x1xf32>
    %265 = vector.broadcast %264 : vector<8x1xf32> to vector<8x16xf32>
    %266 = arith.subf %262, %265 : vector<8x16xf32>
    %267 = math.exp %266 : vector<8x16xf32>
    %cst_89 = arith.constant dense<0.000000e+00> : vector<8xf32>
    %268 = vector.multi_reduction <add>, %267, %cst_89 [1] : vector<8x16xf32> to vector<8xf32>
    %269 = vector.shape_cast %268 : vector<8xf32> to vector<8x1xf32>
    %270 = tpu.reciprocal %269 {approx = true} : vector<8x1xf32> -> vector<8x1xf32>
    %271 = vector.broadcast %270 : vector<8x1xf32> to vector<8x16xf32>
    %272 = arith.mulf %267, %271 : vector<8x16xf32>
    %cst_90 = arith.constant dense<0.000000e+00> : vector<8x8xf32>
    %273 = tpu.matmul %272, %240, %cst_90 {dimension_numbers = #tpu.dot_dimension_numbers<[1], [0], [0], [1], [0, 0, 1, 1], [], []>} : vector<8x16xf32>, vector<16x8xf32>, vector<8x8xf32> -> vector<8x8xf32>
    %274 = vector.extract_strided_slice %235 {offsets = [0, 8], sizes = [8, 8], strides = [1, 1]} : vector<8x32xf32> to vector<8x8xf32>
    %275 = vector.extract_strided_slice %236 {offsets = [0, 8], sizes = [16, 8], strides = [1, 1]} : vector<16x32xf32> to vector<16x8xf32>
    %276 = vector.extract_strided_slice %237 {offsets = [0, 8], sizes = [16, 8], strides = [1, 1]} : vector<16x32xf32> to vector<16x8xf32>
    %277 = vector.extract_strided_slice %2 {offsets = [0, 8], sizes = [23, 8], strides = [1, 1]} : vector<23x32xf32> to vector<23x8xf32>
    %278 = vector.extract_strided_slice %4 {offsets = [1, 0], sizes = [1, 8], strides = [1, 1]} : vector<4x8xf32> to vector<1x8xf32>
    %279 = vector.extract_strided_slice %5 {offsets = [1, 0], sizes = [1, 8], strides = [1, 1]} : vector<4x8xf32> to vector<1x8xf32>
    %280 = vector.broadcast %278 : vector<1x8xf32> to vector<8x8xf32>
    %281 = arith.addf %274, %280 : vector<8x8xf32>
    %cst_91 = arith.constant dense<0.000000e+00> : vector<8x16xf32>
    %282 = tpu.matmul %281, %275, %cst_91 {dimension_numbers = #tpu.dot_dimension_numbers<[1], [1], [0], [0], [0, 0, 1, 0], [], []>} : vector<8x8xf32>, vector<16x8xf32>, vector<8x16xf32> -> vector<8x16xf32>
    %283 = vector.broadcast %279 : vector<1x8xf32> to vector<8x8xf32>
    %284 = arith.addf %274, %283 : vector<8x8xf32>
    %cst_92 = arith.constant dense<0.000000e+00> : vector<8x23xf32>
    %285 = tpu.matmul %284, %277, %cst_92 {dimension_numbers = #tpu.dot_dimension_numbers<[1], [1], [0], [0], [0, 0, 1, 0], [], []>} : vector<8x8xf32>, vector<23x8xf32>, vector<8x23xf32> -> vector<8x23xf32>
    %286 = vector.extract_strided_slice %285 {offsets = [0, 7], sizes = [1, 16], strides = [1, 1]} : vector<8x23xf32> to vector<1x16xf32>
    %287 = vector.extract_strided_slice %285 {offsets = [1, 6], sizes = [1, 16], strides = [1, 1]} : vector<8x23xf32> to vector<1x16xf32>
    %288 = vector.extract_strided_slice %285 {offsets = [2, 5], sizes = [1, 16], strides = [1, 1]} : vector<8x23xf32> to vector<1x16xf32>
    %289 = vector.extract_strided_slice %285 {offsets = [3, 4], sizes = [1, 16], strides = [1, 1]} : vector<8x23xf32> to vector<1x16xf32>
    %290 = vector.extract_strided_slice %285 {offsets = [4, 3], sizes = [1, 16], strides = [1, 1]} : vector<8x23xf32> to vector<1x16xf32>
    %291 = vector.extract_strided_slice %285 {offsets = [5, 2], sizes = [1, 16], strides = [1, 1]} : vector<8x23xf32> to vector<1x16xf32>
    %292 = vector.extract_strided_slice %285 {offsets = [6, 1], sizes = [1, 16], strides = [1, 1]} : vector<8x23xf32> to vector<1x16xf32>
    %293 = vector.extract_strided_slice %285 {offsets = [7, 0], sizes = [1, 16], strides = [1, 1]} : vector<8x23xf32> to vector<1x16xf32>
    %294 = tpu.concatenate %286, %287, %288, %289, %290, %291, %292, %293 in 0 : vector<1x16xf32>, vector<1x16xf32>, vector<1x16xf32>, vector<1x16xf32>, vector<1x16xf32>, vector<1x16xf32>, vector<1x16xf32>, vector<1x16xf32> -> vector<8x16xf32>
    %295 = arith.addf %282, %294 : vector<8x16xf32>
    %cst_93 = arith.constant 0.353553385 : f32
    %296 = vector.broadcast %cst_93 : f32 to vector<8x16xf32>
    %297 = arith.mulf %295, %296 : vector<8x16xf32>
    %298 = arith.addf %297, %3 : vector<8x16xf32>
    %cst_94 = arith.constant dense<0xFF800000> : vector<8xf32>
    %299 = vector.multi_reduction <maximumf>, %298, %cst_94 [1] : vector<8x16xf32> to vector<8xf32>
    %300 = vector.shape_cast %299 : vector<8xf32> to vector<8x1xf32>
    %301 = vector.broadcast %300 : vector<8x1xf32> to vector<8x16xf32>
    %302 = arith.subf %298, %301 : vector<8x16xf32>
    %303 = math.exp %302 : vector<8x16xf32>
    %cst_95 = arith.constant dense<0.000000e+00> : vector<8xf32>
    %304 = vector.multi_reduction <add>, %303, %cst_95 [1] : vector<8x16xf32> to vector<8xf32>
    %305 = vector.shape_cast %304 : vector<8xf32> to vector<8x1xf32>
    %306 = tpu.reciprocal %305 {approx = true} : vector<8x1xf32> -> vector<8x1xf32>
    %307 = vector.broadcast %306 : vector<8x1xf32> to vector<8x16xf32>
    %308 = arith.mulf %303, %307 : vector<8x16xf32>
    %cst_96 = arith.constant dense<0.000000e+00> : vector<8x8xf32>
    %309 = tpu.matmul %308, %276, %cst_96 {dimension_numbers = #tpu.dot_dimension_numbers<[1], [0], [0], [1], [0, 0, 1, 1], [], []>} : vector<8x16xf32>, vector<16x8xf32>, vector<8x8xf32> -> vector<8x8xf32>
    %310 = vector.extract_strided_slice %235 {offsets = [0, 16], sizes = [8, 8], strides = [1, 1]} : vector<8x32xf32> to vector<8x8xf32>
    %311 = vector.extract_strided_slice %236 {offsets = [0, 16], sizes = [16, 8], strides = [1, 1]} : vector<16x32xf32> to vector<16x8xf32>
    %312 = vector.extract_strided_slice %237 {offsets = [0, 16], sizes = [16, 8], strides = [1, 1]} : vector<16x32xf32> to vector<16x8xf32>
    %313 = vector.extract_strided_slice %2 {offsets = [0, 16], sizes = [23, 8], strides = [1, 1]} : vector<23x32xf32> to vector<23x8xf32>
    %314 = vector.extract_strided_slice %4 {offsets = [2, 0], sizes = [1, 8], strides = [1, 1]} : vector<4x8xf32> to vector<1x8xf32>
    %315 = vector.extract_strided_slice %5 {offsets = [2, 0], sizes = [1, 8], strides = [1, 1]} : vector<4x8xf32> to vector<1x8xf32>
    %316 = vector.broadcast %314 : vector<1x8xf32> to vector<8x8xf32>
    %317 = arith.addf %310, %316 : vector<8x8xf32>
    %cst_97 = arith.constant dense<0.000000e+00> : vector<8x16xf32>
    %318 = tpu.matmul %317, %311, %cst_97 {dimension_numbers = #tpu.dot_dimension_numbers<[1], [1], [0], [0], [0, 0, 1, 0], [], []>} : vector<8x8xf32>, vector<16x8xf32>, vector<8x16xf32> -> vector<8x16xf32>
    %319 = vector.broadcast %315 : vector<1x8xf32> to vector<8x8xf32>
    %320 = arith.addf %310, %319 : vector<8x8xf32>
    %cst_98 = arith.constant dense<0.000000e+00> : vector<8x23xf32>
    %321 = tpu.matmul %320, %313, %cst_98 {dimension_numbers = #tpu.dot_dimension_numbers<[1], [1], [0], [0], [0, 0, 1, 0], [], []>} : vector<8x8xf32>, vector<23x8xf32>, vector<8x23xf32> -> vector<8x23xf32>
    %322 = vector.extract_strided_slice %321 {offsets = [0, 7], sizes = [1, 16], strides = [1, 1]} : vector<8x23xf32> to vector<1x16xf32>
    %323 = vector.extract_strided_slice %321 {offsets = [1, 6], sizes = [1, 16], strides = [1, 1]} : vector<8x23xf32> to vector<1x16xf32>
    %324 = vector.extract_strided_slice %321 {offsets = [2, 5], sizes = [1, 16], strides = [1, 1]} : vector<8x23xf32> to vector<1x16xf32>
    %325 = vector.extract_strided_slice %321 {offsets = [3, 4], sizes = [1, 16], strides = [1, 1]} : vector<8x23xf32> to vector<1x16xf32>
    %326 = vector.extract_strided_slice %321 {offsets = [4, 3], sizes = [1, 16], strides = [1, 1]} : vector<8x23xf32> to vector<1x16xf32>
    %327 = vector.extract_strided_slice %321 {offsets = [5, 2], sizes = [1, 16], strides = [1, 1]} : vector<8x23xf32> to vector<1x16xf32>
    %328 = vector.extract_strided_slice %321 {offsets = [6, 1], sizes = [1, 16], strides = [1, 1]} : vector<8x23xf32> to vector<1x16xf32>
    %329 = vector.extract_strided_slice %321 {offsets = [7, 0], sizes = [1, 16], strides = [1, 1]} : vector<8x23xf32> to vector<1x16xf32>
    %330 = tpu.concatenate %322, %323, %324, %325, %326, %327, %328, %329 in 0 : vector<1x16xf32>, vector<1x16xf32>, vector<1x16xf32>, vector<1x16xf32>, vector<1x16xf32>, vector<1x16xf32>, vector<1x16xf32>, vector<1x16xf32> -> vector<8x16xf32>
    %331 = arith.addf %318, %330 : vector<8x16xf32>
    %cst_99 = arith.constant 0.353553385 : f32
    %332 = vector.broadcast %cst_99 : f32 to vector<8x16xf32>
    %333 = arith.mulf %331, %332 : vector<8x16xf32>
    %334 = arith.addf %333, %3 : vector<8x16xf32>
    %cst_100 = arith.constant dense<0xFF800000> : vector<8xf32>
    %335 = vector.multi_reduction <maximumf>, %334, %cst_100 [1] : vector<8x16xf32> to vector<8xf32>
    %336 = vector.shape_cast %335 : vector<8xf32> to vector<8x1xf32>
    %337 = vector.broadcast %336 : vector<8x1xf32> to vector<8x16xf32>
    %338 = arith.subf %334, %337 : vector<8x16xf32>
    %339 = math.exp %338 : vector<8x16xf32>
    %cst_101 = arith.constant dense<0.000000e+00> : vector<8xf32>
    %340 = vector.multi_reduction <add>, %339, %cst_101 [1] : vector<8x16xf32> to vector<8xf32>
    %341 = vector.shape_cast %340 : vector<8xf32> to vector<8x1xf32>
    %342 = tpu.reciprocal %341 {approx = true} : vector<8x1xf32> -> vector<8x1xf32>
    %343 = vector.broadcast %342 : vector<8x1xf32> to vector<8x16xf32>
    %344 = arith.mulf %339, %343 : vector<8x16xf32>
    %cst_102 = arith.constant dense<0.000000e+00> : vector<8x8xf32>
    %345 = tpu.matmul %344, %312, %cst_102 {dimension_numbers = #tpu.dot_dimension_numbers<[1], [0], [0], [1], [0, 0, 1, 1], [], []>} : vector<8x16xf32>, vector<16x8xf32>, vector<8x8xf32> -> vector<8x8xf32>
    %346 = vector.extract_strided_slice %235 {offsets = [0, 24], sizes = [8, 8], strides = [1, 1]} : vector<8x32xf32> to vector<8x8xf32>
    %347 = vector.extract_strided_slice %236 {offsets = [0, 24], sizes = [16, 8], strides = [1, 1]} : vector<16x32xf32> to vector<16x8xf32>
    %348 = vector.extract_strided_slice %237 {offsets = [0, 24], sizes = [16, 8], strides = [1, 1]} : vector<16x32xf32> to vector<16x8xf32>
    %349 = vector.extract_strided_slice %2 {offsets = [0, 24], sizes = [23, 8], strides = [1, 1]} : vector<23x32xf32> to vector<23x8xf32>
    %350 = vector.extract_strided_slice %4 {offsets = [3, 0], sizes = [1, 8], strides = [1, 1]} : vector<4x8xf32> to vector<1x8xf32>
    %351 = vector.extract_strided_slice %5 {offsets = [3, 0], sizes = [1, 8], strides = [1, 1]} : vector<4x8xf32> to vector<1x8xf32>
    %352 = vector.broadcast %350 : vector<1x8xf32> to vector<8x8xf32>
    %353 = arith.addf %346, %352 : vector<8x8xf32>
    %cst_103 = arith.constant dense<0.000000e+00> : vector<8x16xf32>
    %354 = tpu.matmul %353, %347, %cst_103 {dimension_numbers = #tpu.dot_dimension_numbers<[1], [1], [0], [0], [0, 0, 1, 0], [], []>} : vector<8x8xf32>, vector<16x8xf32>, vector<8x16xf32> -> vector<8x16xf32>
    %355 = vector.broadcast %351 : vector<1x8xf32> to vector<8x8xf32>
    %356 = arith.addf %346, %355 : vector<8x8xf32>
    %cst_104 = arith.constant dense<0.000000e+00> : vector<8x23xf32>
    %357 = tpu.matmul %356, %349, %cst_104 {dimension_numbers = #tpu.dot_dimension_numbers<[1], [1], [0], [0], [0, 0, 1, 0], [], []>} : vector<8x8xf32>, vector<23x8xf32>, vector<8x23xf32> -> vector<8x23xf32>
    %358 = vector.extract_strided_slice %357 {offsets = [0, 7], sizes = [1, 16], strides = [1, 1]} : vector<8x23xf32> to vector<1x16xf32>
    %359 = vector.extract_strided_slice %357 {offsets = [1, 6], sizes = [1, 16], strides = [1, 1]} : vector<8x23xf32> to vector<1x16xf32>
    %360 = vector.extract_strided_slice %357 {offsets = [2, 5], sizes = [1, 16], strides = [1, 1]} : vector<8x23xf32> to vector<1x16xf32>
    %361 = vector.extract_strided_slice %357 {offsets = [3, 4], sizes = [1, 16], strides = [1, 1]} : vector<8x23xf32> to vector<1x16xf32>
    %362 = vector.extract_strided_slice %357 {offsets = [4, 3], sizes = [1, 16], strides = [1, 1]} : vector<8x23xf32> to vector<1x16xf32>
    %363 = vector.extract_strided_slice %357 {offsets = [5, 2], sizes = [1, 16], strides = [1, 1]} : vector<8x23xf32> to vector<1x16xf32>
    %364 = vector.extract_strided_slice %357 {offsets = [6, 1], sizes = [1, 16], strides = [1, 1]} : vector<8x23xf32> to vector<1x16xf32>
    %365 = vector.extract_strided_slice %357 {offsets = [7, 0], sizes = [1, 16], strides = [1, 1]} : vector<8x23xf32> to vector<1x16xf32>
    %366 = tpu.concatenate %358, %359, %360, %361, %362, %363, %364, %365 in 0 : vector<1x16xf32>, vector<1x16xf32>, vector<1x16xf32>, vector<1x16xf32>, vector<1x16xf32>, vector<1x16xf32>, vector<1x16xf32>, vector<1x16xf32> -> vector<8x16xf32>
    %367 = arith.addf %354, %366 : vector<8x16xf32>
    %cst_105 = arith.constant 0.353553385 : f32
    %368 = vector.broadcast %cst_105 : f32 to vector<8x16xf32>
    %369 = arith.mulf %367, %368 : vector<8x16xf32>
    %370 = arith.addf %369, %3 : vector<8x16xf32>
    %cst_106 = arith.constant dense<0xFF800000> : vector<8xf32>
    %371 = vector.multi_reduction <maximumf>, %370, %cst_106 [1] : vector<8x16xf32> to vector<8xf32>
    %372 = vector.shape_cast %371 : vector<8xf32> to vector<8x1xf32>
    %373 = vector.broadcast %372 : vector<8x1xf32> to vector<8x16xf32>
    %374 = arith.subf %370, %373 : vector<8x16xf32>
    %375 = math.exp %374 : vector<8x16xf32>
    %cst_107 = arith.constant dense<0.000000e+00> : vector<8xf32>
    %376 = vector.multi_reduction <add>, %375, %cst_107 [1] : vector<8x16xf32> to vector<8xf32>
    %377 = vector.shape_cast %376 : vector<8xf32> to vector<8x1xf32>
    %378 = tpu.reciprocal %377 {approx = true} : vector<8x1xf32> -> vector<8x1xf32>
    %379 = vector.broadcast %378 : vector<8x1xf32> to vector<8x16xf32>
    %380 = arith.mulf %375, %379 : vector<8x16xf32>
    %cst_108 = arith.constant dense<0.000000e+00> : vector<8x8xf32>
    %381 = tpu.matmul %380, %348, %cst_108 {dimension_numbers = #tpu.dot_dimension_numbers<[1], [0], [0], [1], [0, 0, 1, 1], [], []>} : vector<8x16xf32>, vector<16x8xf32>, vector<8x8xf32> -> vector<8x8xf32>
    %382 = tpu.concatenate %273, %309, %345, %381 in 1 : vector<8x8xf32>, vector<8x8xf32>, vector<8x8xf32>, vector<8x8xf32> -> vector<8x32xf32>
    %c0_109 = arith.constant 0 : index
    %c0_110 = arith.constant 0 : index
    %383 = vector.load %arg6[%c0_109, %c0_110] : memref<32x32xf32, #tpu.memory_space<vmem>>, vector<32x32xf32>
    %cst_111 = arith.constant dense<0.000000e+00> : vector<8x32xf32>
    %384 = tpu.matmul %382, %383, %cst_111 {dimension_numbers = #tpu.dot_dimension_numbers<[1], [0], [0], [1], [0, 0, 1, 1], [], []>} : vector<8x32xf32>, vector<32x32xf32>, vector<8x32xf32> -> vector<8x32xf32>
    %385 = arith.addf %229, %384 : vector<8x32xf32>
    %c0_112 = arith.constant 0 : index
    %c0_113 = arith.constant 0 : index
    %386 = vector.load %arg9[%c0_112, %c0_113] : memref<1x32xf32, #tpu.memory_space<vmem>>, vector<1x32xf32>
    %c0_114 = arith.constant 0 : index
    %c0_115 = arith.constant 0 : index
    %387 = vector.load %arg10[%c0_114, %c0_115] : memref<1x32xf32, #tpu.memory_space<vmem>>, vector<1x32xf32>
    %cst_116 = arith.constant dense<0.000000e+00> : vector<8xf32>
    %388 = vector.multi_reduction <add>, %385, %cst_116 [1] : vector<8x32xf32> to vector<8xf32>
    %389 = vector.shape_cast %388 : vector<8xf32> to vector<8x1xf32>
    %cst_117 = arith.constant 3.200000e+01 : f32
    %390 = vector.broadcast %cst_117 : f32 to vector<8x1xf32>
    %391 = arith.divf %389, %390 : vector<8x1xf32>
    %392 = vector.broadcast %391 : vector<8x1xf32> to vector<8x32xf32>
    %393 = arith.subf %385, %392 : vector<8x32xf32>
    %394 = arith.mulf %393, %393 : vector<8x32xf32>
    %cst_118 = arith.constant dense<0.000000e+00> : vector<8xf32>
    %395 = vector.multi_reduction <add>, %394, %cst_118 [1] : vector<8x32xf32> to vector<8xf32>
    %396 = vector.shape_cast %395 : vector<8xf32> to vector<8x1xf32>
    %cst_119 = arith.constant 3.200000e+01 : f32
    %397 = vector.broadcast %cst_119 : f32 to vector<8x1xf32>
    %398 = arith.divf %396, %397 : vector<8x1xf32>
    %399 = vector.broadcast %391 : vector<8x1xf32> to vector<8x32xf32>
    %400 = arith.subf %385, %399 : vector<8x32xf32>
    %cst_120 = arith.constant 9.99999974E-6 : f32
    %401 = vector.broadcast %cst_120 : f32 to vector<8x1xf32>
    %402 = arith.addf %398, %401 : vector<8x1xf32>
    %403 = math.rsqrt %402 : vector<8x1xf32>
    %404 = vector.broadcast %403 : vector<8x1xf32> to vector<8x32xf32>
    %405 = arith.mulf %400, %404 : vector<8x32xf32>
    %406 = vector.broadcast %386 : vector<1x32xf32> to vector<8x32xf32>
    %407 = arith.mulf %405, %406 : vector<8x32xf32>
    %408 = vector.broadcast %387 : vector<1x32xf32> to vector<8x32xf32>
    %409 = arith.addf %407, %408 : vector<8x32xf32>
    %c0_121 = arith.constant 0 : index
    %c0_122 = arith.constant 0 : index
    %410 = vector.load %arg11[%c0_121, %c0_122] : memref<32x64xf32, #tpu.memory_space<vmem>>, vector<32x64xf32>
    %cst_123 = arith.constant dense<0.000000e+00> : vector<8x64xf32>
    %411 = tpu.matmul %409, %410, %cst_123 {dimension_numbers = #tpu.dot_dimension_numbers<[1], [0], [0], [1], [0, 0, 1, 1], [], []>} : vector<8x32xf32>, vector<32x64xf32>, vector<8x64xf32> -> vector<8x64xf32>
    %c0_124 = arith.constant 0 : index
    %c0_125 = arith.constant 0 : index
    %412 = vector.load %arg12[%c0_124, %c0_125] : memref<1x64xf32, #tpu.memory_space<vmem>>, vector<1x64xf32>
    %413 = vector.broadcast %412 : vector<1x64xf32> to vector<8x64xf32>
    %414 = arith.addf %411, %413 : vector<8x64xf32>
    %cst_126 = arith.constant 0.000000e+00 : f32
    %415 = vector.broadcast %cst_126 : f32 to vector<8x64xf32>
    %416 = arith.maximumf %414, %415 : vector<8x64xf32>
    %c0_127 = arith.constant 0 : index
    %c0_128 = arith.constant 0 : index
    %417 = vector.load %arg13[%c0_127, %c0_128] : memref<64x32xf32, #tpu.memory_space<vmem>>, vector<64x32xf32>
    %cst_129 = arith.constant dense<0.000000e+00> : vector<8x32xf32>
    %418 = tpu.matmul %416, %417, %cst_129 {dimension_numbers = #tpu.dot_dimension_numbers<[1], [0], [0], [1], [0, 0, 1, 1], [], []>} : vector<8x64xf32>, vector<64x32xf32>, vector<8x32xf32> -> vector<8x32xf32>
    %c0_130 = arith.constant 0 : index
    %c0_131 = arith.constant 0 : index
    %419 = vector.load %arg14[%c0_130, %c0_131] : memref<1x32xf32, #tpu.memory_space<vmem>>, vector<1x32xf32>
    %420 = vector.broadcast %419 : vector<1x32xf32> to vector<8x32xf32>
    %421 = arith.addf %418, %420 : vector<8x32xf32>
    %422 = arith.addf %409, %421 : vector<8x32xf32>
    %c0_132 = arith.constant 0 : index
    %c0_133 = arith.constant 0 : index
    %423 = vector.load %arg15[%c0_132, %c0_133] : memref<1x32xf32, #tpu.memory_space<vmem>>, vector<1x32xf32>
    %c0_134 = arith.constant 0 : index
    %c0_135 = arith.constant 0 : index
    %424 = vector.load %arg16[%c0_134, %c0_135] : memref<1x32xf32, #tpu.memory_space<vmem>>, vector<1x32xf32>
    %cst_136 = arith.constant dense<0.000000e+00> : vector<8xf32>
    %425 = vector.multi_reduction <add>, %422, %cst_136 [1] : vector<8x32xf32> to vector<8xf32>
    %426 = vector.shape_cast %425 : vector<8xf32> to vector<8x1xf32>
    %cst_137 = arith.constant 3.200000e+01 : f32
    %427 = vector.broadcast %cst_137 : f32 to vector<8x1xf32>
    %428 = arith.divf %426, %427 : vector<8x1xf32>
    %429 = vector.broadcast %428 : vector<8x1xf32> to vector<8x32xf32>
    %430 = arith.subf %422, %429 : vector<8x32xf32>
    %431 = arith.mulf %430, %430 : vector<8x32xf32>
    %cst_138 = arith.constant dense<0.000000e+00> : vector<8xf32>
    %432 = vector.multi_reduction <add>, %431, %cst_138 [1] : vector<8x32xf32> to vector<8xf32>
    %433 = vector.shape_cast %432 : vector<8xf32> to vector<8x1xf32>
    %cst_139 = arith.constant 3.200000e+01 : f32
    %434 = vector.broadcast %cst_139 : f32 to vector<8x1xf32>
    %435 = arith.divf %433, %434 : vector<8x1xf32>
    %436 = vector.broadcast %428 : vector<8x1xf32> to vector<8x32xf32>
    %437 = arith.subf %422, %436 : vector<8x32xf32>
    %cst_140 = arith.constant 9.99999974E-6 : f32
    %438 = vector.broadcast %cst_140 : f32 to vector<8x1xf32>
    %439 = arith.addf %435, %438 : vector<8x1xf32>
    %440 = math.rsqrt %439 : vector<8x1xf32>
    %441 = vector.broadcast %440 : vector<8x1xf32> to vector<8x32xf32>
    %442 = arith.mulf %437, %441 : vector<8x32xf32>
    %443 = vector.broadcast %423 : vector<1x32xf32> to vector<8x32xf32>
    %444 = arith.mulf %442, %443 : vector<8x32xf32>
    %445 = vector.broadcast %424 : vector<1x32xf32> to vector<8x32xf32>
    %446 = arith.addf %444, %445 : vector<8x32xf32>
    %c1_141 = arith.constant 1 : index
    %c0_142 = arith.constant 0 : index
    %c0_143 = arith.constant 0 : index
    %447 = vector.load %arg17[%c1_141, %c0_142, %c0_143] : memref<2x8x32xf32, #tpu.memory_space<vmem>>, vector<1x8x32xf32>
    %448 = vector.shape_cast %447 : vector<1x8x32xf32> to vector<8x32xf32>
    %449 = vector.shape_cast %446 : vector<8x32xf32> to vector<1x8x32xf32>
    tpu.vector_store %arg17[%c1_141, %c0_142, %c0_143], %449 {strides = array<i32>} : memref<2x8x32xf32, #tpu.memory_space<vmem>>, vector<1x8x32xf32>,
    return
  }
}

</mosaic_0001>

<llo_original>
// kernel: erc_transfo_xl_forward.5
$region0: #{erc_transfo_xl_forward.5}
  #allocation0 [shape = 'u32[]', space=smem, size = 0x4, offset = 0x4, fixed_abs, tag = 'smem constant byte address 0x4 - core index']
  #allocation1 [shape = 'u32[144,128]{1,0:T(1,128)}', space=vmem, size = 0x12000, scoped, tag = 'internal scratch']
  %s0 = inlined_call_operand.vmem [shape: f32[16,32], index: 0, kind: input, shape index: {}]
  %s1 = inlined_call_operand.vmem [shape: f32[16,1], index: 1, kind: input, shape index: {}]
  %s2 = inlined_call_operand.vmem [shape: f32[32,32], index: 2, kind: input, shape index: {}]
  %s3 = inlined_call_operand.vmem [shape: f32[1,32], index: 3, kind: input, shape index: {}]
  %s4 = inlined_call_operand.vmem [shape: f32[32,32], index: 4, kind: input, shape index: {}]
  %s5 = inlined_call_operand.vmem [shape: f32[1,32], index: 5, kind: input, shape index: {}]
  %s6 = inlined_call_operand.vmem [shape: f32[32,32], index: 6, kind: input, shape index: {}]
  %s7 = inlined_call_operand.vmem [shape: f32[1,32], index: 7, kind: input, shape index: {}]
  %s8 = inlined_call_operand.vmem [shape: f32[32,6], index: 8, kind: input, shape index: {}]
  %s9 = inlined_call_operand.vmem [shape: f32[1,6], index: 9, kind: input, shape index: {}]
  %s10 = inlined_call_operand.hbm [shape: f32[2,6], index: 10, kind: output, shape index: {}]
  %s11 = sld [smem:[#allocation0]]
  $region50: #{erc_transfo_xl_forward.5} parent=0
    _
  %s13 = ssub.s32 1, %s11
  %s14 = scalar_select 0, %s13, %s11
  $region1: #{erc_transfo_xl_forward.5} parent=0
    #allocation2 [shape = 'u8[1024]{0}', space=vmem, size = 0x400, scoped, tag = 'output window, operand 0, single buffered']
    #allocation3 [shape = 's32[1]{0}', space=sflag, size = 0x4, scoped, tag = 'scoped memory for erc_transfo_xl_forward.5']
    %15 = vsyncpa [#allocation3], 0
    // Predicated region
    $region2: #{erc_transfo_xl_forward.5} parent=1 // pred_check
      _
    $region3: #{erc_transfo_xl_forward.5} parent=1 // pred_check_branch
      %17 = sbr.rel (0) target = $region5
    $region4: #{erc_transfo_xl_forward.5} parent=1 // pred_region
      _
    $region5: #{erc_transfo_xl_forward.5} parent=1 // pred_fallthru
      _
    // Predicated region
    $region6: #{erc_transfo_xl_forward.5} parent=1 // pred_check
      _
    $region7: #{erc_transfo_xl_forward.5} parent=1 // pred_check_branch
      %19 = sbr.rel (0) target = $region9
    $region8: #{erc_transfo_xl_forward.5} parent=1 // pred_region
      _
    $region9: #{erc_transfo_xl_forward.5} parent=1 // pred_fallthru
      _
    // Predicated region
    $region10: #{erc_transfo_xl_forward.5} parent=1 // pred_check
      _
    $region11: #{erc_transfo_xl_forward.5} parent=1 // pred_check_branch
      %21 = sbr.rel (0) target = $region13
    $region12: #{erc_transfo_xl_forward.5} parent=1 // pred_region
      _
    $region13: #{erc_transfo_xl_forward.5} parent=1 // pred_fallthru
      _
    // Predicated region
    $region14: #{erc_transfo_xl_forward.5} parent=1 // pred_check
      _
    $region15: #{erc_transfo_xl_forward.5} parent=1 // pred_check_branch
      %23 = sbr.rel (0) target = $region17
    $region16: #{erc_transfo_xl_forward.5} parent=1 // pred_region
      _
    $region17: #{erc_transfo_xl_forward.5} parent=1 // pred_fallthru
      _
    // Predicated region
    $region18: #{erc_transfo_xl_forward.5} parent=1 // pred_check
      _
    $region19: #{erc_transfo_xl_forward.5} parent=1 // pred_check_branch
      %25 = sbr.rel (0) target = $region21
    $region20: #{erc_transfo_xl_forward.5} parent=1 // pred_region
      _
    $region21: #{erc_transfo_xl_forward.5} parent=1 // pred_fallthru
      _
    // Predicated region
    $region22: #{erc_transfo_xl_forward.5} parent=1 // pred_check
      _
    $region23: #{erc_transfo_xl_forward.5} parent=1 // pred_check_branch
      %27 = sbr.rel (0) target = $region25
    $region24: #{erc_transfo_xl_forward.5} parent=1 // pred_region
      _
    $region25: #{erc_transfo_xl_forward.5} parent=1 // pred_fallthru
      _
    // Predicated region
    $region26: #{erc_transfo_xl_forward.5} parent=1 // pred_check
      _
    $region27: #{erc_transfo_xl_forward.5} parent=1 // pred_check_branch
      %29 = sbr.rel (0) target = $region29
    $region28: #{erc_transfo_xl_forward.5} parent=1 // pred_region
      _
    $region29: #{erc_transfo_xl_forward.5} parent=1 // pred_fallthru
      _
    // Predicated region
    $region30: #{erc_transfo_xl_forward.5} parent=1 // pred_check
      _
    $region31: #{erc_transfo_xl_forward.5} parent=1 // pred_check_branch
      %31 = sbr.rel (0) target = $region33
    $region32: #{erc_transfo_xl_forward.5} parent=1 // pred_region
      _
    $region33: #{erc_transfo_xl_forward.5} parent=1 // pred_fallthru
      _
    // Predicated region
    $region34: #{erc_transfo_xl_forward.5} parent=1 // pred_check
      _
    $region35: #{erc_transfo_xl_forward.5} parent=1 // pred_check_branch
      %33 = sbr.rel (0) target = $region37
    $region36: #{erc_transfo_xl_forward.5} parent=1 // pred_region
      _
    $region37: #{erc_transfo_xl_forward.5} parent=1 // pred_fallthru
      _
    // Predicated region
    $region38: #{erc_transfo_xl_forward.5} parent=1 // pred_check
      _
    $region39: #{erc_transfo_xl_forward.5} parent=1 // pred_check_branch
      %35 = sbr.rel (0) target = $region41
    $region40: #{erc_transfo_xl_forward.5} parent=1 // pred_region
      _
    $region41: #{erc_transfo_xl_forward.5} parent=1 // pred_fallthru
      _
    %v36 = vld [vmem:[%s0] sm:$0xff]
    %v37 = vld [vmem:[%s0 + $0x8] sm:$0xff]
    %v38 = vld [vmem:[%s2] sm:$0xff]
    %v39 = vld [vmem:[%s2 + $0x8] sm:$0xff]
    %v40 = vld [vmem:[%s2 + $0x10] sm:$0xff]
    %v41 = vld [vmem:[%s2 + $0x18] sm:$0xff]
    %v42 = vld [vmem:[%s3] sm:$0x1]
    %v44 = vlaneseq
    %v45 = vshrl.u32 %v44, 7
    %v46 = vsub.s32 0, %v45
    %v47 = vrot.slane %v42, %v46
    %vm49 = vcmask 261120
    %v51 = vsel %vm49, %v36, 0
    %v54 = vsel %vm49, %v37, 0
    %56 = vmatprep.subr.mxu0 0.0
    %57 = vmatpush1.msra.mxu0 %v38
    %58 = vmatprep.subr.mxu0 0.0
    %59 = vmatpush1.msra.mxu0 %v39
    %60 = vmatprep.subr.mxu0 0.0
    %61 = vmatpush1.msra.mxu0 %v40
    %62 = vmatprep.subr.mxu0 0.0
    %63 = vmatpush1.msra.mxu0 %v41
    %64 = vmatprep.subr.mxu0 0.0
    %65 = vmatpush1.msra.mxu0 0.0
    %66 = vmatprep.subr.mxu0 0.0
    %67 = vmatpush1.msra.mxu0 0.0
    %68 = vmatprep.subr.mxu0 0.0
    %69 = vmatpush1.msra.mxu0 0.0
    %70 = vmatprep.subr.mxu0 0.0
    %71 = vmatpush1.msra.mxu0 0.0
    %72 = vmatprep.subr.mxu0 0.0
    %73 = vmatpush1.msra.mxu0 0.0
    %74 = vmatprep.subr.mxu0 0.0
    %75 = vmatpush1.msra.mxu0 0.0
    %76 = vmatprep.subr.mxu0 0.0
    %77 = vmatpush1.msra.mxu0 0.0
    %78 = vmatprep.subr.mxu0 0.0
    %79 = vmatpush1.msra.mxu0 0.0
    %80 = vmatprep.subr.mxu0 0.0
    %81 = vmatpush1.msra.mxu0 0.0
    %82 = vmatprep.subr.mxu0 0.0
    %83 = vmatpush1.msra.mxu0 0.0
    %84 = vmatprep.subr.mxu0 0.0
    %85 = vmatpush1.msra.mxu0 0.0
    %86 = vmatprep.subr.mxu0 0.0
    %87 = vmatpush1.msra.mxu0 0.0
    %88 = vmatprep.subr.mxu0 0.0
    %89 = vmatpush1.msra.mxu0 0.0
    %90 = vmatprep.subr.mxu0 0.0
    %91 = vmatpush1.msra.mxu0 0.0
    %92 = vmatprep.subr.mxu0 0.0
    %93 = vmatpush1.msra.mxu0 0.0
    %94 = vmatprep.subr.mxu0 0.0
    %95 = vmatpush1.msra.mxu0 0.0
    %96 = vmatprep.subr.mxu0 0.0
    %97 = vmatpush1.msra.mxu0 0.0
    %98 = vmatprep.subr.mxu0 0.0
    %99 = vmatpush1.msra.mxu0 0.0
    %100 = vmatprep.subr.mxu0 0.0
    %101 = vmatpush1.msra.mxu0 0.0
    %102 = vmatprep.subr.mxu0 0.0
    %103 = vmatpush1.msra.mxu0 0.0
    %104 = vmatprep.subr.mxu0 0.0
    %105 = vmatpush1.msra.mxu0 0.0
    %106 = vmatprep.subr.mxu0 0.0
    %107 = vmatpush1.msra.mxu0 0.0
    %108 = vmatprep.subr.mxu0 0.0
    %109 = vmatpush1.msra.mxu0 0.0
    %110 = vmatprep.subr.mxu0 0.0
    %111 = vmatpush1.msra.mxu0 0.0
    %112 = vmatprep.subr.mxu0 0.0
    %113 = vmatpush1.msra.mxu0 0.0
    %114 = vmatprep.subr.mxu0 0.0
    %115 = vmatpush1.msra.mxu0 0.0
    %116 = vmatprep.subr.mxu0 0.0
    %117 = vmatpush1.msra.mxu0 0.0
    %118 = vmatprep.subr.mxu0 0.0
    %119 = vmatpush1.msra.mxu0 0.0
    %120 = vmatprep.mubr.f32.mxu0 0.0
    %121 = vmatmul.mubr.f32.gmra.mrb[0].mxu0 %v51
    %v122 = vpop.f32.mrb[0].mxu0
    %v123 = vadd.f32 %v47, %v122
    %v124 = vpop.f32.mrb[0].mxu0
    %125 = vmatprep.mubr.f32.mxu0 0.0
    %126 = vmatmul.mubr.f32.gmra.mrb[0].mxu0 %v54
    %v127 = vpop.f32.mrb[0].mxu0
    %v128 = vadd.f32 %v47, %v127
    %v129 = vpop.f32.mrb[0].mxu0
    %130 = vdwg.mxu0
    %v131 = vmax.f32 %v123, 0.0
    %v132 = vmax.f32 %v128, 0.0
    %v133 = vld [vmem:[%s1] sm:$0xff]
    %v134 = vld [vmem:[%s1 + $0x8] sm:$0xff]
    %136 = vset.pattern.permute.xlu0 0
    %137 = vperm.xlu0 %136, %v133
    %v138 = vpop.permute.xlu0 %137
    %141 = vset.pattern.permute.xlu0 0
    %142 = vperm.xlu0 %141, %v134
    %v143 = vpop.permute.xlu0 %142
    %v145 = vmul.f32 %v131, %v138
    %v146 = vmul.f32 %v132, %v143
    %v147 = vsel %vm49, %v145, -inf
    %v148 = vrot.slane %v147, 4
    %v149 = vmax.f32 %v147, %v148
    %v150 = vrot.slane %v149, 2
    %v151 = vmax.f32 %v149, %v150
    %v152 = vrot.slane %v151, 1
    %v153 = vmax.f32 %v151, %v152
    %v154 = vsel %vm49, %v146, -inf
    %v155 = vrot.slane %v154, 4
    %v156 = vmax.f32 %v154, %v155
    %v157 = vrot.slane %v156, 2
    %v158 = vmax.f32 %v156, %v157
    %v159 = vrot.slane %v158, 1
    %v160 = vmax.f32 %v158, %v159
    %vm161 = vcmask 1040384
    %v162 = vsel %vm161, %v153, %v160
    %v163 = vld [vmem:[%s4] sm:$0xff]
    %v164 = vld [vmem:[%s4 + $0x8] sm:$0xff]
    %v165 = vld [vmem:[%s4 + $0x10] sm:$0xff]
    %v166 = vld [vmem:[%s4 + $0x18] sm:$0xff]
    %v167 = vld [vmem:[%s5] sm:$0x1]
    %v169 = vlaneseq
    %v170 = vshrl.u32 %v169, 7
    %v171 = vsub.s32 0, %v170
    %v172 = vrot.slane %v167, %v171
    %v175 = vsel %vm49, %v162, 0
    %177 = vmatprep.subr.mxu0 0.0
    %178 = vmatpush1.msra.mxu0 %v163
    %179 = vmatprep.subr.mxu0 0.0
    %180 = vmatpush1.msra.mxu0 %v164
    %181 = vmatprep.subr.mxu0 0.0
    %182 = vmatpush1.msra.mxu0 %v165
    %183 = vmatprep.subr.mxu0 0.0
    %184 = vmatpush1.msra.mxu0 %v166
    %185 = vmatprep.subr.mxu0 0.0
    %186 = vmatpush1.msra.mxu0 0.0
    %187 = vmatprep.subr.mxu0 0.0
    %188 = vmatpush1.msra.mxu0 0.0
    %189 = vmatprep.subr.mxu0 0.0
    %190 = vmatpush1.msra.mxu0 0.0
    %191 = vmatprep.subr.mxu0 0.0
    %192 = vmatpush1.msra.mxu0 0.0
    %193 = vmatprep.subr.mxu0 0.0
    %194 = vmatpush1.msra.mxu0 0.0
    %195 = vmatprep.subr.mxu0 0.0
    %196 = vmatpush1.msra.mxu0 0.0
    %197 = vmatprep.subr.mxu0 0.0
    %198 = vmatpush1.msra.mxu0 0.0
    %199 = vmatprep.subr.mxu0 0.0
    %200 = vmatpush1.msra.mxu0 0.0
    %201 = vmatprep.subr.mxu0 0.0
    %202 = vmatpush1.msra.mxu0 0.0
    %203 = vmatprep.subr.mxu0 0.0
    %204 = vmatpush1.msra.mxu0 0.0
    %205 = vmatprep.subr.mxu0 0.0
    %206 = vmatpush1.msra.mxu0 0.0
    %207 = vmatprep.subr.mxu0 0.0
    %208 = vmatpush1.msra.mxu0 0.0
    %209 = vmatprep.subr.mxu0 0.0
    %210 = vmatpush1.msra.mxu0 0.0
    %211 = vmatprep.subr.mxu0 0.0
    %212 = vmatpush1.msra.mxu0 0.0
    %213 = vmatprep.subr.mxu0 0.0
    %214 = vmatpush1.msra.mxu0 0.0
    %215 = vmatprep.subr.mxu0 0.0
    %216 = vmatpush1.msra.mxu0 0.0
    %217 = vmatprep.subr.mxu0 0.0
    %218 = vmatpush1.msra.mxu0 0.0
    %219 = vmatprep.subr.mxu0 0.0
    %220 = vmatpush1.msra.mxu0 0.0
    %221 = vmatprep.subr.mxu0 0.0
    %222 = vmatpush1.msra.mxu0 0.0
    %223 = vmatprep.subr.mxu0 0.0
    %224 = vmatpush1.msra.mxu0 0.0
    %225 = vmatprep.subr.mxu0 0.0
    %226 = vmatpush1.msra.mxu0 0.0
    %227 = vmatprep.subr.mxu0 0.0
    %228 = vmatpush1.msra.mxu0 0.0
    %229 = vmatprep.subr.mxu0 0.0
    %230 = vmatpush1.msra.mxu0 0.0
    %231 = vmatprep.subr.mxu0 0.0
    %232 = vmatpush1.msra.mxu0 0.0
    %233 = vmatprep.subr.mxu0 0.0
    %234 = vmatpush1.msra.mxu0 0.0
    %235 = vmatprep.subr.mxu0 0.0
    %236 = vmatpush1.msra.mxu0 0.0
    %237 = vmatprep.subr.mxu0 0.0
    %238 = vmatpush1.msra.mxu0 0.0
    %239 = vmatprep.subr.mxu0 0.0
    %240 = vmatpush1.msra.mxu0 0.0
    %241 = vmatprep.mubr.f32.mxu0 0.0
    %242 = vmatmul.mubr.f32.gmra.mrb[0].mxu0 %v175
    %v243 = vpop.f32.mrb[0].mxu0
    %v244 = vadd.f32 %v172, %v243
    %v245 = vpop.f32.mrb[0].mxu0
    %246 = vdwg.mxu0
    %v247 = vmax.f32 %v244, 0.0
    %v248 = vld [vmem:[%s6] sm:$0xff]
    %v249 = vld [vmem:[%s6 + $0x8] sm:$0xff]
    %v250 = vld [vmem:[%s6 + $0x10] sm:$0xff]
    %v251 = vld [vmem:[%s6 + $0x18] sm:$0xff]
    %v252 = vld [vmem:[%s7] sm:$0x1]
    %v254 = vlaneseq
    %v255 = vshrl.u32 %v254, 7
    %v256 = vsub.s32 0, %v255
    %v257 = vrot.slane %v252, %v256
    %v260 = vsel %vm49, %v247, 0
    %262 = vmatprep.subr.mxu0 0.0
    %263 = vmatpush1.msra.mxu0 %v248
    %264 = vmatprep.subr.mxu0 0.0
    %265 = vmatpush1.msra.mxu0 %v249
    %266 = vmatprep.subr.mxu0 0.0
    %267 = vmatpush1.msra.mxu0 %v250
    %268 = vmatprep.subr.mxu0 0.0
    %269 = vmatpush1.msra.mxu0 %v251
    %270 = vmatprep.subr.mxu0 0.0
    %271 = vmatpush1.msra.mxu0 0.0
    %272 = vmatprep.subr.mxu0 0.0
    %273 = vmatpush1.msra.mxu0 0.0
    %274 = vmatprep.subr.mxu0 0.0
    %275 = vmatpush1.msra.mxu0 0.0
    %276 = vmatprep.subr.mxu0 0.0
    %277 = vmatpush1.msra.mxu0 0.0
    %278 = vmatprep.subr.mxu0 0.0
    %279 = vmatpush1.msra.mxu0 0.0
    %280 = vmatprep.subr.mxu0 0.0
    %281 = vmatpush1.msra.mxu0 0.0
    %282 = vmatprep.subr.mxu0 0.0
    %283 = vmatpush1.msra.mxu0 0.0
    %284 = vmatprep.subr.mxu0 0.0
    %285 = vmatpush1.msra.mxu0 0.0
    %286 = vmatprep.subr.mxu0 0.0
    %287 = vmatpush1.msra.mxu0 0.0
    %288 = vmatprep.subr.mxu0 0.0
    %289 = vmatpush1.msra.mxu0 0.0
    %290 = vmatprep.subr.mxu0 0.0
    %291 = vmatpush1.msra.mxu0 0.0
    %292 = vmatprep.subr.mxu0 0.0
    %293 = vmatpush1.msra.mxu0 0.0
    %294 = vmatprep.subr.mxu0 0.0
    %295 = vmatpush1.msra.mxu0 0.0
    %296 = vmatprep.subr.mxu0 0.0
    %297 = vmatpush1.msra.mxu0 0.0
    %298 = vmatprep.subr.mxu0 0.0
    %299 = vmatpush1.msra.mxu0 0.0
    %300 = vmatprep.subr.mxu0 0.0
    %301 = vmatpush1.msra.mxu0 0.0
    %302 = vmatprep.subr.mxu0 0.0
    %303 = vmatpush1.msra.mxu0 0.0
    %304 = vmatprep.subr.mxu0 0.0
    %305 = vmatpush1.msra.mxu0 0.0
    %306 = vmatprep.subr.mxu0 0.0
    %307 = vmatpush1.msra.mxu0 0.0
    %308 = vmatprep.subr.mxu0 0.0
    %309 = vmatpush1.msra.mxu0 0.0
    %310 = vmatprep.subr.mxu0 0.0
    %311 = vmatpush1.msra.mxu0 0.0
    %312 = vmatprep.subr.mxu0 0.0
    %313 = vmatpush1.msra.mxu0 0.0
    %314 = vmatprep.subr.mxu0 0.0
    %315 = vmatpush1.msra.mxu0 0.0
    %316 = vmatprep.subr.mxu0 0.0
    %317 = vmatpush1.msra.mxu0 0.0
    %318 = vmatprep.subr.mxu0 0.0
    %319 = vmatpush1.msra.mxu0 0.0
    %320 = vmatprep.subr.mxu0 0.0
    %321 = vmatpush1.msra.mxu0 0.0
    %322 = vmatprep.subr.mxu0 0.0
    %323 = vmatpush1.msra.mxu0 0.0
    %324 = vmatprep.subr.mxu0 0.0
    %325 = vmatpush1.msra.mxu0 0.0
    %326 = vmatprep.mubr.f32.mxu0 0.0
    %327 = vmatmul.mubr.f32.gmra.mrb[0].mxu0 %v260
    %v328 = vpop.f32.mrb[0].mxu0
    %v329 = vadd.f32 %v257, %v328
    %v330 = vpop.f32.mrb[0].mxu0
    %331 = vdwg.mxu0
    %v332 = vmax.f32 %v329, 0.0
    %v333 = vld [vmem:[%s8] sm:$0xff]
    %v334 = vld [vmem:[%s8 + $0x8] sm:$0xff]
    %v335 = vld [vmem:[%s8 + $0x10] sm:$0xff]
    %v336 = vld [vmem:[%s8 + $0x18] sm:$0xff]
    %v337 = vld [vmem:[%s9] sm:$0x1]
    %v339 = vlaneseq
    %v340 = vshrl.u32 %v339, 7
    %v341 = vsub.s32 0, %v340
    %v342 = vrot.slane %v337, %v341
    %v345 = vsel %vm49, %v332, 0
    %347 = vmatprep.subr.mxu0 0.0
    %348 = vmatpush1.msra.mxu0 %v333
    %349 = vmatprep.subr.mxu0 0.0
    %350 = vmatpush1.msra.mxu0 %v334
    %351 = vmatprep.subr.mxu0 0.0
    %352 = vmatpush1.msra.mxu0 %v335
    %353 = vmatprep.subr.mxu0 0.0
    %354 = vmatpush1.msra.mxu0 %v336
    %355 = vmatprep.subr.mxu0 0.0
    %356 = vmatpush1.msra.mxu0 0.0
    %357 = vmatprep.subr.mxu0 0.0
    %358 = vmatpush1.msra.mxu0 0.0
    %359 = vmatprep.subr.mxu0 0.0
    %360 = vmatpush1.msra.mxu0 0.0
    %361 = vmatprep.subr.mxu0 0.0
    %362 = vmatpush1.msra.mxu0 0.0
    %363 = vmatprep.subr.mxu0 0.0
    %364 = vmatpush1.msra.mxu0 0.0
    %365 = vmatprep.subr.mxu0 0.0
    %366 = vmatpush1.msra.mxu0 0.0
    %367 = vmatprep.subr.mxu0 0.0
    %368 = vmatpush1.msra.mxu0 0.0
    %369 = vmatprep.subr.mxu0 0.0
    %370 = vmatpush1.msra.mxu0 0.0
    %371 = vmatprep.subr.mxu0 0.0
    %372 = vmatpush1.msra.mxu0 0.0
    %373 = vmatprep.subr.mxu0 0.0
    %374 = vmatpush1.msra.mxu0 0.0
    %375 = vmatprep.subr.mxu0 0.0
    %376 = vmatpush1.msra.mxu0 0.0
    %377 = vmatprep.subr.mxu0 0.0
    %378 = vmatpush1.msra.mxu0 0.0
    %379 = vmatprep.subr.mxu0 0.0
    %380 = vmatpush1.msra.mxu0 0.0
    %381 = vmatprep.subr.mxu0 0.0
    %382 = vmatpush1.msra.mxu0 0.0
    %383 = vmatprep.subr.mxu0 0.0
    %384 = vmatpush1.msra.mxu0 0.0
    %385 = vmatprep.subr.mxu0 0.0
    %386 = vmatpush1.msra.mxu0 0.0
    %387 = vmatprep.subr.mxu0 0.0
    %388 = vmatpush1.msra.mxu0 0.0
    %389 = vmatprep.subr.mxu0 0.0
    %390 = vmatpush1.msra.mxu0 0.0
    %391 = vmatprep.subr.mxu0 0.0
    %392 = vmatpush1.msra.mxu0 0.0
    %393 = vmatprep.subr.mxu0 0.0
    %394 = vmatpush1.msra.mxu0 0.0
    %395 = vmatprep.subr.mxu0 0.0
    %396 = vmatpush1.msra.mxu0 0.0
    %397 = vmatprep.subr.mxu0 0.0
    %398 = vmatpush1.msra.mxu0 0.0
    %399 = vmatprep.subr.mxu0 0.0
    %400 = vmatpush1.msra.mxu0 0.0
    %401 = vmatprep.subr.mxu0 0.0
    %402 = vmatpush1.msra.mxu0 0.0
    %403 = vmatprep.subr.mxu0 0.0
    %404 = vmatpush1.msra.mxu0 0.0
    %405 = vmatprep.subr.mxu0 0.0
    %406 = vmatpush1.msra.mxu0 0.0
    %407 = vmatprep.subr.mxu0 0.0
    %408 = vmatpush1.msra.mxu0 0.0
    %409 = vmatprep.subr.mxu0 0.0
    %410 = vmatpush1.msra.mxu0 0.0
    %411 = vmatprep.mubr.f32.mxu0 0.0
    %412 = vmatmul.mubr.f32.gmra.mrb[0].mxu0 %v345
    %v413 = vpop.f32.mrb[0].mxu0
    %v414 = vadd.f32 %v342, %v413
    %v415 = vpop.f32.mrb[0].mxu0
    %416 = vdwg.mxu0
    %vm417 = vcmask 41984
    %418 = vst.msk [vmem:[#allocation2] sm:$0x3] %vm417, %v414
    // Predicated region
    $region42: #{erc_transfo_xl_forward.5} parent=1 // pred_check
      _
    $region43: #{erc_transfo_xl_forward.5} parent=1 // pred_check_branch
      %420 = sbr.rel (0) target = $region45
    $region44: #{erc_transfo_xl_forward.5} parent=1 // pred_region
      %s422 = ssub.s32 32, 32
      %423 = vsyncadd [#allocation3], %s422
      %s425 = sshll.u32 [#allocation2], 4
      %s426 = int_to_ptr.vmem [resolvable:$true] %s425
      %428 = dma.vmem_to_hbm [thread:$0]  %s426, 32, %s10, [#allocation3]
    $region45: #{erc_transfo_xl_forward.5} parent=1 // pred_fallthru
      _
    // Predicated region
    $region46: #{erc_transfo_xl_forward.5} parent=1 // pred_check
      _
    $region47: #{erc_transfo_xl_forward.5} parent=1 // pred_check_branch
      %430 = sbr.rel (0) target = $region49
    $region48: #{erc_transfo_xl_forward.5} parent=1 // pred_region
      %431 = dma.done [#allocation3], 32
    $region49: #{erc_transfo_xl_forward.5} parent=1 // pred_fallthru
      _
    %432 = vsyncpa [#allocation3], 1

// kernel: erc_transfo_xl_forward.3
$region0: #{erc_transfo_xl_forward.3}
  #allocation0 [shape = 'u32[]', space=smem, size = 0x4, offset = 0x4, fixed_abs, tag = 'smem constant byte address 0x4 - core index']
  #allocation1 [shape = 'u32[144,128]{1,0:T(1,128)}', space=vmem, size = 0x12000, scoped, tag = 'internal scratch']
  %s0 = inlined_call_operand.vmem [shape: f32[2,8,32], index: 0, kind: input, shape index: {}]
  %s1 = inlined_call_operand.vmem [shape: f32[2,8,32], index: 1, kind: input, shape index: {}]
  %s2 = inlined_call_operand.vmem [shape: f32[23,32], index: 2, kind: input, shape index: {}]
  %s3 = inlined_call_operand.vmem [shape: f32[8,16], index: 3, kind: input, shape index: {}]
  %s4 = inlined_call_operand.vmem [shape: f32[32,96], index: 4, kind: input, shape index: {}]
  %s5 = inlined_call_operand.vmem [shape: f32[32,32], index: 5, kind: input, shape index: {}]
  %s6 = inlined_call_operand.vmem [shape: f32[32,32], index: 6, kind: input, shape index: {}]
  %s7 = inlined_call_operand.vmem [shape: f32[4,8], index: 7, kind: input, shape index: {}]
  %s8 = inlined_call_operand.vmem [shape: f32[4,8], index: 8, kind: input, shape index: {}]
  %s9 = inlined_call_operand.vmem [shape: f32[1,32], index: 9, kind: input, shape index: {}]
  %s10 = inlined_call_operand.vmem [shape: f32[1,32], index: 10, kind: input, shape index: {}]
  %s11 = inlined_call_operand.vmem [shape: f32[32,64], index: 11, kind: input, shape index: {}]
  %s12 = inlined_call_operand.vmem [shape: f32[1,64], index: 12, kind: input, shape index: {}]
  %s13 = inlined_call_operand.vmem [shape: f32[64,32], index: 13, kind: input, shape index: {}]
  %s14 = inlined_call_operand.vmem [shape: f32[1,32], index: 14, kind: input, shape index: {}]
  %s15 = inlined_call_operand.vmem [shape: f32[1,32], index: 15, kind: input, shape index: {}]
  %s16 = inlined_call_operand.vmem [shape: f32[1,32], index: 16, kind: input, shape index: {}]
  %s17 = inlined_call_operand.vmem [shape: f32[2,8,32], index: 17, kind: output, shape index: {}]
  %s18 = sld [smem:[#allocation0]]
  $region78: #{erc_transfo_xl_forward.3} parent=0
    _
  %s20 = ssub.s32 1, %s18
  %s21 = scalar_select 0, %s20, %s18
  // Predicated region
  $region2: #{erc_transfo_xl_forward.3} parent=0 // pred_check
    _
  $region3: #{erc_transfo_xl_forward.3} parent=0 // pred_check_branch
    %23 = sbr.rel (0) target = $region5
  $region4: #{erc_transfo_xl_forward.3} parent=0 // pred_region
    _
  $region5: #{erc_transfo_xl_forward.3} parent=0 // pred_fallthru
    _
  // Predicated region
  $region6: #{erc_transfo_xl_forward.3} parent=0 // pred_check
    _
  $region7: #{erc_transfo_xl_forward.3} parent=0 // pred_check_branch
    %25 = sbr.rel (0) target = $region9
  $region8: #{erc_transfo_xl_forward.3} parent=0 // pred_region
    _
  $region9: #{erc_transfo_xl_forward.3} parent=0 // pred_fallthru
    _
  // Predicated region
  $region10: #{erc_transfo_xl_forward.3} parent=0 // pred_check
    _
  $region11: #{erc_transfo_xl_forward.3} parent=0 // pred_check_branch
    %27 = sbr.rel (0) target = $region13
  $region12: #{erc_transfo_xl_forward.3} parent=0 // pred_region
    _
  $region13: #{erc_transfo_xl_forward.3} parent=0 // pred_fallthru
    _
  // Predicated region
  $region14: #{erc_transfo_xl_forward.3} parent=0 // pred_check
    _
  $region15: #{erc_transfo_xl_forward.3} parent=0 // pred_check_branch
    %29 = sbr.rel (0) target = $region17
  $region16: #{erc_transfo_xl_forward.3} parent=0 // pred_region
    _
  $region17: #{erc_transfo_xl_forward.3} parent=0 // pred_fallthru
    _
  // Predicated region
  $region18: #{erc_transfo_xl_forward.3} parent=0 // pred_check
    _
  $region19: #{erc_transfo_xl_forward.3} parent=0 // pred_check_branch
    %31 = sbr.rel (0) target = $region21
  $region20: #{erc_transfo_xl_forward.3} parent=0 // pred_region
    _
  $region21: #{erc_transfo_xl_forward.3} parent=0 // pred_fallthru
    _
  // Predicated region
  $region22: #{erc_transfo_xl_forward.3} parent=0 // pred_check
    _
  $region23: #{erc_transfo_xl_forward.3} parent=0 // pred_check_branch
    %33 = sbr.rel (0) target = $region25
  $region24: #{erc_transfo_xl_forward.3} parent=0 // pred_region
    _
  $region25: #{erc_transfo_xl_forward.3} parent=0 // pred_fallthru
    _
  // Predicated region
  $region26: #{erc_transfo_xl_forward.3} parent=0 // pred_check
    _
  $region27: #{erc_transfo_xl_forward.3} parent=0 // pred_check_branch
    %35 = sbr.rel (0) target = $region29
  $region28: #{erc_transfo_xl_forward.3} parent=0 // pred_region
    _
  $region29: #{erc_transfo_xl_forward.3} parent=0 // pred_fallthru
    _
  // Predicated region
  $region30: #{erc_transfo_xl_forward.3} parent=0 // pred_check
    _
  $region31: #{erc_transfo_xl_forward.3} parent=0 // pred_check_branch
    %37 = sbr.rel (0) target = $region33
  $region32: #{erc_transfo_xl_forward.3} parent=0 // pred_region
    _
  $region33: #{erc_transfo_xl_forward.3} parent=0 // pred_fallthru
    _
  // Predicated region
  $region34: #{erc_transfo_xl_forward.3} parent=0 // pred_check
    _
  $region35: #{erc_transfo_xl_forward.3} parent=0 // pred_check_branch
    %39 = sbr.rel (0) target = $region37
  $region36: #{erc_transfo_xl_forward.3} parent=0 // pred_region
    _
  $region37: #{erc_transfo_xl_forward.3} parent=0 // pred_fallthru
    _
  // Predicated region
  $region38: #{erc_transfo_xl_forward.3} parent=0 // pred_check
    _
  $region39: #{erc_transfo_xl_forward.3} parent=0 // pred_check_branch
    %41 = sbr.rel (0) target = $region41
  $region40: #{erc_transfo_xl_forward.3} parent=0 // pred_region
    _
  $region41: #{erc_transfo_xl_forward.3} parent=0 // pred_fallthru
    _
  // Predicated region
  $region42: #{erc_transfo_xl_forward.3} parent=0 // pred_check
    _
  $region43: #{erc_transfo_xl_forward.3} parent=0 // pred_check_branch
    %43 = sbr.rel (0) target = $region45
  $region44: #{erc_transfo_xl_forward.3} parent=0 // pred_region
    _
  $region45: #{erc_transfo_xl_forward.3} parent=0 // pred_fallthru
    _
  // Predicated region
  $region46: #{erc_transfo_xl_forward.3} parent=0 // pred_check
    _
  $region47: #{erc_transfo_xl_forward.3} parent=0 // pred_check_branch
    %45 = sbr.rel (0) target = $region49
  $region48: #{erc_transfo_xl_forward.3} parent=0 // pred_region
    _
  $region49: #{erc_transfo_xl_forward.3} parent=0 // pred_fallthru
    _
  // Predicated region
  $region50: #{erc_transfo_xl_forward.3} parent=0 // pred_check
    _
  $region51: #{erc_transfo_xl_forward.3} parent=0 // pred_check_branch
    %47 = sbr.rel (0) target = $region53
  $region52: #{erc_transfo_xl_forward.3} parent=0 // pred_region
    _
  $region53: #{erc_transfo_xl_forward.3} parent=0 // pred_fallthru
    _
  // Predicated region
  $region54: #{erc_transfo_xl_forward.3} parent=0 // pred_check
    _
  $region55: #{erc_transfo_xl_forward.3} parent=0 // pred_check_branch
    %49 = sbr.rel (0) target = $region57
  $region56: #{erc_transfo_xl_forward.3} parent=0 // pred_region
    _
  $region57: #{erc_transfo_xl_forward.3} parent=0 // pred_fallthru
    _
  // Predicated region
  $region58: #{erc_transfo_xl_forward.3} parent=0 // pred_check
    _
  $region59: #{erc_transfo_xl_forward.3} parent=0 // pred_check_branch
    %51 = sbr.rel (0) target = $region61
  $region60: #{erc_transfo_xl_forward.3} parent=0 // pred_region
    _
  $region61: #{erc_transfo_xl_forward.3} parent=0 // pred_fallthru
    _
  // Predicated region
  $region62: #{erc_transfo_xl_forward.3} parent=0 // pred_check
    _
  $region63: #{erc_transfo_xl_forward.3} parent=0 // pred_check_branch
    %53 = sbr.rel (0) target = $region65
  $region64: #{erc_transfo_xl_forward.3} parent=0 // pred_region
    _
  $region65: #{erc_transfo_xl_forward.3} parent=0 // pred_fallthru
    _
  // Predicated region
  $region66: #{erc_transfo_xl_forward.3} parent=0 // pred_check
    _
  $region67: #{erc_transfo_xl_forward.3} parent=0 // pred_check_branch
    %55 = sbr.rel (0) target = $region69
  $region68: #{erc_transfo_xl_forward.3} parent=0 // pred_region
    _
  $region69: #{erc_transfo_xl_forward.3} parent=0 // pred_fallthru
    _
  %v56 = vld [vmem:[%s2] sm:$0xff]
  %v57 = vld [vmem:[%s2 + $0x8] sm:$0xff]
  %v58 = vld [vmem:[%s2 + $0x10] sm:$0x7f]
  %v59 = vld [vmem:[%s5] sm:$0xff]
  %v60 = vld [vmem:[%s5 + $0x8] sm:$0xff]
  %v61 = vld [vmem:[%s5 + $0x10] sm:$0xff]
  %v62 = vld [vmem:[%s5 + $0x18] sm:$0xff]
  %vm63 = vcmask 261120
  %v65 = vsel %vm63, %v56, 0
  %v68 = vsel %vm63, %v57, 0
  %v71 = vsel %vm63, %v58, 0
  %73 = vmatprep.subr.mxu0 0.0
  %74 = vmatpush1.msra.mxu0 %v59
  %75 = vmatprep.subr.mxu0 0.0
  %76 = vmatpush1.msra.mxu0 %v60
  %77 = vmatprep.subr.mxu0 0.0
  %78 = vmatpush1.msra.mxu0 %v61
  %79 = vmatprep.subr.mxu0 0.0
  %80 = vmatpush1.msra.mxu0 %v62
  %81 = vmatprep.subr.mxu0 0.0
  %82 = vmatpush1.msra.mxu0 0.0
  %83 = vmatprep.subr.mxu0 0.0
  %84 = vmatpush1.msra.mxu0 0.0
  %85 = vmatprep.subr.mxu0 0.0
  %86 = vmatpush1.msra.mxu0 0.0
  %87 = vmatprep.subr.mxu0 0.0
  %88 = vmatpush1.msra.mxu0 0.0
  %89 = vmatprep.subr.mxu0 0.0
  %90 = vmatpush1.msra.mxu0 0.0
  %91 = vmatprep.subr.mxu0 0.0
  %92 = vmatpush1.msra.mxu0 0.0
  %93 = vmatprep.subr.mxu0 0.0
  %94 = vmatpush1.msra.mxu0 0.0
  %95 = vmatprep.subr.mxu0 0.0
  %96 = vmatpush1.msra.mxu0 0.0
  %97 = vmatprep.subr.mxu0 0.0
  %98 = vmatpush1.msra.mxu0 0.0
  %99 = vmatprep.subr.mxu0 0.0
  %100 = vmatpush1.msra.mxu0 0.0
  %101 = vmatprep.subr.mxu0 0.0
  %102 = vmatpush1.msra.mxu0 0.0
  %103 = vmatprep.subr.mxu0 0.0
  %104 = vmatpush1.msra.mxu0 0.0
  %105 = vmatprep.subr.mxu0 0.0
  %106 = vmatpush1.msra.mxu0 0.0
  %107 = vmatprep.subr.mxu0 0.0
  %108 = vmatpush1.msra.mxu0 0.0
  %109 = vmatprep.subr.mxu0 0.0
  %110 = vmatpush1.msra.mxu0 0.0
  %111 = vmatprep.subr.mxu0 0.0
  %112 = vmatpush1.msra.mxu0 0.0
  %113 = vmatprep.subr.mxu0 0.0
  %114 = vmatpush1.msra.mxu0 0.0
  %115 = vmatprep.subr.mxu0 0.0
  %116 = vmatpush1.msra.mxu0 0.0
  %117 = vmatprep.subr.mxu0 0.0
  %118 = vmatpush1.msra.mxu0 0.0
  %119 = vmatprep.subr.mxu0 0.0
  %120 = vmatpush1.msra.mxu0 0.0
  %121 = vmatprep.subr.mxu0 0.0
  %122 = vmatpush1.msra.mxu0 0.0
  %123 = vmatprep.subr.mxu0 0.0
  %124 = vmatpush1.msra.mxu0 0.0
  %125 = vmatprep.subr.mxu0 0.0
  %126 = vmatpush1.msra.mxu0 0.0
  %127 = vmatprep.subr.mxu0 0.0
  %128 = vmatpush1.msra.mxu0 0.0
  %129 = vmatprep.subr.mxu0 0.0
  %130 = vmatpush1.msra.mxu0 0.0
  %131 = vmatprep.subr.mxu0 0.0
  %132 = vmatpush1.msra.mxu0 0.0
  %133 = vmatprep.subr.mxu0 0.0
  %134 = vmatpush1.msra.mxu0 0.0
  %135 = vmatprep.subr.mxu0 0.0
  %136 = vmatpush1.msra.mxu0 0.0
  %137 = vmatprep.mubr.f32.mxu0 0.0
  %138 = vmatmul.mubr.f32.gmra.mrb[0].mxu0 %v65
  %v139 = vpop.f32.mrb[0].mxu0
  %v140 = vadd.f32 0.0, %v139
  %v141 = vpop.f32.mrb[0].mxu0
  %142 = vmatprep.mubr.f32.mxu0 0.0
  %143 = vmatmul.mubr.f32.gmra.mrb[0].mxu0 %v68
  %v144 = vpop.f32.mrb[0].mxu0
  %v145 = vadd.f32 0.0, %v144
  %v146 = vpop.f32.mrb[0].mxu0
  %147 = vmatprep.mubr.f32.mxu0 0.0
  %148 = vmatmul.mubr.f32.gmra.mrb[0].mxu0 %v71
  %v149 = vpop.f32.mrb[0].mxu0
  %v150 = vadd.f32 0.0, %v149
  %v151 = vpop.f32.mrb[0].mxu0
  %152 = vdwg.mxu0
  %v153 = vld [vmem:[%s3] sm:$0xff]
  %v154 = vld [vmem:[%s7] sm:$0xf]
  %v155 = vld [vmem:[%s8] sm:$0xf]
  %v156 = vld [vmem:[%s0] sm:$0xff]
  %v157 = vld [vmem:[%s1] sm:$0xff]
  %v158 = vld [vmem:[%s4] sm:$0xff]
  %v159 = vld [vmem:[%s4 + $0x8] sm:$0xff]
  %v160 = vld [vmem:[%s4 + $0x10] sm:$0xff]
  %v161 = vld [vmem:[%s4 + $0x18] sm:$0xff]
  %v163 = vsel %vm63, %v157, 0
  %v166 = vsel %vm63, %v156, 0
  %168 = vmatprep.subr.mxu0 0.0
  %169 = vmatpush1.msra.mxu0 %v158
  %170 = vmatprep.subr.mxu0 0.0
  %171 = vmatpush1.msra.mxu0 %v159
  %172 = vmatprep.subr.mxu0 0.0
  %173 = vmatpush1.msra.mxu0 %v160
  %174 = vmatprep.subr.mxu0 0.0
  %175 = vmatpush1.msra.mxu0 %v161
  %176 = vmatprep.subr.mxu0 0.0
  %177 = vmatpush1.msra.mxu0 0.0
  %178 = vmatprep.subr.mxu0 0.0
  %179 = vmatpush1.msra.mxu0 0.0
  %180 = vmatprep.subr.mxu0 0.0
  %181 = vmatpush1.msra.mxu0 0.0
  %182 = vmatprep.subr.mxu0 0.0
  %183 = vmatpush1.msra.mxu0 0.0
  %184 = vmatprep.subr.mxu0 0.0
  %185 = vmatpush1.msra.mxu0 0.0
  %186 = vmatprep.subr.mxu0 0.0
  %187 = vmatpush1.msra.mxu0 0.0
  %188 = vmatprep.subr.mxu0 0.0
  %189 = vmatpush1.msra.mxu0 0.0
  %190 = vmatprep.subr.mxu0 0.0
  %191 = vmatpush1.msra.mxu0 0.0
  %192 = vmatprep.subr.mxu0 0.0
  %193 = vmatpush1.msra.mxu0 0.0
  %194 = vmatprep.subr.mxu0 0.0
  %195 = vmatpush1.msra.mxu0 0.0
  %196 = vmatprep.subr.mxu0 0.0
  %197 = vmatpush1.msra.mxu0 0.0
  %198 = vmatprep.subr.mxu0 0.0
  %199 = vmatpush1.msra.mxu0 0.0
  %200 = vmatprep.subr.mxu0 0.0
  %201 = vmatpush1.msra.mxu0 0.0
  %202 = vmatprep.subr.mxu0 0.0
  %203 = vmatpush1.msra.mxu0 0.0
  %204 = vmatprep.subr.mxu0 0.0
  %205 = vmatpush1.msra.mxu0 0.0
  %206 = vmatprep.subr.mxu0 0.0
  %207 = vmatpush1.msra.mxu0 0.0
  %208 = vmatprep.subr.mxu0 0.0
  %209 = vmatpush1.msra.mxu0 0.0
  %210 = vmatprep.subr.mxu0 0.0
  %211 = vmatpush1.msra.mxu0 0.0
  %212 = vmatprep.subr.mxu0 0.0
  %213 = vmatpush1.msra.mxu0 0.0
  %214 = vmatprep.subr.mxu0 0.0
  %215 = vmatpush1.msra.mxu0 0.0
  %216 = vmatprep.subr.mxu0 0.0
  %217 = vmatpush1.msra.mxu0 0.0
  %218 = vmatprep.subr.mxu0 0.0
  %219 = vmatpush1.msra.mxu0 0.0
  %220 = vmatprep.subr.mxu0 0.0
  %221 = vmatpush1.msra.mxu0 0.0
  %222 = vmatprep.subr.mxu0 0.0
  %223 = vmatpush1.msra.mxu0 0.0
  %224 = vmatprep.subr.mxu0 0.0
  %225 = vmatpush1.msra.mxu0 0.0
  %226 = vmatprep.subr.mxu0 0.0
  %227 = vmatpush1.msra.mxu0 0.0
  %228 = vmatprep.subr.mxu0 0.0
  %229 = vmatpush1.msra.mxu0 0.0
  %230 = vmatprep.subr.mxu0 0.0
  %231 = vmatpush1.msra.mxu0 0.0
  %232 = vmatprep.mubr.f32.mxu0 0.0
  %233 = vmatmul.mubr.f32.gmra.mrb[0].mxu0 %v163
  %v234 = vpop.f32.mrb[0].mxu0
  %v235 = vadd.f32 0.0, %v234
  %v236 = vpop.f32.mrb[0].mxu0
  %237 = vmatprep.mubr.f32.mxu0 0.0
  %238 = vmatmul.mubr.f32.gmra.mrb[0].mxu0 %v166
  %v239 = vpop.f32.mrb[0].mxu0
  %v240 = vadd.f32 0.0, %v239
  %v241 = vpop.f32.mrb[0].mxu0
  %242 = vdwg.mxu0
  %v243 = vlaneseq
  %v244 = vshrl.u32 %v243, 7
  %v245 = vsub.s32 0, %v244
  %v246 = vrot.slane %v154, %v245
  %v247 = vadd.f32 %v240, %v246
  %v248 = vlaneseq
  %v249 = vshrl.u32 %v248, 7
  %v250 = vsub.s32 0, %v249
  %v251 = vrot.slane %v155, %v250
  %v252 = vadd.f32 %v240, %v251
  %vm253 = vcmask 64512
  %v255 = vsel %vm253, %v252, 0
  %v258 = vsel %vm253, %v140, 0
  %v261 = vsel %vm253, %v145, 0
  %v264 = vsel %vm253, %v150, 0
  %266 = vmatprep.subr.mxu0 0.0
  %267 = vmatpush1.xpose.msra.mxu0 %v258
  %268 = vmatprep.subr.mxu0 0.0
  %269 = vmatpush1.xpose.msra.mxu0 %v261
  %270 = vmatprep.subr.mxu0 0.0
  %271 = vmatpush1.xpose.msra.mxu0 %v264
  %272 = vmatprep.subr.mxu0 0.0
  %273 = vmatpush1.xpose.msra.mxu0 0.0
  %274 = vmatprep.subr.mxu0 0.0
  %275 = vmatpush1.xpose.msra.mxu0 0.0
  %276 = vmatprep.subr.mxu0 0.0
  %277 = vmatpush1.xpose.msra.mxu0 0.0
  %278 = vmatprep.subr.mxu0 0.0
  %279 = vmatpush1.xpose.msra.mxu0 0.0
  %280 = vmatprep.subr.mxu0 0.0
  %281 = vmatpush1.xpose.msra.mxu0 0.0
  %282 = vmatprep.subr.mxu0 0.0
  %283 = vmatpush1.xpose.msra.mxu0 0.0
  %284 = vmatprep.subr.mxu0 0.0
  %285 = vmatpush1.xpose.msra.mxu0 0.0
  %286 = vmatprep.subr.mxu0 0.0
  %287 = vmatpush1.xpose.msra.mxu0 0.0
  %288 = vmatprep.subr.mxu0 0.0
  %289 = vmatpush1.xpose.msra.mxu0 0.0
  %290 = vmatprep.subr.mxu0 0.0
  %291 = vmatpush1.xpose.msra.mxu0 0.0
  %292 = vmatprep.subr.mxu0 0.0
  %293 = vmatpush1.xpose.msra.mxu0 0.0
  %294 = vmatprep.subr.mxu0 0.0
  %295 = vmatpush1.xpose.msra.mxu0 0.0
  %296 = vmatprep.subr.mxu0 0.0
  %297 = vmatpush1.xpose.msra.mxu0 0.0
  %298 = vmatprep.subr.mxu0 0.0
  %299 = vmatpush1.xpose.msra.mxu0 0.0
  %300 = vmatprep.subr.mxu0 0.0
  %301 = vmatpush1.xpose.msra.mxu0 0.0
  %302 = vmatprep.subr.mxu0 0.0
  %303 = vmatpush1.xpose.msra.mxu0 0.0
  %304 = vmatprep.subr.mxu0 0.0
  %305 = vmatpush1.xpose.msra.mxu0 0.0
  %306 = vmatprep.subr.mxu0 0.0
  %307 = vmatpush1.xpose.msra.mxu0 0.0
  %308 = vmatprep.subr.mxu0 0.0
  %309 = vmatpush1.xpose.msra.mxu0 0.0
  %310 = vmatprep.subr.mxu0 0.0
  %311 = vmatpush1.xpose.msra.mxu0 0.0
  %312 = vmatprep.subr.mxu0 0.0
  %313 = vmatpush1.xpose.msra.mxu0 0.0
  %314 = vmatprep.subr.mxu0 0.0
  %315 = vmatpush1.xpose.msra.mxu0 0.0
  %316 = vmatprep.subr.mxu0 0.0
  %317 = vmatpush1.xpose.msra.mxu0 0.0
  %318 = vmatprep.subr.mxu0 0.0
  %319 = vmatpush1.xpose.msra.mxu0 0.0
  %320 = vmatprep.subr.mxu0 0.0
  %321 = vmatpush1.xpose.msra.mxu0 0.0
  %322 = vmatprep.subr.mxu0 0.0
  %323 = vmatpush1.xpose.msra.mxu0 0.0
  %324 = vmatprep.subr.mxu0 0.0
  %325 = vmatpush1.xpose.msra.mxu0 0.0
  %326 = vmatprep.subr.mxu0 0.0
  %327 = vmatpush1.xpose.msra.mxu0 0.0
  %328 = vmatprep.subr.mxu0 0.0
  %329 = vmatpush1.xpose.msra.mxu0 0.0
  %330 = vmatprep.mubr.f32.mxu0 0.0
  %331 = vmatmul.mubr.f32.gmra.mrb[0].mxu0 %v255
  %v332 = vpop.f32.mrb[0].mxu0
  %v333 = vadd.f32 0.0, %v332
  %v334 = vpop.f32.mrb[0].mxu0
  %335 = vdwg.mxu0
  %337 = vrot.lane.b32.xlu0 %v333, 1
  %v338 = vpop.permute.xlu0 %337
  %340 = vrot.lane.b32.xlu0 %v333, 2
  %v341 = vpop.permute.xlu0 %340
  %343 = vrot.lane.b32.xlu0 %v333, 3
  %v344 = vpop.permute.xlu0 %343
  %346 = vrot.lane.b32.xlu0 %v333, 4
  %v347 = vpop.permute.xlu0 %346
  %349 = vrot.lane.b32.xlu0 %v333, 5
  %v350 = vpop.permute.xlu0 %349
  %352 = vrot.lane.b32.xlu0 %v333, 6
  %v353 = vpop.permute.xlu0 %352
  %355 = vrot.lane.b32.xlu0 %v333, 7
  %v356 = vpop.permute.xlu0 %355
  %vm358 = vcmask 1040384
  %v359 = vsel %vm358, %v333, %v338
  %vm360 = vcmask 1041408
  %v361 = vsel %vm360, %v359, %v341
  %vm362 = vcmask 1042432
  %v363 = vsel %vm362, %v361, %v344
  %vm364 = vcmask 1043456
  %v365 = vsel %vm364, %v363, %v347
  %vm366 = vcmask 1044480
  %v367 = vsel %vm366, %v365, %v350
  %vm368 = vcmask 1045504
  %v369 = vsel %vm368, %v367, %v353
  %vm370 = vcmask 1046528
  %v371 = vsel %vm370, %v369, %v356
  %374 = vrot.lane.b32.xlu0 %v235, 96
  %v375 = vpop.permute.xlu0 %374
  %376 = vrot.lane.b32.xlu0 %v240, 96
  %v377 = vpop.permute.xlu0 %376
  %379 = vrot.lane.b32.xlu0 %v371, 121
  %v380 = vpop.permute.xlu0 %379
  %v383 = vsel %vm253, %v247, 0
  %v385 = vsel %vm253, %v375, 0
  %v387 = vsel %vm253, %v377, 0
  %389 = vmatprep.subr.mxu0 0.0
  %390 = vmatpush1.xpose.msra.mxu0 %v385
  %391 = vmatprep.subr.mxu0 0.0
  %392 = vmatpush1.xpose.msra.mxu0 %v387
  %393 = vmatprep.subr.mxu0 0.0
  %394 = vmatpush1.xpose.msra.mxu0 0.0
  %395 = vmatprep.subr.mxu0 0.0
  %396 = vmatpush1.xpose.msra.mxu0 0.0
  %397 = vmatprep.subr.mxu0 0.0
  %398 = vmatpush1.xpose.msra.mxu0 0.0
  %399 = vmatprep.subr.mxu0 0.0
  %400 = vmatpush1.xpose.msra.mxu0 0.0
  %401 = vmatprep.subr.mxu0 0.0
  %402 = vmatpush1.xpose.msra.mxu0 0.0
  %403 = vmatprep.subr.mxu0 0.0
  %404 = vmatpush1.xpose.msra.mxu0 0.0
  %405 = vmatprep.subr.mxu0 0.0
  %406 = vmatpush1.xpose.msra.mxu0 0.0
  %407 = vmatprep.subr.mxu0 0.0
  %408 = vmatpush1.xpose.msra.mxu0 0.0
  %409 = vmatprep.subr.mxu0 0.0
  %410 = vmatpush1.xpose.msra.mxu0 0.0
  %411 = vmatprep.subr.mxu0 0.0
  %412 = vmatpush1.xpose.msra.mxu0 0.0
  %413 = vmatprep.subr.mxu0 0.0
  %414 = vmatpush1.xpose.msra.mxu0 0.0
  %415 = vmatprep.subr.mxu0 0.0
  %416 = vmatpush1.xpose.msra.mxu0 0.0
  %417 = vmatprep.subr.mxu0 0.0
  %418 = vmatpush1.xpose.msra.mxu0 0.0
  %419 = vmatprep.subr.mxu0 0.0
  %420 = vmatpush1.xpose.msra.mxu0 0.0
  %421 = vmatprep.subr.mxu0 0.0
  %422 = vmatpush1.xpose.msra.mxu0 0.0
  %423 = vmatprep.subr.mxu0 0.0
  %424 = vmatpush1.xpose.msra.mxu0 0.0
  %425 = vmatprep.subr.mxu0 0.0
  %426 = vmatpush1.xpose.msra.mxu0 0.0
  %427 = vmatprep.subr.mxu0 0.0
  %428 = vmatpush1.xpose.msra.mxu0 0.0
  %429 = vmatprep.subr.mxu0 0.0
  %430 = vmatpush1.xpose.msra.mxu0 0.0
  %431 = vmatprep.subr.mxu0 0.0
  %432 = vmatpush1.xpose.msra.mxu0 0.0
  %433 = vmatprep.subr.mxu0 0.0
  %434 = vmatpush1.xpose.msra.mxu0 0.0
  %435 = vmatprep.subr.mxu0 0.0
  %436 = vmatpush1.xpose.msra.mxu0 0.0
  %437 = vmatprep.subr.mxu0 0.0
  %438 = vmatpush1.xpose.msra.mxu0 0.0
  %439 = vmatprep.subr.mxu0 0.0
  %440 = vmatpush1.xpose.msra.mxu0 0.0
  %441 = vmatprep.subr.mxu0 0.0
  %442 = vmatpush1.xpose.msra.mxu0 0.0
  %443 = vmatprep.subr.mxu0 0.0
  %444 = vmatpush1.xpose.msra.mxu0 0.0
  %445 = vmatprep.subr.mxu0 0.0
  %446 = vmatpush1.xpose.msra.mxu0 0.0
  %447 = vmatprep.subr.mxu0 0.0
  %448 = vmatpush1.xpose.msra.mxu0 0.0
  %449 = vmatprep.subr.mxu0 0.0
  %450 = vmatpush1.xpose.msra.mxu0 0.0
  %451 = vmatprep.subr.mxu0 0.0
  %452 = vmatpush1.xpose.msra.mxu0 0.0
  %453 = vmatprep.mubr.f32.mxu0 0.0
  %454 = vmatmul.mubr.f32.gmra.mrb[0].mxu0 %v383
  %v455 = vpop.f32.mrb[0].mxu0
  %v456 = vadd.f32 %v380, %v455
  %v457 = vpop.f32.mrb[0].mxu0
  %458 = vdwg.mxu0
  %v459 = vmul.f32 %v456, 0.35355338
  %v460 = vadd.f32 %v459, %v153
  %vm461 = vcmask 130048
  %v462 = vsel %vm461, %v460, -inf
  %463 = vmax.xlane.f32.xlu0 %v462
  %v464 = vpop.xlane.xlu0 %463
  %v465 = vsub.f32 %v460, %v464
  %v466 = vmul.f32 %v465, 1.442695
  %v467 = vpow.pop %v466
  %v468 = vsel %vm461, %v467, 0.0
  %469 = vadd.xlane.f32.xlu0 %v468
  %v470 = vpop.xlane.xlu0 %469
  %v471 = vrcp.pop %v470
  %v472 = vmul.f32 %v467, %v471
  %473 = vrot.lane.b32.xlu0 %v235, 64
  %v474 = vpop.permute.xlu0 %473
  %475 = vrot.lane.b32.xlu0 %v240, 64
  %v476 = vpop.permute.xlu0 %475
  %v480 = vsel %vm461, %v472, 0
  %482 = vmatprep.subr.mxu0 0.0
  %483 = vmatpush1.msra.mxu0 %v474
  %484 = vmatprep.subr.mxu0 0.0
  %485 = vmatpush1.msra.mxu0 %v476
  %486 = vmatprep.subr.mxu0 0.0
  %487 = vmatpush1.msra.mxu0 0.0
  %488 = vmatprep.subr.mxu0 0.0
  %489 = vmatpush1.msra.mxu0 0.0
  %490 = vmatprep.subr.mxu0 0.0
  %491 = vmatpush1.msra.mxu0 0.0
  %492 = vmatprep.subr.mxu0 0.0
  %493 = vmatpush1.msra.mxu0 0.0
  %494 = vmatprep.subr.mxu0 0.0
  %495 = vmatpush1.msra.mxu0 0.0
  %496 = vmatprep.subr.mxu0 0.0
  %497 = vmatpush1.msra.mxu0 0.0
  %498 = vmatprep.subr.mxu0 0.0
  %499 = vmatpush1.msra.mxu0 0.0
  %500 = vmatprep.subr.mxu0 0.0
  %501 = vmatpush1.msra.mxu0 0.0
  %502 = vmatprep.subr.mxu0 0.0
  %503 = vmatpush1.msra.mxu0 0.0
  %504 = vmatprep.subr.mxu0 0.0
  %505 = vmatpush1.msra.mxu0 0.0
  %506 = vmatprep.subr.mxu0 0.0
  %507 = vmatpush1.msra.mxu0 0.0
  %508 = vmatprep.subr.mxu0 0.0
  %509 = vmatpush1.msra.mxu0 0.0
  %510 = vmatprep.subr.mxu0 0.0
  %511 = vmatpush1.msra.mxu0 0.0
  %512 = vmatprep.subr.mxu0 0.0
  %513 = vmatpush1.msra.mxu0 0.0
  %514 = vmatprep.subr.mxu0 0.0
  %515 = vmatpush1.msra.mxu0 0.0
  %516 = vmatprep.subr.mxu0 0.0
  %517 = vmatpush1.msra.mxu0 0.0
  %518 = vmatprep.subr.mxu0 0.0
  %519 = vmatpush1.msra.mxu0 0.0
  %520 = vmatprep.subr.mxu0 0.0
  %521 = vmatpush1.msra.mxu0 0.0
  %522 = vmatprep.subr.mxu0 0.0
  %523 = vmatpush1.msra.mxu0 0.0
  %524 = vmatprep.subr.mxu0 0.0
  %525 = vmatpush1.msra.mxu0 0.0
  %526 = vmatprep.subr.mxu0 0.0
  %527 = vmatpush1.msra.mxu0 0.0
  %528 = vmatprep.subr.mxu0 0.0
  %529 = vmatpush1.msra.mxu0 0.0
  %530 = vmatprep.subr.mxu0 0.0
  %531 = vmatpush1.msra.mxu0 0.0
  %532 = vmatprep.subr.mxu0 0.0
  %533 = vmatpush1.msra.mxu0 0.0
  %534 = vmatprep.subr.mxu0 0.0
  %535 = vmatpush1.msra.mxu0 0.0
  %536 = vmatprep.subr.mxu0 0.0
  %537 = vmatpush1.msra.mxu0 0.0
  %538 = vmatprep.subr.mxu0 0.0
  %539 = vmatpush1.msra.mxu0 0.0
  %540 = vmatprep.subr.mxu0 0.0
  %541 = vmatpush1.msra.mxu0 0.0
  %542 = vmatprep.subr.mxu0 0.0
  %543 = vmatpush1.msra.mxu0 0.0
  %544 = vmatprep.subr.mxu0 0.0
  %545 = vmatpush1.msra.mxu0 0.0
  %546 = vmatprep.mubr.f32.mxu0 0.0
  %547 = vmatmul.mubr.f32.gmra.mrb[0].mxu0 %v480
  %v548 = vpop.f32.mrb[0].mxu0
  %v549 = vadd.f32 0.0, %v548
  %v550 = vpop.f32.mrb[0].mxu0
  %551 = vdwg.mxu0
  %v552 = vlaneseq
  %v553 = vshrl.u32 %v552, 7
  %v554 = vsub.s32 1, %v553
  %v555 = vrot.slane %v154, %v554
  %557 = vrot.lane.b32.xlu0 %v555, 8
  %v558 = vpop.permute.xlu0 %557
  %v560 = vadd.f32 %v240, %v558
  %v561 = vlaneseq
  %v562 = vshrl.u32 %v561, 7
  %v563 = vsub.s32 1, %v562
  %v564 = vrot.slane %v155, %v563
  %566 = vrot.lane.b32.xlu0 %v564, 8
  %v567 = vpop.permute.xlu0 %566
  %v569 = vadd.f32 %v240, %v567
  %571 = vrot.lane.b32.xlu0 %v569, 120
  %v572 = vpop.permute.xlu0 %571
  %573 = vrot.lane.b32.xlu0 %v140, 120
  %v574 = vpop.permute.xlu0 %573
  %575 = vrot.lane.b32.xlu0 %v145, 120
  %v576 = vpop.permute.xlu0 %575
  %577 = vrot.lane.b32.xlu0 %v150, 120
  %v578 = vpop.permute.xlu0 %577
  %v579 = vsel %vm253, %v572, 0
  %v581 = vsel %vm253, %v574, 0
  %v583 = vsel %vm253, %v576, 0
  %v585 = vsel %vm253, %v578, 0
  %587 = vmatprep.subr.mxu0 0.0
  %588 = vmatpush1.xpose.msra.mxu0 %v581
  %589 = vmatprep.subr.mxu0 0.0
  %590 = vmatpush1.xpose.msra.mxu0 %v583
  %591 = vmatprep.subr.mxu0 0.0
  %592 = vmatpush1.xpose.msra.mxu0 %v585
  %593 = vmatprep.subr.mxu0 0.0
  %594 = vmatpush1.xpose.msra.mxu0 0.0
  %595 = vmatprep.subr.mxu0 0.0
  %596 = vmatpush1.xpose.msra.mxu0 0.0
  %597 = vmatprep.subr.mxu0 0.0
  %598 = vmatpush1.xpose.msra.mxu0 0.0
  %599 = vmatprep.subr.mxu0 0.0
  %600 = vmatpush1.xpose.msra.mxu0 0.0
  %601 = vmatprep.subr.mxu0 0.0
  %602 = vmatpush1.xpose.msra.mxu0 0.0
  %603 = vmatprep.subr.mxu0 0.0
  %604 = vmatpush1.xpose.msra.mxu0 0.0
  %605 = vmatprep.subr.mxu0 0.0
  %606 = vmatpush1.xpose.msra.mxu0 0.0
  %607 = vmatprep.subr.mxu0 0.0
  %608 = vmatpush1.xpose.msra.mxu0 0.0
  %609 = vmatprep.subr.mxu0 0.0
  %610 = vmatpush1.xpose.msra.mxu0 0.0
  %611 = vmatprep.subr.mxu0 0.0
  %612 = vmatpush1.xpose.msra.mxu0 0.0
  %613 = vmatprep.subr.mxu0 0.0
  %614 = vmatpush1.xpose.msra.mxu0 0.0
  %615 = vmatprep.subr.mxu0 0.0
  %616 = vmatpush1.xpose.msra.mxu0 0.0
  %617 = vmatprep.subr.mxu0 0.0
  %618 = vmatpush1.xpose.msra.mxu0 0.0
  %619 = vmatprep.subr.mxu0 0.0
  %620 = vmatpush1.xpose.msra.mxu0 0.0
  %621 = vmatprep.subr.mxu0 0.0
  %622 = vmatpush1.xpose.msra.mxu0 0.0
  %623 = vmatprep.subr.mxu0 0.0
  %624 = vmatpush1.xpose.msra.mxu0 0.0
  %625 = vmatprep.subr.mxu0 0.0
  %626 = vmatpush1.xpose.msra.mxu0 0.0
  %627 = vmatprep.subr.mxu0 0.0
  %628 = vmatpush1.xpose.msra.mxu0 0.0
  %629 = vmatprep.subr.mxu0 0.0
  %630 = vmatpush1.xpose.msra.mxu0 0.0
  %631 = vmatprep.subr.mxu0 0.0
  %632 = vmatpush1.xpose.msra.mxu0 0.0
  %633 = vmatprep.subr.mxu0 0.0
  %634 = vmatpush1.xpose.msra.mxu0 0.0
  %635 = vmatprep.subr.mxu0 0.0
  %636 = vmatpush1.xpose.msra.mxu0 0.0
  %637 = vmatprep.subr.mxu0 0.0
  %638 = vmatpush1.xpose.msra.mxu0 0.0
  %639 = vmatprep.subr.mxu0 0.0
  %640 = vmatpush1.xpose.msra.mxu0 0.0
  %641 = vmatprep.subr.mxu0 0.0
  %642 = vmatpush1.xpose.msra.mxu0 0.0
  %643 = vmatprep.subr.mxu0 0.0
  %644 = vmatpush1.xpose.msra.mxu0 0.0
  %645 = vmatprep.subr.mxu0 0.0
  %646 = vmatpush1.xpose.msra.mxu0 0.0
  %647 = vmatprep.subr.mxu0 0.0
  %648 = vmatpush1.xpose.msra.mxu0 0.0
  %649 = vmatprep.subr.mxu0 0.0
  %650 = vmatpush1.xpose.msra.mxu0 0.0
  %651 = vmatprep.mubr.f32.mxu0 0.0
  %652 = vmatmul.mubr.f32.gmra.mrb[0].mxu0 %v579
  %v653 = vpop.f32.mrb[0].mxu0
  %v654 = vadd.f32 0.0, %v653
  %v655 = vpop.f32.mrb[0].mxu0
  %656 = vdwg.mxu0
  %658 = vrot.lane.b32.xlu0 %v654, 1
  %v659 = vpop.permute.xlu0 %658
  %661 = vrot.lane.b32.xlu0 %v654, 2
  %v662 = vpop.permute.xlu0 %661
  %664 = vrot.lane.b32.xlu0 %v654, 3
  %v665 = vpop.permute.xlu0 %664
  %667 = vrot.lane.b32.xlu0 %v654, 4
  %v668 = vpop.permute.xlu0 %667
  %670 = vrot.lane.b32.xlu0 %v654, 5
  %v671 = vpop.permute.xlu0 %670
  %673 = vrot.lane.b32.xlu0 %v654, 6
  %v674 = vpop.permute.xlu0 %673
  %676 = vrot.lane.b32.xlu0 %v654, 7
  %v677 = vpop.permute.xlu0 %676
  %v679 = vsel %vm358, %v654, %v659
  %v680 = vsel %vm360, %v679, %v662
  %v681 = vsel %vm362, %v680, %v665
  %v682 = vsel %vm364, %v681, %v668
  %v683 = vsel %vm366, %v682, %v671
  %v684 = vsel %vm368, %v683, %v674
  %v685 = vsel %vm370, %v684, %v677
  %687 = vrot.lane.b32.xlu0 %v560, 120
  %v688 = vpop.permute.xlu0 %687
  %689 = vrot.lane.b32.xlu0 %v235, 88
  %v690 = vpop.permute.xlu0 %689
  %691 = vrot.lane.b32.xlu0 %v240, 88
  %v692 = vpop.permute.xlu0 %691
  %694 = vrot.lane.b32.xlu0 %v685, 121
  %v695 = vpop.permute.xlu0 %694
  %v697 = vsel %vm253, %v688, 0
  %v699 = vsel %vm253, %v690, 0
  %v701 = vsel %vm253, %v692, 0
  %703 = vmatprep.subr.mxu0 0.0
  %704 = vmatpush1.xpose.msra.mxu0 %v699
  %705 = vmatprep.subr.mxu0 0.0
  %706 = vmatpush1.xpose.msra.mxu0 %v701
  %707 = vmatprep.subr.mxu0 0.0
  %708 = vmatpush1.xpose.msra.mxu0 0.0
  %709 = vmatprep.subr.mxu0 0.0
  %710 = vmatpush1.xpose.msra.mxu0 0.0
  %711 = vmatprep.subr.mxu0 0.0
  %712 = vmatpush1.xpose.msra.mxu0 0.0
  %713 = vmatprep.subr.mxu0 0.0
  %714 = vmatpush1.xpose.msra.mxu0 0.0
  %715 = vmatprep.subr.mxu0 0.0
  %716 = vmatpush1.xpose.msra.mxu0 0.0
  %717 = vmatprep.subr.mxu0 0.0
  %718 = vmatpush1.xpose.msra.mxu0 0.0
  %719 = vmatprep.subr.mxu0 0.0
  %720 = vmatpush1.xpose.msra.mxu0 0.0
  %721 = vmatprep.subr.mxu0 0.0
  %722 = vmatpush1.xpose.msra.mxu0 0.0
  %723 = vmatprep.subr.mxu0 0.0
  %724 = vmatpush1.xpose.msra.mxu0 0.0
  %725 = vmatprep.subr.mxu0 0.0
  %726 = vmatpush1.xpose.msra.mxu0 0.0
  %727 = vmatprep.subr.mxu0 0.0
  %728 = vmatpush1.xpose.msra.mxu0 0.0
  %729 = vmatprep.subr.mxu0 0.0
  %730 = vmatpush1.xpose.msra.mxu0 0.0
  %731 = vmatprep.subr.mxu0 0.0
  %732 = vmatpush1.xpose.msra.mxu0 0.0
  %733 = vmatprep.subr.mxu0 0.0
  %734 = vmatpush1.xpose.msra.mxu0 0.0
  %735 = vmatprep.subr.mxu0 0.0
  %736 = vmatpush1.xpose.msra.mxu0 0.0
  %737 = vmatprep.subr.mxu0 0.0
  %738 = vmatpush1.xpose.msra.mxu0 0.0
  %739 = vmatprep.subr.mxu0 0.0
  %740 = vmatpush1.xpose.msra.mxu0 0.0
  %741 = vmatprep.subr.mxu0 0.0
  %742 = vmatpush1.xpose.msra.mxu0 0.0
  %743 = vmatprep.subr.mxu0 0.0
  %744 = vmatpush1.xpose.msra.mxu0 0.0
  %745 = vmatprep.subr.mxu0 0.0
  %746 = vmatpush1.xpose.msra.mxu0 0.0
  %747 = vmatprep.subr.mxu0 0.0
  %748 = vmatpush1.xpose.msra.mxu0 0.0
  %749 = vmatprep.subr.mxu0 0.0
  %750 = vmatpush1.xpose.msra.mxu0 0.0
  %751 = vmatprep.subr.mxu0 0.0
  %752 = vmatpush1.xpose.msra.mxu0 0.0
  %753 = vmatprep.subr.mxu0 0.0
  %754 = vmatpush1.xpose.msra.mxu0 0.0
  %755 = vmatprep.subr.mxu0 0.0
  %756 = vmatpush1.xpose.msra.mxu0 0.0
  %757 = vmatprep.subr.mxu0 0.0
  %758 = vmatpush1.xpose.msra.mxu0 0.0
  %759 = vmatprep.subr.mxu0 0.0
  %760 = vmatpush1.xpose.msra.mxu0 0.0
  %761 = vmatprep.subr.mxu0 0.0
  %762 = vmatpush1.xpose.msra.mxu0 0.0
  %763 = vmatprep.subr.mxu0 0.0
  %764 = vmatpush1.xpose.msra.mxu0 0.0
  %765 = vmatprep.subr.mxu0 0.0
  %766 = vmatpush1.xpose.msra.mxu0 0.0
  %767 = vmatprep.mubr.f32.mxu0 0.0
  %768 = vmatmul.mubr.f32.gmra.mrb[0].mxu0 %v697
  %v769 = vpop.f32.mrb[0].mxu0
  %v770 = vadd.f32 %v695, %v769
  %v771 = vpop.f32.mrb[0].mxu0
  %772 = vdwg.mxu0
  %v773 = vmul.f32 %v770, 0.35355338
  %v774 = vadd.f32 %v773, %v153
  %v775 = vsel %vm461, %v774, -inf
  %776 = vmax.xlane.f32.xlu0 %v775
  %v777 = vpop.xlane.xlu0 %776
  %v778 = vsub.f32 %v774, %v777
  %v779 = vmul.f32 %v778, 1.442695
  %v780 = vpow.pop %v779
  %v781 = vsel %vm461, %v780, 0.0
  %782 = vadd.xlane.f32.xlu0 %v781
  %v783 = vpop.xlane.xlu0 %782
  %v784 = vrcp.pop %v783
  %v785 = vmul.f32 %v780, %v784
  %786 = vrot.lane.b32.xlu0 %v235, 56
  %v787 = vpop.permute.xlu0 %786
  %788 = vrot.lane.b32.xlu0 %v240, 56
  %v789 = vpop.permute.xlu0 %788
  %v793 = vsel %vm461, %v785, 0
  %795 = vmatprep.subr.mxu0 0.0
  %796 = vmatpush1.msra.mxu0 %v787
  %797 = vmatprep.subr.mxu0 0.0
  %798 = vmatpush1.msra.mxu0 %v789
  %799 = vmatprep.subr.mxu0 0.0
  %800 = vmatpush1.msra.mxu0 0.0
  %801 = vmatprep.subr.mxu0 0.0
  %802 = vmatpush1.msra.mxu0 0.0
  %803 = vmatprep.subr.mxu0 0.0
  %804 = vmatpush1.msra.mxu0 0.0
  %805 = vmatprep.subr.mxu0 0.0
  %806 = vmatpush1.msra.mxu0 0.0
  %807 = vmatprep.subr.mxu0 0.0
  %808 = vmatpush1.msra.mxu0 0.0
  %809 = vmatprep.subr.mxu0 0.0
  %810 = vmatpush1.msra.mxu0 0.0
  %811 = vmatprep.subr.mxu0 0.0
  %812 = vmatpush1.msra.mxu0 0.0
  %813 = vmatprep.subr.mxu0 0.0
  %814 = vmatpush1.msra.mxu0 0.0
  %815 = vmatprep.subr.mxu0 0.0
  %816 = vmatpush1.msra.mxu0 0.0
  %817 = vmatprep.subr.mxu0 0.0
  %818 = vmatpush1.msra.mxu0 0.0
  %819 = vmatprep.subr.mxu0 0.0
  %820 = vmatpush1.msra.mxu0 0.0
  %821 = vmatprep.subr.mxu0 0.0
  %822 = vmatpush1.msra.mxu0 0.0
  %823 = vmatprep.subr.mxu0 0.0
  %824 = vmatpush1.msra.mxu0 0.0
  %825 = vmatprep.subr.mxu0 0.0
  %826 = vmatpush1.msra.mxu0 0.0
  %827 = vmatprep.subr.mxu0 0.0
  %828 = vmatpush1.msra.mxu0 0.0
  %829 = vmatprep.subr.mxu0 0.0
  %830 = vmatpush1.msra.mxu0 0.0
  %831 = vmatprep.subr.mxu0 0.0
  %832 = vmatpush1.msra.mxu0 0.0
  %833 = vmatprep.subr.mxu0 0.0
  %834 = vmatpush1.msra.mxu0 0.0
  %835 = vmatprep.subr.mxu0 0.0
  %836 = vmatpush1.msra.mxu0 0.0
  %837 = vmatprep.subr.mxu0 0.0
  %838 = vmatpush1.msra.mxu0 0.0
  %839 = vmatprep.subr.mxu0 0.0
  %840 = vmatpush1.msra.mxu0 0.0
  %841 = vmatprep.subr.mxu0 0.0
  %842 = vmatpush1.msra.mxu0 0.0
  %843 = vmatprep.subr.mxu0 0.0
  %844 = vmatpush1.msra.mxu0 0.0
  %845 = vmatprep.subr.mxu0 0.0
  %846 = vmatpush1.msra.mxu0 0.0
  %847 = vmatprep.subr.mxu0 0.0
  %848 = vmatpush1.msra.mxu0 0.0
  %849 = vmatprep.subr.mxu0 0.0
  %850 = vmatpush1.msra.mxu0 0.0
  %851 = vmatprep.subr.mxu0 0.0
  %852 = vmatpush1.msra.mxu0 0.0
  %853 = vmatprep.subr.mxu0 0.0
  %854 = vmatpush1.msra.mxu0 0.0
  %855 = vmatprep.subr.mxu0 0.0
  %856 = vmatpush1.msra.mxu0 0.0
  %857 = vmatprep.subr.mxu0 0.0
  %858 = vmatpush1.msra.mxu0 0.0
  %859 = vmatprep.mubr.f32.mxu0 0.0
  %860 = vmatmul.mubr.f32.gmra.mrb[0].mxu0 %v793
  %v861 = vpop.f32.mrb[0].mxu0
  %v862 = vadd.f32 0.0, %v861
  %v863 = vpop.f32.mrb[0].mxu0
  %864 = vdwg.mxu0
  %v865 = vlaneseq
  %v866 = vshrl.u32 %v865, 7
  %v867 = vsub.s32 2, %v866
  %v868 = vrot.slane %v154, %v867
  %870 = vrot.lane.b32.xlu0 %v868, 16
  %v871 = vpop.permute.xlu0 %870
  %v873 = vadd.f32 %v240, %v871
  %v874 = vlaneseq
  %v875 = vshrl.u32 %v874, 7
  %v876 = vsub.s32 2, %v875
  %v877 = vrot.slane %v155, %v876
  %879 = vrot.lane.b32.xlu0 %v877, 16
  %v880 = vpop.permute.xlu0 %879
  %v882 = vadd.f32 %v240, %v880
  %884 = vrot.lane.b32.xlu0 %v882, 112
  %v885 = vpop.permute.xlu0 %884
  %886 = vrot.lane.b32.xlu0 %v140, 112
  %v887 = vpop.permute.xlu0 %886
  %888 = vrot.lane.b32.xlu0 %v145, 112
  %v889 = vpop.permute.xlu0 %888
  %890 = vrot.lane.b32.xlu0 %v150, 112
  %v891 = vpop.permute.xlu0 %890
  %v892 = vsel %vm253, %v885, 0
  %v894 = vsel %vm253, %v887, 0
  %v896 = vsel %vm253, %v889, 0
  %v898 = vsel %vm253, %v891, 0
  %900 = vmatprep.subr.mxu0 0.0
  %901 = vmatpush1.xpose.msra.mxu0 %v894
  %902 = vmatprep.subr.mxu0 0.0
  %903 = vmatpush1.xpose.msra.mxu0 %v896
  %904 = vmatprep.subr.mxu0 0.0
  %905 = vmatpush1.xpose.msra.mxu0 %v898
  %906 = vmatprep.subr.mxu0 0.0
  %907 = vmatpush1.xpose.msra.mxu0 0.0
  %908 = vmatprep.subr.mxu0 0.0
  %909 = vmatpush1.xpose.msra.mxu0 0.0
  %910 = vmatprep.subr.mxu0 0.0
  %911 = vmatpush1.xpose.msra.mxu0 0.0
  %912 = vmatprep.subr.mxu0 0.0
  %913 = vmatpush1.xpose.msra.mxu0 0.0
  %914 = vmatprep.subr.mxu0 0.0
  %915 = vmatpush1.xpose.msra.mxu0 0.0
  %916 = vmatprep.subr.mxu0 0.0
  %917 = vmatpush1.xpose.msra.mxu0 0.0
  %918 = vmatprep.subr.mxu0 0.0
  %919 = vmatpush1.xpose.msra.mxu0 0.0
  %920 = vmatprep.subr.mxu0 0.0
  %921 = vmatpush1.xpose.msra.mxu0 0.0
  %922 = vmatprep.subr.mxu0 0.0
  %923 = vmatpush1.xpose.msra.mxu0 0.0
  %924 = vmatprep.subr.mxu0 0.0
  %925 = vmatpush1.xpose.msra.mxu0 0.0
  %926 = vmatprep.subr.mxu0 0.0
  %927 = vmatpush1.xpose.msra.mxu0 0.0
  %928 = vmatprep.subr.mxu0 0.0
  %929 = vmatpush1.xpose.msra.mxu0 0.0
  %930 = vmatprep.subr.mxu0 0.0
  %931 = vmatpush1.xpose.msra.mxu0 0.0
  %932 = vmatprep.subr.mxu0 0.0
  %933 = vmatpush1.xpose.msra.mxu0 0.0
  %934 = vmatprep.subr.mxu0 0.0
  %935 = vmatpush1.xpose.msra.mxu0 0.0
  %936 = vmatprep.subr.mxu0 0.0
  %937 = vmatpush1.xpose.msra.mxu0 0.0
  %938 = vmatprep.subr.mxu0 0.0
  %939 = vmatpush1.xpose.msra.mxu0 0.0
  %940 = vmatprep.subr.mxu0 0.0
  %941 = vmatpush1.xpose.msra.mxu0 0.0
  %942 = vmatprep.subr.mxu0 0.0
  %943 = vmatpush1.xpose.msra.mxu0 0.0
  %944 = vmatprep.subr.mxu0 0.0
  %945 = vmatpush1.xpose.msra.mxu0 0.0
  %946 = vmatprep.subr.mxu0 0.0
  %947 = vmatpush1.xpose.msra.mxu0 0.0
  %948 = vmatprep.subr.mxu0 0.0
  %949 = vmatpush1.xpose.msra.mxu0 0.0
  %950 = vmatprep.subr.mxu0 0.0
  %951 = vmatpush1.xpose.msra.mxu0 0.0
  %952 = vmatprep.subr.mxu0 0.0
  %953 = vmatpush1.xpose.msra.mxu0 0.0
  %954 = vmatprep.subr.mxu0 0.0
  %955 = vmatpush1.xpose.msra.mxu0 0.0
  %956 = vmatprep.subr.mxu0 0.0
  %957 = vmatpush1.xpose.msra.mxu0 0.0
  %958 = vmatprep.subr.mxu0 0.0
  %959 = vmatpush1.xpose.msra.mxu0 0.0
  %960 = vmatprep.subr.mxu0 0.0
  %961 = vmatpush1.xpose.msra.mxu0 0.0
  %962 = vmatprep.subr.mxu0 0.0
  %963 = vmatpush1.xpose.msra.mxu0 0.0
  %964 = vmatprep.mubr.f32.mxu0 0.0
  %965 = vmatmul.mubr.f32.gmra.mrb[0].mxu0 %v892
  %v966 = vpop.f32.mrb[0].mxu0
  %v967 = vadd.f32 0.0, %v966
  %v968 = vpop.f32.mrb[0].mxu0
  %969 = vdwg.mxu0
  %971 = vrot.lane.b32.xlu0 %v967, 1
  %v972 = vpop.permute.xlu0 %971
  %974 = vrot.lane.b32.xlu0 %v967, 2
  %v975 = vpop.permute.xlu0 %974
  %977 = vrot.lane.b32.xlu0 %v967, 3
  %v978 = vpop.permute.xlu0 %977
  %980 = vrot.lane.b32.xlu0 %v967, 4
  %v981 = vpop.permute.xlu0 %980
  %983 = vrot.lane.b32.xlu0 %v967, 5
  %v984 = vpop.permute.xlu0 %983
  %986 = vrot.lane.b32.xlu0 %v967, 6
  %v987 = vpop.permute.xlu0 %986
  %989 = vrot.lane.b32.xlu0 %v967, 7
  %v990 = vpop.permute.xlu0 %989
  %v992 = vsel %vm358, %v967, %v972
  %v993 = vsel %vm360, %v992, %v975
  %v994 = vsel %vm362, %v993, %v978
  %v995 = vsel %vm364, %v994, %v981
  %v996 = vsel %vm366, %v995, %v984
  %v997 = vsel %vm368, %v996, %v987
  %v998 = vsel %vm370, %v997, %v990
  %1000 = vrot.lane.b32.xlu0 %v873, 112
  %v1001 = vpop.permute.xlu0 %1000
  %1002 = vrot.lane.b32.xlu0 %v235, 80
  %v1003 = vpop.permute.xlu0 %1002
  %1004 = vrot.lane.b32.xlu0 %v240, 80
  %v1005 = vpop.permute.xlu0 %1004
  %1007 = vrot.lane.b32.xlu0 %v998, 121
  %v1008 = vpop.permute.xlu0 %1007
  %v1010 = vsel %vm253, %v1001, 0
  %v1012 = vsel %vm253, %v1003, 0
  %v1014 = vsel %vm253, %v1005, 0
  %1016 = vmatprep.subr.mxu0 0.0
  %1017 = vmatpush1.xpose.msra.mxu0 %v1012
  %1018 = vmatprep.subr.mxu0 0.0
  %1019 = vmatpush1.xpose.msra.mxu0 %v1014
  %1020 = vmatprep.subr.mxu0 0.0
  %1021 = vmatpush1.xpose.msra.mxu0 0.0
  %1022 = vmatprep.subr.mxu0 0.0
  %1023 = vmatpush1.xpose.msra.mxu0 0.0
  %1024 = vmatprep.subr.mxu0 0.0
  %1025 = vmatpush1.xpose.msra.mxu0 0.0
  %1026 = vmatprep.subr.mxu0 0.0
  %1027 = vmatpush1.xpose.msra.mxu0 0.0
  %1028 = vmatprep.subr.mxu0 0.0
  %1029 = vmatpush1.xpose.msra.mxu0 0.0
  %1030 = vmatprep.subr.mxu0 0.0
  %1031 = vmatpush1.xpose.msra.mxu0 0.0
  %1032 = vmatprep.subr.mxu0 0.0
  %1033 = vmatpush1.xpose.msra.mxu0 0.0
  %1034 = vmatprep.subr.mxu0 0.0
  %1035 = vmatpush1.xpose.msra.mxu0 0.0
  %1036 = vmatprep.subr.mxu0 0.0
  %1037 = vmatpush1.xpose.msra.mxu0 0.0
  %1038 = vmatprep.subr.mxu0 0.0
  %1039 = vmatpush1.xpose.msra.mxu0 0.0
  %1040 = vmatprep.subr.mxu0 0.0
  %1041 = vmatpush1.xpose.msra.mxu0 0.0
  %1042 = vmatprep.subr.mxu0 0.0
  %1043 = vmatpush1.xpose.msra.mxu0 0.0
  %1044 = vmatprep.subr.mxu0 0.0
  %1045 = vmatpush1.xpose.msra.mxu0 0.0
  %1046 = vmatprep.subr.mxu0 0.0
  %1047 = vmatpush1.xpose.msra.mxu0 0.0
  %1048 = vmatprep.subr.mxu0 0.0
  %1049 = vmatpush1.xpose.msra.mxu0 0.0
  %1050 = vmatprep.subr.mxu0 0.0
  %1051 = vmatpush1.xpose.msra.mxu0 0.0
  %1052 = vmatprep.subr.mxu0 0.0
  %1053 = vmatpush1.xpose.msra.mxu0 0.0
  %1054 = vmatprep.subr.mxu0 0.0
  %1055 = vmatpush1.xpose.msra.mxu0 0.0
  %1056 = vmatprep.subr.mxu0 0.0
  %1057 = vmatpush1.xpose.msra.mxu0 0.0
  %1058 = vmatprep.subr.mxu0 0.0
  %1059 = vmatpush1.xpose.msra.mxu0 0.0
  %1060 = vmatprep.subr.mxu0 0.0
  %1061 = vmatpush1.xpose.msra.mxu0 0.0
  %1062 = vmatprep.subr.mxu0 0.0
  %1063 = vmatpush1.xpose.msra.mxu0 0.0
  %1064 = vmatprep.subr.mxu0 0.0
  %1065 = vmatpush1.xpose.msra.mxu0 0.0
  %1066 = vmatprep.subr.mxu0 0.0
  %1067 = vmatpush1.xpose.msra.mxu0 0.0
  %1068 = vmatprep.subr.mxu0 0.0
  %1069 = vmatpush1.xpose.msra.mxu0 0.0
  %1070 = vmatprep.subr.mxu0 0.0
  %1071 = vmatpush1.xpose.msra.mxu0 0.0
  %1072 = vmatprep.subr.mxu0 0.0
  %1073 = vmatpush1.xpose.msra.mxu0 0.0
  %1074 = vmatprep.subr.mxu0 0.0
  %1075 = vmatpush1.xpose.msra.mxu0 0.0
  %1076 = vmatprep.subr.mxu0 0.0
  %1077 = vmatpush1.xpose.msra.mxu0 0.0
  %1078 = vmatprep.subr.mxu0 0.0
  %1079 = vmatpush1.xpose.msra.mxu0 0.0
  %1080 = vmatprep.mubr.f32.mxu0 0.0
  %1081 = vmatmul.mubr.f32.gmra.mrb[0].mxu0 %v1010
  %v1082 = vpop.f32.mrb[0].mxu0
  %v1083 = vadd.f32 %v1008, %v1082
  %v1084 = vpop.f32.mrb[0].mxu0
  %1085 = vdwg.mxu0
  %v1086 = vmul.f32 %v1083, 0.35355338
  %v1087 = vadd.f32 %v1086, %v153
  %v1088 = vsel %vm461, %v1087, -inf
  %1089 = vmax.xlane.f32.xlu0 %v1088
  %v1090 = vpop.xlane.xlu0 %1089
  %v1091 = vsub.f32 %v1087, %v1090
  %v1092 = vmul.f32 %v1091, 1.442695
  %v1093 = vpow.pop %v1092
  %v1094 = vsel %vm461, %v1093, 0.0
  %1095 = vadd.xlane.f32.xlu0 %v1094
  %v1096 = vpop.xlane.xlu0 %1095
  %v1097 = vrcp.pop %v1096
  %v1098 = vmul.f32 %v1093, %v1097
  %1099 = vrot.lane.b32.xlu0 %v235, 48
  %v1100 = vpop.permute.xlu0 %1099
  %1101 = vrot.lane.b32.xlu0 %v240, 48
  %v1102 = vpop.permute.xlu0 %1101
  %v1106 = vsel %vm461, %v1098, 0
  %1108 = vmatprep.subr.mxu0 0.0
  %1109 = vmatpush1.msra.mxu0 %v1100
  %1110 = vmatprep.subr.mxu0 0.0
  %1111 = vmatpush1.msra.mxu0 %v1102
  %1112 = vmatprep.subr.mxu0 0.0
  %1113 = vmatpush1.msra.mxu0 0.0
  %1114 = vmatprep.subr.mxu0 0.0
  %1115 = vmatpush1.msra.mxu0 0.0
  %1116 = vmatprep.subr.mxu0 0.0
  %1117 = vmatpush1.msra.mxu0 0.0
  %1118 = vmatprep.subr.mxu0 0.0
  %1119 = vmatpush1.msra.mxu0 0.0
  %1120 = vmatprep.subr.mxu0 0.0
  %1121 = vmatpush1.msra.mxu0 0.0
  %1122 = vmatprep.subr.mxu0 0.0
  %1123 = vmatpush1.msra.mxu0 0.0
  %1124 = vmatprep.subr.mxu0 0.0
  %1125 = vmatpush1.msra.mxu0 0.0
  %1126 = vmatprep.subr.mxu0 0.0
  %1127 = vmatpush1.msra.mxu0 0.0
  %1128 = vmatprep.subr.mxu0 0.0
  %1129 = vmatpush1.msra.mxu0 0.0
  %1130 = vmatprep.subr.mxu0 0.0
  %1131 = vmatpush1.msra.mxu0 0.0
  %1132 = vmatprep.subr.mxu0 0.0
  %1133 = vmatpush1.msra.mxu0 0.0
  %1134 = vmatprep.subr.mxu0 0.0
  %1135 = vmatpush1.msra.mxu0 0.0
  %1136 = vmatprep.subr.mxu0 0.0
  %1137 = vmatpush1.msra.mxu0 0.0
  %1138 = vmatprep.subr.mxu0 0.0
  %1139 = vmatpush1.msra.mxu0 0.0
  %1140 = vmatprep.subr.mxu0 0.0
  %1141 = vmatpush1.msra.mxu0 0.0
  %1142 = vmatprep.subr.mxu0 0.0
  %1143 = vmatpush1.msra.mxu0 0.0
  %1144 = vmatprep.subr.mxu0 0.0
  %1145 = vmatpush1.msra.mxu0 0.0
  %1146 = vmatprep.subr.mxu0 0.0
  %1147 = vmatpush1.msra.mxu0 0.0
  %1148 = vmatprep.subr.mxu0 0.0
  %1149 = vmatpush1.msra.mxu0 0.0
  %1150 = vmatprep.subr.mxu0 0.0
  %1151 = vmatpush1.msra.mxu0 0.0
  %1152 = vmatprep.subr.mxu0 0.0
  %1153 = vmatpush1.msra.mxu0 0.0
  %1154 = vmatprep.subr.mxu0 0.0
  %1155 = vmatpush1.msra.mxu0 0.0
  %1156 = vmatprep.subr.mxu0 0.0
  %1157 = vmatpush1.msra.mxu0 0.0
  %1158 = vmatprep.subr.mxu0 0.0
  %1159 = vmatpush1.msra.mxu0 0.0
  %1160 = vmatprep.subr.mxu0 0.0
  %1161 = vmatpush1.msra.mxu0 0.0
  %1162 = vmatprep.subr.mxu0 0.0
  %1163 = vmatpush1.msra.mxu0 0.0
  %1164 = vmatprep.subr.mxu0 0.0
  %1165 = vmatpush1.msra.mxu0 0.0
  %1166 = vmatprep.subr.mxu0 0.0
  %1167 = vmatpush1.msra.mxu0 0.0
  %1168 = vmatprep.subr.mxu0 0.0
  %1169 = vmatpush1.msra.mxu0 0.0
  %1170 = vmatprep.subr.mxu0 0.0
  %1171 = vmatpush1.msra.mxu0 0.0
  %1172 = vmatprep.mubr.f32.mxu0 0.0
  %1173 = vmatmul.mubr.f32.gmra.mrb[0].mxu0 %v1106
  %v1174 = vpop.f32.mrb[0].mxu0
  %v1175 = vadd.f32 0.0, %v1174
  %v1176 = vpop.f32.mrb[0].mxu0
  %1177 = vdwg.mxu0
  %v1178 = vlaneseq
  %v1179 = vshrl.u32 %v1178, 7
  %v1180 = vsub.s32 3, %v1179
  %v1181 = vrot.slane %v154, %v1180
  %1183 = vrot.lane.b32.xlu0 %v1181, 24
  %v1184 = vpop.permute.xlu0 %1183
  %v1186 = vadd.f32 %v240, %v1184
  %v1187 = vlaneseq
  %v1188 = vshrl.u32 %v1187, 7
  %v1189 = vsub.s32 3, %v1188
  %v1190 = vrot.slane %v155, %v1189
  %1192 = vrot.lane.b32.xlu0 %v1190, 24
  %v1193 = vpop.permute.xlu0 %1192
  %v1195 = vadd.f32 %v240, %v1193
  %1197 = vrot.lane.b32.xlu0 %v1195, 104
  %v1198 = vpop.permute.xlu0 %1197
  %1199 = vrot.lane.b32.xlu0 %v140, 104
  %v1200 = vpop.permute.xlu0 %1199
  %1201 = vrot.lane.b32.xlu0 %v145, 104
  %v1202 = vpop.permute.xlu0 %1201
  %1203 = vrot.lane.b32.xlu0 %v150, 104
  %v1204 = vpop.permute.xlu0 %1203
  %v1205 = vsel %vm253, %v1198, 0
  %v1207 = vsel %vm253, %v1200, 0
  %v1209 = vsel %vm253, %v1202, 0
  %v1211 = vsel %vm253, %v1204, 0
  %1213 = vmatprep.subr.mxu0 0.0
  %1214 = vmatpush1.xpose.msra.mxu0 %v1207
  %1215 = vmatprep.subr.mxu0 0.0
  %1216 = vmatpush1.xpose.msra.mxu0 %v1209
  %1217 = vmatprep.subr.mxu0 0.0
  %1218 = vmatpush1.xpose.msra.mxu0 %v1211
  %1219 = vmatprep.subr.mxu0 0.0
  %1220 = vmatpush1.xpose.msra.mxu0 0.0
  %1221 = vmatprep.subr.mxu0 0.0
  %1222 = vmatpush1.xpose.msra.mxu0 0.0
  %1223 = vmatprep.subr.mxu0 0.0
  %1224 = vmatpush1.xpose.msra.mxu0 0.0
  %1225 = vmatprep.subr.mxu0 0.0
  %1226 = vmatpush1.xpose.msra.mxu0 0.0
  %1227 = vmatprep.subr.mxu0 0.0
  %1228 = vmatpush1.xpose.msra.mxu0 0.0
  %1229 = vmatprep.subr.mxu0 0.0
  %1230 = vmatpush1.xpose.msra.mxu0 0.0
  %1231 = vmatprep.subr.mxu0 0.0
  %1232 = vmatpush1.xpose.msra.mxu0 0.0
  %1233 = vmatprep.subr.mxu0 0.0
  %1234 = vmatpush1.xpose.msra.mxu0 0.0
  %1235 = vmatprep.subr.mxu0 0.0
  %1236 = vmatpush1.xpose.msra.mxu0 0.0
  %1237 = vmatprep.subr.mxu0 0.0
  %1238 = vmatpush1.xpose.msra.mxu0 0.0
  %1239 = vmatprep.subr.mxu0 0.0
  %1240 = vmatpush1.xpose.msra.mxu0 0.0
  %1241 = vmatprep.subr.mxu0 0.0
  %1242 = vmatpush1.xpose.msra.mxu0 0.0
  %1243 = vmatprep.subr.mxu0 0.0
  %1244 = vmatpush1.xpose.msra.mxu0 0.0
  %1245 = vmatprep.subr.mxu0 0.0
  %1246 = vmatpush1.xpose.msra.mxu0 0.0
  %1247 = vmatprep.subr.mxu0 0.0
  %1248 = vmatpush1.xpose.msra.mxu0 0.0
  %1249 = vmatprep.subr.mxu0 0.0
  %1250 = vmatpush1.xpose.msra.mxu0 0.0
  %1251 = vmatprep.subr.mxu0 0.0
  %1252 = vmatpush1.xpose.msra.mxu0 0.0
  %1253 = vmatprep.subr.mxu0 0.0
  %1254 = vmatpush1.xpose.msra.mxu0 0.0
  %1255 = vmatprep.subr.mxu0 0.0
  %1256 = vmatpush1.xpose.msra.mxu0 0.0
  %1257 = vmatprep.subr.mxu0 0.0
  %1258 = vmatpush1.xpose.msra.mxu0 0.0
  %1259 = vmatprep.subr.mxu0 0.0
  %1260 = vmatpush1.xpose.msra.mxu0 0.0
  %1261 = vmatprep.subr.mxu0 0.0
  %1262 = vmatpush1.xpose.msra.mxu0 0.0
  %1263 = vmatprep.subr.mxu0 0.0
  %1264 = vmatpush1.xpose.msra.mxu0 0.0
  %1265 = vmatprep.subr.mxu0 0.0
  %1266 = vmatpush1.xpose.msra.mxu0 0.0
  %1267 = vmatprep.subr.mxu0 0.0
  %1268 = vmatpush1.xpose.msra.mxu0 0.0
  %1269 = vmatprep.subr.mxu0 0.0
  %1270 = vmatpush1.xpose.msra.mxu0 0.0
  %1271 = vmatprep.subr.mxu0 0.0
  %1272 = vmatpush1.xpose.msra.mxu0 0.0
  %1273 = vmatprep.subr.mxu0 0.0
  %1274 = vmatpush1.xpose.msra.mxu0 0.0
  %1275 = vmatprep.subr.mxu0 0.0
  %1276 = vmatpush1.xpose.msra.mxu0 0.0
  %1277 = vmatprep.mubr.f32.mxu0 0.0
  %1278 = vmatmul.mubr.f32.gmra.mrb[0].mxu0 %v1205
  %v1279 = vpop.f32.mrb[0].mxu0
  %v1280 = vadd.f32 0.0, %v1279
  %v1281 = vpop.f32.mrb[0].mxu0
  %1282 = vdwg.mxu0
  %1284 = vrot.lane.b32.xlu0 %v1280, 1
  %v1285 = vpop.permute.xlu0 %1284
  %1287 = vrot.lane.b32.xlu0 %v1280, 2
  %v1288 = vpop.permute.xlu0 %1287
  %1290 = vrot.lane.b32.xlu0 %v1280, 3
  %v1291 = vpop.permute.xlu0 %1290
  %1293 = vrot.lane.b32.xlu0 %v1280, 4
  %v1294 = vpop.permute.xlu0 %1293
  %1296 = vrot.lane.b32.xlu0 %v1280, 5
  %v1297 = vpop.permute.xlu0 %1296
  %1299 = vrot.lane.b32.xlu0 %v1280, 6
  %v1300 = vpop.permute.xlu0 %1299
  %1302 = vrot.lane.b32.xlu0 %v1280, 7
  %v1303 = vpop.permute.xlu0 %1302
  %v1305 = vsel %vm358, %v1280, %v1285
  %v1306 = vsel %vm360, %v1305, %v1288
  %v1307 = vsel %vm362, %v1306, %v1291
  %v1308 = vsel %vm364, %v1307, %v1294
  %v1309 = vsel %vm366, %v1308, %v1297
  %v1310 = vsel %vm368, %v1309, %v1300
  %v1311 = vsel %vm370, %v1310, %v1303
  %1313 = vrot.lane.b32.xlu0 %v1186, 104
  %v1314 = vpop.permute.xlu0 %1313
  %1315 = vrot.lane.b32.xlu0 %v235, 72
  %v1316 = vpop.permute.xlu0 %1315
  %1317 = vrot.lane.b32.xlu0 %v240, 72
  %v1318 = vpop.permute.xlu0 %1317
  %1320 = vrot.lane.b32.xlu0 %v1311, 121
  %v1321 = vpop.permute.xlu0 %1320
  %v1323 = vsel %vm253, %v1314, 0
  %v1325 = vsel %vm253, %v1316, 0
  %v1327 = vsel %vm253, %v1318, 0
  %1329 = vmatprep.subr.mxu0 0.0
  %1330 = vmatpush1.xpose.msra.mxu0 %v1325
  %1331 = vmatprep.subr.mxu0 0.0
  %1332 = vmatpush1.xpose.msra.mxu0 %v1327
  %1333 = vmatprep.subr.mxu0 0.0
  %1334 = vmatpush1.xpose.msra.mxu0 0.0
  %1335 = vmatprep.subr.mxu0 0.0
  %1336 = vmatpush1.xpose.msra.mxu0 0.0
  %1337 = vmatprep.subr.mxu0 0.0
  %1338 = vmatpush1.xpose.msra.mxu0 0.0
  %1339 = vmatprep.subr.mxu0 0.0
  %1340 = vmatpush1.xpose.msra.mxu0 0.0
  %1341 = vmatprep.subr.mxu0 0.0
  %1342 = vmatpush1.xpose.msra.mxu0 0.0
  %1343 = vmatprep.subr.mxu0 0.0
  %1344 = vmatpush1.xpose.msra.mxu0 0.0
  %1345 = vmatprep.subr.mxu0 0.0
  %1346 = vmatpush1.xpose.msra.mxu0 0.0
  %1347 = vmatprep.subr.mxu0 0.0
  %1348 = vmatpush1.xpose.msra.mxu0 0.0
  %1349 = vmatprep.subr.mxu0 0.0
  %1350 = vmatpush1.xpose.msra.mxu0 0.0
  %1351 = vmatprep.subr.mxu0 0.0
  %1352 = vmatpush1.xpose.msra.mxu0 0.0
  %1353 = vmatprep.subr.mxu0 0.0
  %1354 = vmatpush1.xpose.msra.mxu0 0.0
  %1355 = vmatprep.subr.mxu0 0.0
  %1356 = vmatpush1.xpose.msra.mxu0 0.0
  %1357 = vmatprep.subr.mxu0 0.0
  %1358 = vmatpush1.xpose.msra.mxu0 0.0
  %1359 = vmatprep.subr.mxu0 0.0
  %1360 = vmatpush1.xpose.msra.mxu0 0.0
  %1361 = vmatprep.subr.mxu0 0.0
  %1362 = vmatpush1.xpose.msra.mxu0 0.0
  %1363 = vmatprep.subr.mxu0 0.0
  %1364 = vmatpush1.xpose.msra.mxu0 0.0
  %1365 = vmatprep.subr.mxu0 0.0
  %1366 = vmatpush1.xpose.msra.mxu0 0.0
  %1367 = vmatprep.subr.mxu0 0.0
  %1368 = vmatpush1.xpose.msra.mxu0 0.0
  %1369 = vmatprep.subr.mxu0 0.0
  %1370 = vmatpush1.xpose.msra.mxu0 0.0
  %1371 = vmatprep.subr.mxu0 0.0
  %1372 = vmatpush1.xpose.msra.mxu0 0.0
  %1373 = vmatprep.subr.mxu0 0.0
  %1374 = vmatpush1.xpose.msra.mxu0 0.0
  %1375 = vmatprep.subr.mxu0 0.0
  %1376 = vmatpush1.xpose.msra.mxu0 0.0
  %1377 = vmatprep.subr.mxu0 0.0
  %1378 = vmatpush1.xpose.msra.mxu0 0.0
  %1379 = vmatprep.subr.mxu0 0.0
  %1380 = vmatpush1.xpose.msra.mxu0 0.0
  %1381 = vmatprep.subr.mxu0 0.0
  %1382 = vmatpush1.xpose.msra.mxu0 0.0
  %1383 = vmatprep.subr.mxu0 0.0
  %1384 = vmatpush1.xpose.msra.mxu0 0.0
  %1385 = vmatprep.subr.mxu0 0.0
  %1386 = vmatpush1.xpose.msra.mxu0 0.0
  %1387 = vmatprep.subr.mxu0 0.0
  %1388 = vmatpush1.xpose.msra.mxu0 0.0
  %1389 = vmatprep.subr.mxu0 0.0
  %1390 = vmatpush1.xpose.msra.mxu0 0.0
  %1391 = vmatprep.subr.mxu0 0.0
  %1392 = vmatpush1.xpose.msra.mxu0 0.0
  %1393 = vmatprep.mubr.f32.mxu0 0.0
  %1394 = vmatmul.mubr.f32.gmra.mrb[0].mxu0 %v1323
  %v1395 = vpop.f32.mrb[0].mxu0
  %v1396 = vadd.f32 %v1321, %v1395
  %v1397 = vpop.f32.mrb[0].mxu0
  %1398 = vdwg.mxu0
  %v1399 = vmul.f32 %v1396, 0.35355338
  %v1400 = vadd.f32 %v1399, %v153
  %v1401 = vsel %vm461, %v1400, -inf
  %1402 = vmax.xlane.f32.xlu0 %v1401
  %v1403 = vpop.xlane.xlu0 %1402
  %v1404 = vsub.f32 %v1400, %v1403
  %v1405 = vmul.f32 %v1404, 1.442695
  %v1406 = vpow.pop %v1405
  %v1407 = vsel %vm461, %v1406, 0.0
  %1408 = vadd.xlane.f32.xlu0 %v1407
  %v1409 = vpop.xlane.xlu0 %1408
  %v1410 = vrcp.pop %v1409
  %v1411 = vmul.f32 %v1406, %v1410
  %1412 = vrot.lane.b32.xlu0 %v235, 40
  %v1413 = vpop.permute.xlu0 %1412
  %1414 = vrot.lane.b32.xlu0 %v240, 40
  %v1415 = vpop.permute.xlu0 %1414
  %v1419 = vsel %vm461, %v1411, 0
  %1421 = vmatprep.subr.mxu0 0.0
  %1422 = vmatpush1.msra.mxu0 %v1413
  %1423 = vmatprep.subr.mxu0 0.0
  %1424 = vmatpush1.msra.mxu0 %v1415
  %1425 = vmatprep.subr.mxu0 0.0
  %1426 = vmatpush1.msra.mxu0 0.0
  %1427 = vmatprep.subr.mxu0 0.0
  %1428 = vmatpush1.msra.mxu0 0.0
  %1429 = vmatprep.subr.mxu0 0.0
  %1430 = vmatpush1.msra.mxu0 0.0
  %1431 = vmatprep.subr.mxu0 0.0
  %1432 = vmatpush1.msra.mxu0 0.0
  %1433 = vmatprep.subr.mxu0 0.0
  %1434 = vmatpush1.msra.mxu0 0.0
  %1435 = vmatprep.subr.mxu0 0.0
  %1436 = vmatpush1.msra.mxu0 0.0
  %1437 = vmatprep.subr.mxu0 0.0
  %1438 = vmatpush1.msra.mxu0 0.0
  %1439 = vmatprep.subr.mxu0 0.0
  %1440 = vmatpush1.msra.mxu0 0.0
  %1441 = vmatprep.subr.mxu0 0.0
  %1442 = vmatpush1.msra.mxu0 0.0
  %1443 = vmatprep.subr.mxu0 0.0
  %1444 = vmatpush1.msra.mxu0 0.0
  %1445 = vmatprep.subr.mxu0 0.0
  %1446 = vmatpush1.msra.mxu0 0.0
  %1447 = vmatprep.subr.mxu0 0.0
  %1448 = vmatpush1.msra.mxu0 0.0
  %1449 = vmatprep.subr.mxu0 0.0
  %1450 = vmatpush1.msra.mxu0 0.0
  %1451 = vmatprep.subr.mxu0 0.0
  %1452 = vmatpush1.msra.mxu0 0.0
  %1453 = vmatprep.subr.mxu0 0.0
  %1454 = vmatpush1.msra.mxu0 0.0
  %1455 = vmatprep.subr.mxu0 0.0
  %1456 = vmatpush1.msra.mxu0 0.0
  %1457 = vmatprep.subr.mxu0 0.0
  %1458 = vmatpush1.msra.mxu0 0.0
  %1459 = vmatprep.subr.mxu0 0.0
  %1460 = vmatpush1.msra.mxu0 0.0
  %1461 = vmatprep.subr.mxu0 0.0
  %1462 = vmatpush1.msra.mxu0 0.0
  %1463 = vmatprep.subr.mxu0 0.0
  %1464 = vmatpush1.msra.mxu0 0.0
  %1465 = vmatprep.subr.mxu0 0.0
  %1466 = vmatpush1.msra.mxu0 0.0
  %1467 = vmatprep.subr.mxu0 0.0
  %1468 = vmatpush1.msra.mxu0 0.0
  %1469 = vmatprep.subr.mxu0 0.0
  %1470 = vmatpush1.msra.mxu0 0.0
  %1471 = vmatprep.subr.mxu0 0.0
  %1472 = vmatpush1.msra.mxu0 0.0
  %1473 = vmatprep.subr.mxu0 0.0
  %1474 = vmatpush1.msra.mxu0 0.0
  %1475 = vmatprep.subr.mxu0 0.0
  %1476 = vmatpush1.msra.mxu0 0.0
  %1477 = vmatprep.subr.mxu0 0.0
  %1478 = vmatpush1.msra.mxu0 0.0
  %1479 = vmatprep.subr.mxu0 0.0
  %1480 = vmatpush1.msra.mxu0 0.0
  %1481 = vmatprep.subr.mxu0 0.0
  %1482 = vmatpush1.msra.mxu0 0.0
  %1483 = vmatprep.subr.mxu0 0.0
  %1484 = vmatpush1.msra.mxu0 0.0
  %1485 = vmatprep.mubr.f32.mxu0 0.0
  %1486 = vmatmul.mubr.f32.gmra.mrb[0].mxu0 %v1419
  %v1487 = vpop.f32.mrb[0].mxu0
  %v1488 = vadd.f32 0.0, %v1487
  %v1489 = vpop.f32.mrb[0].mxu0
  %1490 = vdwg.mxu0
  %1492 = vrot.lane.b32.xlu0 %v862, 8
  %v1493 = vpop.permute.xlu0 %1492
  %1496 = vrot.lane.b32.xlu0 %v1175, 16
  %v1497 = vpop.permute.xlu0 %1496
  %1500 = vrot.lane.b32.xlu0 %v1488, 24
  %v1501 = vpop.permute.xlu0 %1500
  %v1503 = vsel %vm253, %v549, %v1493
  %v1504 = vsel %vm461, %v1503, %v1497
  %vm1505 = vcmask 195584
  %v1506 = vsel %vm1505, %v1504, %v1501
  %v1507 = vld [vmem:[%s6] sm:$0xff]
  %v1508 = vld [vmem:[%s6 + $0x8] sm:$0xff]
  %v1509 = vld [vmem:[%s6 + $0x10] sm:$0xff]
  %v1510 = vld [vmem:[%s6 + $0x18] sm:$0xff]
  %v1512 = vsel %vm63, %v1506, 0
  %1514 = vmatprep.subr.mxu0 0.0
  %1515 = vmatpush1.msra.mxu0 %v1507
  %1516 = vmatprep.subr.mxu0 0.0
  %1517 = vmatpush1.msra.mxu0 %v1508
  %1518 = vmatprep.subr.mxu0 0.0
  %1519 = vmatpush1.msra.mxu0 %v1509
  %1520 = vmatprep.subr.mxu0 0.0
  %1521 = vmatpush1.msra.mxu0 %v1510
  %1522 = vmatprep.subr.mxu0 0.0
  %1523 = vmatpush1.msra.mxu0 0.0
  %1524 = vmatprep.subr.mxu0 0.0
  %1525 = vmatpush1.msra.mxu0 0.0
  %1526 = vmatprep.subr.mxu0 0.0
  %1527 = vmatpush1.msra.mxu0 0.0
  %1528 = vmatprep.subr.mxu0 0.0
  %1529 = vmatpush1.msra.mxu0 0.0
  %1530 = vmatprep.subr.mxu0 0.0
  %1531 = vmatpush1.msra.mxu0 0.0
  %1532 = vmatprep.subr.mxu0 0.0
  %1533 = vmatpush1.msra.mxu0 0.0
  %1534 = vmatprep.subr.mxu0 0.0
  %1535 = vmatpush1.msra.mxu0 0.0
  %1536 = vmatprep.subr.mxu0 0.0
  %1537 = vmatpush1.msra.mxu0 0.0
  %1538 = vmatprep.subr.mxu0 0.0
  %1539 = vmatpush1.msra.mxu0 0.0
  %1540 = vmatprep.subr.mxu0 0.0
  %1541 = vmatpush1.msra.mxu0 0.0
  %1542 = vmatprep.subr.mxu0 0.0
  %1543 = vmatpush1.msra.mxu0 0.0
  %1544 = vmatprep.subr.mxu0 0.0
  %1545 = vmatpush1.msra.mxu0 0.0
  %1546 = vmatprep.subr.mxu0 0.0
  %1547 = vmatpush1.msra.mxu0 0.0
  %1548 = vmatprep.subr.mxu0 0.0
  %1549 = vmatpush1.msra.mxu0 0.0
  %1550 = vmatprep.subr.mxu0 0.0
  %1551 = vmatpush1.msra.mxu0 0.0
  %1552 = vmatprep.subr.mxu0 0.0
  %1553 = vmatpush1.msra.mxu0 0.0
  %1554 = vmatprep.subr.mxu0 0.0
  %1555 = vmatpush1.msra.mxu0 0.0
  %1556 = vmatprep.subr.mxu0 0.0
  %1557 = vmatpush1.msra.mxu0 0.0
  %1558 = vmatprep.subr.mxu0 0.0
  %1559 = vmatpush1.msra.mxu0 0.0
  %1560 = vmatprep.subr.mxu0 0.0
  %1561 = vmatpush1.msra.mxu0 0.0
  %1562 = vmatprep.subr.mxu0 0.0
  %1563 = vmatpush1.msra.mxu0 0.0
  %1564 = vmatprep.subr.mxu0 0.0
  %1565 = vmatpush1.msra.mxu0 0.0
  %1566 = vmatprep.subr.mxu0 0.0
  %1567 = vmatpush1.msra.mxu0 0.0
  %1568 = vmatprep.subr.mxu0 0.0
  %1569 = vmatpush1.msra.mxu0 0.0
  %1570 = vmatprep.subr.mxu0 0.0
  %1571 = vmatpush1.msra.mxu0 0.0
  %1572 = vmatprep.subr.mxu0 0.0
  %1573 = vmatpush1.msra.mxu0 0.0
  %1574 = vmatprep.subr.mxu0 0.0
  %1575 = vmatpush1.msra.mxu0 0.0
  %1576 = vmatprep.subr.mxu0 0.0
  %1577 = vmatpush1.msra.mxu0 0.0
  %1578 = vmatprep.mubr.f32.mxu0 0.0
  %1579 = vmatmul.mubr.f32.gmra.mrb[0].mxu0 %v1512
  %v1580 = vpop.f32.mrb[0].mxu0
  %v1581 = vadd.f32 0.0, %v1580
  %v1582 = vpop.f32.mrb[0].mxu0
  %1583 = vdwg.mxu0
  %v1584 = vadd.f32 %v156, %v1581
  %v1585 = vld [vmem:[%s9] sm:$0x1]
  %v1586 = vld [vmem:[%s10] sm:$0x1]
  %v1587 = vsel %vm63, %v1584, 0.0
  %1588 = vadd.xlane.f32.xlu0 %v1587
  %v1589 = vpop.xlane.xlu0 %1588
  %v1590 = vrcp.pop 32.0
  %v1591 = vmul.f32 %v1589, %v1590
  %v1592 = vsub.f32 %v1584, %v1591
  %v1593 = vmul.f32 %v1592, %v1592
  %v1594 = vsel %vm63, %v1593, 0.0
  %1595 = vadd.xlane.f32.xlu0 %v1594
  %v1596 = vpop.xlane.xlu0 %1595
  %v1597 = vmul.f32 %v1596, %v1590
  %v1598 = vadd.f32 %v1597, 1e-05
  %v1599 = vrsqrt.pop %v1598
  %v1600 = vmul.f32 %v1592, %v1599
  %v1602 = vlaneseq
  %v1603 = vshrl.u32 %v1602, 7
  %v1604 = vsub.s32 0, %v1603
  %v1605 = vrot.slane %v1585, %v1604
  %v1607 = vmul.f32 %v1600, %v1605
  %v1609 = vlaneseq
  %v1610 = vshrl.u32 %v1609, 7
  %v1611 = vsub.s32 0, %v1610
  %v1612 = vrot.slane %v1586, %v1611
  %v1614 = vadd.f32 %v1607, %v1612
  %v1615 = vld [vmem:[%s11] sm:$0xff]
  %v1616 = vld [vmem:[%s11 + $0x8] sm:$0xff]
  %v1617 = vld [vmem:[%s11 + $0x10] sm:$0xff]
  %v1618 = vld [vmem:[%s11 + $0x18] sm:$0xff]
  %v1619 = vld [vmem:[%s12] sm:$0x1]
  %v1621 = vlaneseq
  %v1622 = vshrl.u32 %v1621, 7
  %v1623 = vsub.s32 0, %v1622
  %v1624 = vrot.slane %v1619, %v1623
  %v1627 = vsel %vm63, %v1614, 0
  %1629 = vmatprep.subr.mxu0 0.0
  %1630 = vmatpush1.msra.mxu0 %v1615
  %1631 = vmatprep.subr.mxu0 0.0
  %1632 = vmatpush1.msra.mxu0 %v1616
  %1633 = vmatprep.subr.mxu0 0.0
  %1634 = vmatpush1.msra.mxu0 %v1617
  %1635 = vmatprep.subr.mxu0 0.0
  %1636 = vmatpush1.msra.mxu0 %v1618
  %1637 = vmatprep.subr.mxu0 0.0
  %1638 = vmatpush1.msra.mxu0 0.0
  %1639 = vmatprep.subr.mxu0 0.0
  %1640 = vmatpush1.msra.mxu0 0.0
  %1641 = vmatprep.subr.mxu0 0.0
  %1642 = vmatpush1.msra.mxu0 0.0
  %1643 = vmatprep.subr.mxu0 0.0
  %1644 = vmatpush1.msra.mxu0 0.0
  %1645 = vmatprep.subr.mxu0 0.0
  %1646 = vmatpush1.msra.mxu0 0.0
  %1647 = vmatprep.subr.mxu0 0.0
  %1648 = vmatpush1.msra.mxu0 0.0
  %1649 = vmatprep.subr.mxu0 0.0
  %1650 = vmatpush1.msra.mxu0 0.0
  %1651 = vmatprep.subr.mxu0 0.0
  %1652 = vmatpush1.msra.mxu0 0.0
  %1653 = vmatprep.subr.mxu0 0.0
  %1654 = vmatpush1.msra.mxu0 0.0
  %1655 = vmatprep.subr.mxu0 0.0
  %1656 = vmatpush1.msra.mxu0 0.0
  %1657 = vmatprep.subr.mxu0 0.0
  %1658 = vmatpush1.msra.mxu0 0.0
  %1659 = vmatprep.subr.mxu0 0.0
  %1660 = vmatpush1.msra.mxu0 0.0
  %1661 = vmatprep.subr.mxu0 0.0
  %1662 = vmatpush1.msra.mxu0 0.0
  %1663 = vmatprep.subr.mxu0 0.0
  %1664 = vmatpush1.msra.mxu0 0.0
  %1665 = vmatprep.subr.mxu0 0.0
  %1666 = vmatpush1.msra.mxu0 0.0
  %1667 = vmatprep.subr.mxu0 0.0
  %1668 = vmatpush1.msra.mxu0 0.0
  %1669 = vmatprep.subr.mxu0 0.0
  %1670 = vmatpush1.msra.mxu0 0.0
  %1671 = vmatprep.subr.mxu0 0.0
  %1672 = vmatpush1.msra.mxu0 0.0
  %1673 = vmatprep.subr.mxu0 0.0
  %1674 = vmatpush1.msra.mxu0 0.0
  %1675 = vmatprep.subr.mxu0 0.0
  %1676 = vmatpush1.msra.mxu0 0.0
  %1677 = vmatprep.subr.mxu0 0.0
  %1678 = vmatpush1.msra.mxu0 0.0
  %1679 = vmatprep.subr.mxu0 0.0
  %1680 = vmatpush1.msra.mxu0 0.0
  %1681 = vmatprep.subr.mxu0 0.0
  %1682 = vmatpush1.msra.mxu0 0.0
  %1683 = vmatprep.subr.mxu0 0.0
  %1684 = vmatpush1.msra.mxu0 0.0
  %1685 = vmatprep.subr.mxu0 0.0
  %1686 = vmatpush1.msra.mxu0 0.0
  %1687 = vmatprep.subr.mxu0 0.0
  %1688 = vmatpush1.msra.mxu0 0.0
  %1689 = vmatprep.subr.mxu0 0.0
  %1690 = vmatpush1.msra.mxu0 0.0
  %1691 = vmatprep.subr.mxu0 0.0
  %1692 = vmatpush1.msra.mxu0 0.0
  %1693 = vmatprep.mubr.f32.mxu0 0.0
  %1694 = vmatmul.mubr.f32.gmra.mrb[0].mxu0 %v1627
  %v1695 = vpop.f32.mrb[0].mxu0
  %v1696 = vadd.f32 %v1624, %v1695
  %v1697 = vpop.f32.mrb[0].mxu0
  %1698 = vdwg.mxu0
  %v1699 = vmax.f32 %v1696, 0.0
  %v1700 = vld [vmem:[%s13] sm:$0xff]
  %v1701 = vld [vmem:[%s13 + $0x8] sm:$0xff]
  %v1702 = vld [vmem:[%s13 + $0x10] sm:$0xff]
  %v1703 = vld [vmem:[%s13 + $0x18] sm:$0xff]
  %v1704 = vld [vmem:[%s13 + $0x20] sm:$0xff]
  %v1705 = vld [vmem:[%s13 + $0x28] sm:$0xff]
  %v1706 = vld [vmem:[%s13 + $0x30] sm:$0xff]
  %v1707 = vld [vmem:[%s13 + $0x38] sm:$0xff]
  %v1708 = vld [vmem:[%s14] sm:$0x1]
  %v1710 = vlaneseq
  %v1711 = vshrl.u32 %v1710, 7
  %v1712 = vsub.s32 0, %v1711
  %v1713 = vrot.slane %v1708, %v1712
  %vm1715 = vcmask 523264
  %v1717 = vsel %vm1715, %v1699, 0
  %1719 = vmatprep.subr.mxu0 0.0
  %1720 = vmatpush1.msra.mxu0 %v1700
  %1721 = vmatprep.subr.mxu0 0.0
  %1722 = vmatpush1.msra.mxu0 %v1701
  %1723 = vmatprep.subr.mxu0 0.0
  %1724 = vmatpush1.msra.mxu0 %v1702
  %1725 = vmatprep.subr.mxu0 0.0
  %1726 = vmatpush1.msra.mxu0 %v1703
  %1727 = vmatprep.subr.mxu0 0.0
  %1728 = vmatpush1.msra.mxu0 %v1704
  %1729 = vmatprep.subr.mxu0 0.0
  %1730 = vmatpush1.msra.mxu0 %v1705
  %1731 = vmatprep.subr.mxu0 0.0
  %1732 = vmatpush1.msra.mxu0 %v1706
  %1733 = vmatprep.subr.mxu0 0.0
  %1734 = vmatpush1.msra.mxu0 %v1707
  %1735 = vmatprep.subr.mxu0 0.0
  %1736 = vmatpush1.msra.mxu0 0.0
  %1737 = vmatprep.subr.mxu0 0.0
  %1738 = vmatpush1.msra.mxu0 0.0
  %1739 = vmatprep.subr.mxu0 0.0
  %1740 = vmatpush1.msra.mxu0 0.0
  %1741 = vmatprep.subr.mxu0 0.0
  %1742 = vmatpush1.msra.mxu0 0.0
  %1743 = vmatprep.subr.mxu0 0.0
  %1744 = vmatpush1.msra.mxu0 0.0
  %1745 = vmatprep.subr.mxu0 0.0
  %1746 = vmatpush1.msra.mxu0 0.0
  %1747 = vmatprep.subr.mxu0 0.0
  %1748 = vmatpush1.msra.mxu0 0.0
  %1749 = vmatprep.subr.mxu0 0.0
  %1750 = vmatpush1.msra.mxu0 0.0
  %1751 = vmatprep.subr.mxu0 0.0
  %1752 = vmatpush1.msra.mxu0 0.0
  %1753 = vmatprep.subr.mxu0 0.0
  %1754 = vmatpush1.msra.mxu0 0.0
  %1755 = vmatprep.subr.mxu0 0.0
  %1756 = vmatpush1.msra.mxu0 0.0
  %1757 = vmatprep.subr.mxu0 0.0
  %1758 = vmatpush1.msra.mxu0 0.0
  %1759 = vmatprep.subr.mxu0 0.0
  %1760 = vmatpush1.msra.mxu0 0.0
  %1761 = vmatprep.subr.mxu0 0.0
  %1762 = vmatpush1.msra.mxu0 0.0
  %1763 = vmatprep.subr.mxu0 0.0
  %1764 = vmatpush1.msra.mxu0 0.0
  %1765 = vmatprep.subr.mxu0 0.0
  %1766 = vmatpush1.msra.mxu0 0.0
  %1767 = vmatprep.subr.mxu0 0.0
  %1768 = vmatpush1.msra.mxu0 0.0
  %1769 = vmatprep.subr.mxu0 0.0
  %1770 = vmatpush1.msra.mxu0 0.0
  %1771 = vmatprep.subr.mxu0 0.0
  %1772 = vmatpush1.msra.mxu0 0.0
  %1773 = vmatprep.subr.mxu0 0.0
  %1774 = vmatpush1.msra.mxu0 0.0
  %1775 = vmatprep.subr.mxu0 0.0
  %1776 = vmatpush1.msra.mxu0 0.0
  %1777 = vmatprep.subr.mxu0 0.0
  %1778 = vmatpush1.msra.mxu0 0.0
  %1779 = vmatprep.subr.mxu0 0.0
  %1780 = vmatpush1.msra.mxu0 0.0
  %1781 = vmatprep.subr.mxu0 0.0
  %1782 = vmatpush1.msra.mxu0 0.0
  %1783 = vmatprep.mubr.f32.mxu0 0.0
  %1784 = vmatmul.mubr.f32.gmra.mrb[0].mxu0 %v1717
  %v1785 = vpop.f32.mrb[0].mxu0
  %v1786 = vadd.f32 %v1713, %v1785
  %v1787 = vpop.f32.mrb[0].mxu0
  %1788 = vdwg.mxu0
  %v1789 = vadd.f32 %v1614, %v1786
  %v1790 = vld [vmem:[%s15] sm:$0x1]
  %v1791 = vld [vmem:[%s16] sm:$0x1]
  %v1792 = vsel %vm63, %v1789, 0.0
  %1793 = vadd.xlane.f32.xlu0 %v1792
  %v1794 = vpop.xlane.xlu0 %1793
  %v1795 = vmul.f32 %v1794, %v1590
  %v1796 = vsub.f32 %v1789, %v1795
  %v1797 = vmul.f32 %v1796, %v1796
  %v1798 = vsel %vm63, %v1797, 0.0
  %1799 = vadd.xlane.f32.xlu0 %v1798
  %v1800 = vpop.xlane.xlu0 %1799
  %v1801 = vmul.f32 %v1800, %v1590
  %v1802 = vadd.f32 %v1801, 1e-05
  %v1803 = vrsqrt.pop %v1802
  %v1804 = vmul.f32 %v1796, %v1803
  %v1806 = vlaneseq
  %v1807 = vshrl.u32 %v1806, 7
  %v1808 = vsub.s32 0, %v1807
  %v1809 = vrot.slane %v1790, %v1808
  %v1811 = vmul.f32 %v1804, %v1809
  %v1813 = vlaneseq
  %v1814 = vshrl.u32 %v1813, 7
  %v1815 = vsub.s32 0, %v1814
  %v1816 = vrot.slane %v1791, %v1815
  %v1818 = vadd.f32 %v1811, %v1816
  %1819 = vst.msk [vmem:[%s17] sm:$0xff] %vm63, %v1818
  %s1820 = scalar_lea.vmem %s0, 8
  %v1821 = vld [vmem:[%s1820] sm:$0xff]
  %s1822 = scalar_lea.vmem %s1, 8
  %v1823 = vld [vmem:[%s1822] sm:$0xff]
  %v1824 = vld [vmem:[%s4] sm:$0xff]
  %v1825 = vld [vmem:[%s4 + $0x8] sm:$0xff]
  %v1826 = vld [vmem:[%s4 + $0x10] sm:$0xff]
  %v1827 = vld [vmem:[%s4 + $0x18] sm:$0xff]
  %v1829 = vsel %vm63, %v1823, 0
  %v1832 = vsel %vm63, %v1821, 0
  %1834 = vmatprep.subr.mxu0 0.0
  %1835 = vmatpush1.msra.mxu0 %v1824
  %1836 = vmatprep.subr.mxu0 0.0
  %1837 = vmatpush1.msra.mxu0 %v1825
  %1838 = vmatprep.subr.mxu0 0.0
  %1839 = vmatpush1.msra.mxu0 %v1826
  %1840 = vmatprep.subr.mxu0 0.0
  %1841 = vmatpush1.msra.mxu0 %v1827
  %1842 = vmatprep.subr.mxu0 0.0
  %1843 = vmatpush1.msra.mxu0 0.0
  %1844 = vmatprep.subr.mxu0 0.0
  %1845 = vmatpush1.msra.mxu0 0.0
  %1846 = vmatprep.subr.mxu0 0.0
  %1847 = vmatpush1.msra.mxu0 0.0
  %1848 = vmatprep.subr.mxu0 0.0
  %1849 = vmatpush1.msra.mxu0 0.0
  %1850 = vmatprep.subr.mxu0 0.0
  %1851 = vmatpush1.msra.mxu0 0.0
  %1852 = vmatprep.subr.mxu0 0.0
  %1853 = vmatpush1.msra.mxu0 0.0
  %1854 = vmatprep.subr.mxu0 0.0
  %1855 = vmatpush1.msra.mxu0 0.0
  %1856 = vmatprep.subr.mxu0 0.0
  %1857 = vmatpush1.msra.mxu0 0.0
  %1858 = vmatprep.subr.mxu0 0.0
  %1859 = vmatpush1.msra.mxu0 0.0
  %1860 = vmatprep.subr.mxu0 0.0
  %1861 = vmatpush1.msra.mxu0 0.0
  %1862 = vmatprep.subr.mxu0 0.0
  %1863 = vmatpush1.msra.mxu0 0.0
  %1864 = vmatprep.subr.mxu0 0.0
  %1865 = vmatpush1.msra.mxu0 0.0
  %1866 = vmatprep.subr.mxu0 0.0
  %1867 = vmatpush1.msra.mxu0 0.0
  %1868 = vmatprep.subr.mxu0 0.0
  %1869 = vmatpush1.msra.mxu0 0.0
  %1870 = vmatprep.subr.mxu0 0.0
  %1871 = vmatpush1.msra.mxu0 0.0
  %1872 = vmatprep.subr.mxu0 0.0
  %1873 = vmatpush1.msra.mxu0 0.0
  %1874 = vmatprep.subr.mxu0 0.0
  %1875 = vmatpush1.msra.mxu0 0.0
  %1876 = vmatprep.subr.mxu0 0.0
  %1877 = vmatpush1.msra.mxu0 0.0
  %1878 = vmatprep.subr.mxu0 0.0
  %1879 = vmatpush1.msra.mxu0 0.0
  %1880 = vmatprep.subr.mxu0 0.0
  %1881 = vmatpush1.msra.mxu0 0.0
  %1882 = vmatprep.subr.mxu0 0.0
  %1883 = vmatpush1.msra.mxu0 0.0
  %1884 = vmatprep.subr.mxu0 0.0
  %1885 = vmatpush1.msra.mxu0 0.0
  %1886 = vmatprep.subr.mxu0 0.0
  %1887 = vmatpush1.msra.mxu0 0.0
  %1888 = vmatprep.subr.mxu0 0.0
  %1889 = vmatpush1.msra.mxu0 0.0
  %1890 = vmatprep.subr.mxu0 0.0
  %1891 = vmatpush1.msra.mxu0 0.0
  %1892 = vmatprep.subr.mxu0 0.0
  %1893 = vmatpush1.msra.mxu0 0.0
  %1894 = vmatprep.subr.mxu0 0.0
  %1895 = vmatpush1.msra.mxu0 0.0
  %1896 = vmatprep.subr.mxu0 0.0
  %1897 = vmatpush1.msra.mxu0 0.0
  %1898 = vmatprep.mubr.f32.mxu0 0.0
  %1899 = vmatmul.mubr.f32.gmra.mrb[0].mxu0 %v1829
  %v1900 = vpop.f32.mrb[0].mxu0
  %v1901 = vadd.f32 0.0, %v1900
  %v1902 = vpop.f32.mrb[0].mxu0
  %1903 = vmatprep.mubr.f32.mxu0 0.0
  %1904 = vmatmul.mubr.f32.gmra.mrb[0].mxu0 %v1832
  %v1905 = vpop.f32.mrb[0].mxu0
  %v1906 = vadd.f32 0.0, %v1905
  %v1907 = vpop.f32.mrb[0].mxu0
  %1908 = vdwg.mxu0
  %v1909 = vadd.f32 %v1906, %v246
  %v1910 = vadd.f32 %v1906, %v251
  %v1912 = vsel %vm253, %v1910, 0
  %1914 = vmatprep.subr.mxu0 0.0
  %1915 = vmatpush1.xpose.msra.mxu0 %v258
  %1916 = vmatprep.subr.mxu0 0.0
  %1917 = vmatpush1.xpose.msra.mxu0 %v261
  %1918 = vmatprep.subr.mxu0 0.0
  %1919 = vmatpush1.xpose.msra.mxu0 %v264
  %1920 = vmatprep.subr.mxu0 0.0
  %1921 = vmatpush1.xpose.msra.mxu0 0.0
  %1922 = vmatprep.subr.mxu0 0.0
  %1923 = vmatpush1.xpose.msra.mxu0 0.0
  %1924 = vmatprep.subr.mxu0 0.0
  %1925 = vmatpush1.xpose.msra.mxu0 0.0
  %1926 = vmatprep.subr.mxu0 0.0
  %1927 = vmatpush1.xpose.msra.mxu0 0.0
  %1928 = vmatprep.subr.mxu0 0.0
  %1929 = vmatpush1.xpose.msra.mxu0 0.0
  %1930 = vmatprep.subr.mxu0 0.0
  %1931 = vmatpush1.xpose.msra.mxu0 0.0
  %1932 = vmatprep.subr.mxu0 0.0
  %1933 = vmatpush1.xpose.msra.mxu0 0.0
  %1934 = vmatprep.subr.mxu0 0.0
  %1935 = vmatpush1.xpose.msra.mxu0 0.0
  %1936 = vmatprep.subr.mxu0 0.0
  %1937 = vmatpush1.xpose.msra.mxu0 0.0
  %1938 = vmatprep.subr.mxu0 0.0
  %1939 = vmatpush1.xpose.msra.mxu0 0.0
  %1940 = vmatprep.subr.mxu0 0.0
  %1941 = vmatpush1.xpose.msra.mxu0 0.0
  %1942 = vmatprep.subr.mxu0 0.0
  %1943 = vmatpush1.xpose.msra.mxu0 0.0
  %1944 = vmatprep.subr.mxu0 0.0
  %1945 = vmatpush1.xpose.msra.mxu0 0.0
  %1946 = vmatprep.subr.mxu0 0.0
  %1947 = vmatpush1.xpose.msra.mxu0 0.0
  %1948 = vmatprep.subr.mxu0 0.0
  %1949 = vmatpush1.xpose.msra.mxu0 0.0
  %1950 = vmatprep.subr.mxu0 0.0
  %1951 = vmatpush1.xpose.msra.mxu0 0.0
  %1952 = vmatprep.subr.mxu0 0.0
  %1953 = vmatpush1.xpose.msra.mxu0 0.0
  %1954 = vmatprep.subr.mxu0 0.0
  %1955 = vmatpush1.xpose.msra.mxu0 0.0
  %1956 = vmatprep.subr.mxu0 0.0
  %1957 = vmatpush1.xpose.msra.mxu0 0.0
  %1958 = vmatprep.subr.mxu0 0.0
  %1959 = vmatpush1.xpose.msra.mxu0 0.0
  %1960 = vmatprep.subr.mxu0 0.0
  %1961 = vmatpush1.xpose.msra.mxu0 0.0
  %1962 = vmatprep.subr.mxu0 0.0
  %1963 = vmatpush1.xpose.msra.mxu0 0.0
  %1964 = vmatprep.subr.mxu0 0.0
  %1965 = vmatpush1.xpose.msra.mxu0 0.0
  %1966 = vmatprep.subr.mxu0 0.0
  %1967 = vmatpush1.xpose.msra.mxu0 0.0
  %1968 = vmatprep.subr.mxu0 0.0
  %1969 = vmatpush1.xpose.msra.mxu0 0.0
  %1970 = vmatprep.subr.mxu0 0.0
  %1971 = vmatpush1.xpose.msra.mxu0 0.0
  %1972 = vmatprep.subr.mxu0 0.0
  %1973 = vmatpush1.xpose.msra.mxu0 0.0
  %1974 = vmatprep.subr.mxu0 0.0
  %1975 = vmatpush1.xpose.msra.mxu0 0.0
  %1976 = vmatprep.subr.mxu0 0.0
  %1977 = vmatpush1.xpose.msra.mxu0 0.0
  %1978 = vmatprep.mubr.f32.mxu0 0.0
  %1979 = vmatmul.mubr.f32.gmra.mrb[0].mxu0 %v1912
  %v1980 = vpop.f32.mrb[0].mxu0
  %v1981 = vadd.f32 0.0, %v1980
  %v1982 = vpop.f32.mrb[0].mxu0
  %1983 = vdwg.mxu0
  %1985 = vrot.lane.b32.xlu0 %v1981, 1
  %v1986 = vpop.permute.xlu0 %1985
  %1988 = vrot.lane.b32.xlu0 %v1981, 2
  %v1989 = vpop.permute.xlu0 %1988
  %1991 = vrot.lane.b32.xlu0 %v1981, 3
  %v1992 = vpop.permute.xlu0 %1991
  %1994 = vrot.lane.b32.xlu0 %v1981, 4
  %v1995 = vpop.permute.xlu0 %1994
  %1997 = vrot.lane.b32.xlu0 %v1981, 5
  %v1998 = vpop.permute.xlu0 %1997
  %2000 = vrot.lane.b32.xlu0 %v1981, 6
  %v2001 = vpop.permute.xlu0 %2000
  %2003 = vrot.lane.b32.xlu0 %v1981, 7
  %v2004 = vpop.permute.xlu0 %2003
  %v2006 = vsel %vm358, %v1981, %v1986
  %v2007 = vsel %vm360, %v2006, %v1989
  %v2008 = vsel %vm362, %v2007, %v1992
  %v2009 = vsel %vm364, %v2008, %v1995
  %v2010 = vsel %vm366, %v2009, %v1998
  %v2011 = vsel %vm368, %v2010, %v2001
  %v2012 = vsel %vm370, %v2011, %v2004
  %2015 = vrot.lane.b32.xlu0 %v1901, 96
  %v2016 = vpop.permute.xlu0 %2015
  %2017 = vrot.lane.b32.xlu0 %v1906, 96
  %v2018 = vpop.permute.xlu0 %2017
  %2020 = vrot.lane.b32.xlu0 %v2012, 121
  %v2021 = vpop.permute.xlu0 %2020
  %v2024 = vsel %vm253, %v1909, 0
  %v2026 = vsel %vm253, %v2016, 0
  %v2028 = vsel %vm253, %v2018, 0
  %2030 = vmatprep.subr.mxu0 0.0
  %2031 = vmatpush1.xpose.msra.mxu0 %v2026
  %2032 = vmatprep.subr.mxu0 0.0
  %2033 = vmatpush1.xpose.msra.mxu0 %v2028
  %2034 = vmatprep.subr.mxu0 0.0
  %2035 = vmatpush1.xpose.msra.mxu0 0.0
  %2036 = vmatprep.subr.mxu0 0.0
  %2037 = vmatpush1.xpose.msra.mxu0 0.0
  %2038 = vmatprep.subr.mxu0 0.0
  %2039 = vmatpush1.xpose.msra.mxu0 0.0
  %2040 = vmatprep.subr.mxu0 0.0
  %2041 = vmatpush1.xpose.msra.mxu0 0.0
  %2042 = vmatprep.subr.mxu0 0.0
  %2043 = vmatpush1.xpose.msra.mxu0 0.0
  %2044 = vmatprep.subr.mxu0 0.0
  %2045 = vmatpush1.xpose.msra.mxu0 0.0
  %2046 = vmatprep.subr.mxu0 0.0
  %2047 = vmatpush1.xpose.msra.mxu0 0.0
  %2048 = vmatprep.subr.mxu0 0.0
  %2049 = vmatpush1.xpose.msra.mxu0 0.0
  %2050 = vmatprep.subr.mxu0 0.0
  %2051 = vmatpush1.xpose.msra.mxu0 0.0
  %2052 = vmatprep.subr.mxu0 0.0
  %2053 = vmatpush1.xpose.msra.mxu0 0.0
  %2054 = vmatprep.subr.mxu0 0.0
  %2055 = vmatpush1.xpose.msra.mxu0 0.0
  %2056 = vmatprep.subr.mxu0 0.0
  %2057 = vmatpush1.xpose.msra.mxu0 0.0
  %2058 = vmatprep.subr.mxu0 0.0
  %2059 = vmatpush1.xpose.msra.mxu0 0.0
  %2060 = vmatprep.subr.mxu0 0.0
  %2061 = vmatpush1.xpose.msra.mxu0 0.0
  %2062 = vmatprep.subr.mxu0 0.0
  %2063 = vmatpush1.xpose.msra.mxu0 0.0
  %2064 = vmatprep.subr.mxu0 0.0
  %2065 = vmatpush1.xpose.msra.mxu0 0.0
  %2066 = vmatprep.subr.mxu0 0.0
  %2067 = vmatpush1.xpose.msra.mxu0 0.0
  %2068 = vmatprep.subr.mxu0 0.0
  %2069 = vmatpush1.xpose.msra.mxu0 0.0
  %2070 = vmatprep.subr.mxu0 0.0
  %2071 = vmatpush1.xpose.msra.mxu0 0.0
  %2072 = vmatprep.subr.mxu0 0.0
  %2073 = vmatpush1.xpose.msra.mxu0 0.0
  %2074 = vmatprep.subr.mxu0 0.0
  %2075 = vmatpush1.xpose.msra.mxu0 0.0
  %2076 = vmatprep.subr.mxu0 0.0
  %2077 = vmatpush1.xpose.msra.mxu0 0.0
  %2078 = vmatprep.subr.mxu0 0.0
  %2079 = vmatpush1.xpose.msra.mxu0 0.0
  %2080 = vmatprep.subr.mxu0 0.0
  %2081 = vmatpush1.xpose.msra.mxu0 0.0
  %2082 = vmatprep.subr.mxu0 0.0
  %2083 = vmatpush1.xpose.msra.mxu0 0.0
  %2084 = vmatprep.subr.mxu0 0.0
  %2085 = vmatpush1.xpose.msra.mxu0 0.0
  %2086 = vmatprep.subr.mxu0 0.0
  %2087 = vmatpush1.xpose.msra.mxu0 0.0
  %2088 = vmatprep.subr.mxu0 0.0
  %2089 = vmatpush1.xpose.msra.mxu0 0.0
  %2090 = vmatprep.subr.mxu0 0.0
  %2091 = vmatpush1.xpose.msra.mxu0 0.0
  %2092 = vmatprep.subr.mxu0 0.0
  %2093 = vmatpush1.xpose.msra.mxu0 0.0
  %2094 = vmatprep.mubr.f32.mxu0 0.0
  %2095 = vmatmul.mubr.f32.gmra.mrb[0].mxu0 %v2024
  %v2096 = vpop.f32.mrb[0].mxu0
  %v2097 = vadd.f32 %v2021, %v2096
  %v2098 = vpop.f32.mrb[0].mxu0
  %2099 = vdwg.mxu0
  %v2100 = vmul.f32 %v2097, 0.35355338
  %v2101 = vadd.f32 %v2100, %v153
  %v2102 = vsel %vm461, %v2101, -inf
  %2103 = vmax.xlane.f32.xlu0 %v2102
  %v2104 = vpop.xlane.xlu0 %2103
  %v2105 = vsub.f32 %v2101, %v2104
  %v2106 = vmul.f32 %v2105, 1.442695
  %v2107 = vpow.pop %v2106
  %v2108 = vsel %vm461, %v2107, 0.0
  %2109 = vadd.xlane.f32.xlu0 %v2108
  %v2110 = vpop.xlane.xlu0 %2109
  %v2111 = vrcp.pop %v2110
  %v2112 = vmul.f32 %v2107, %v2111
  %2113 = vrot.lane.b32.xlu0 %v1901, 64
  %v2114 = vpop.permute.xlu0 %2113
  %2115 = vrot.lane.b32.xlu0 %v1906, 64
  %v2116 = vpop.permute.xlu0 %2115
  %v2120 = vsel %vm461, %v2112, 0
  %2122 = vmatprep.subr.mxu0 0.0
  %2123 = vmatpush1.msra.mxu0 %v2114
  %2124 = vmatprep.subr.mxu0 0.0
  %2125 = vmatpush1.msra.mxu0 %v2116
  %2126 = vmatprep.subr.mxu0 0.0
  %2127 = vmatpush1.msra.mxu0 0.0
  %2128 = vmatprep.subr.mxu0 0.0
  %2129 = vmatpush1.msra.mxu0 0.0
  %2130 = vmatprep.subr.mxu0 0.0
  %2131 = vmatpush1.msra.mxu0 0.0
  %2132 = vmatprep.subr.mxu0 0.0
  %2133 = vmatpush1.msra.mxu0 0.0
  %2134 = vmatprep.subr.mxu0 0.0
  %2135 = vmatpush1.msra.mxu0 0.0
  %2136 = vmatprep.subr.mxu0 0.0
  %2137 = vmatpush1.msra.mxu0 0.0
  %2138 = vmatprep.subr.mxu0 0.0
  %2139 = vmatpush1.msra.mxu0 0.0
  %2140 = vmatprep.subr.mxu0 0.0
  %2141 = vmatpush1.msra.mxu0 0.0
  %2142 = vmatprep.subr.mxu0 0.0
  %2143 = vmatpush1.msra.mxu0 0.0
  %2144 = vmatprep.subr.mxu0 0.0
  %2145 = vmatpush1.msra.mxu0 0.0
  %2146 = vmatprep.subr.mxu0 0.0
  %2147 = vmatpush1.msra.mxu0 0.0
  %2148 = vmatprep.subr.mxu0 0.0
  %2149 = vmatpush1.msra.mxu0 0.0
  %2150 = vmatprep.subr.mxu0 0.0
  %2151 = vmatpush1.msra.mxu0 0.0
  %2152 = vmatprep.subr.mxu0 0.0
  %2153 = vmatpush1.msra.mxu0 0.0
  %2154 = vmatprep.subr.mxu0 0.0
  %2155 = vmatpush1.msra.mxu0 0.0
  %2156 = vmatprep.subr.mxu0 0.0
  %2157 = vmatpush1.msra.mxu0 0.0
  %2158 = vmatprep.subr.mxu0 0.0
  %2159 = vmatpush1.msra.mxu0 0.0
  %2160 = vmatprep.subr.mxu0 0.0
  %2161 = vmatpush1.msra.mxu0 0.0
  %2162 = vmatprep.subr.mxu0 0.0
  %2163 = vmatpush1.msra.mxu0 0.0
  %2164 = vmatprep.subr.mxu0 0.0
  %2165 = vmatpush1.msra.mxu0 0.0
  %2166 = vmatprep.subr.mxu0 0.0
  %2167 = vmatpush1.msra.mxu0 0.0
  %2168 = vmatprep.subr.mxu0 0.0
  %2169 = vmatpush1.msra.mxu0 0.0
  %2170 = vmatprep.subr.mxu0 0.0
  %2171 = vmatpush1.msra.mxu0 0.0
  %2172 = vmatprep.subr.mxu0 0.0
  %2173 = vmatpush1.msra.mxu0 0.0
  %2174 = vmatprep.subr.mxu0 0.0
  %2175 = vmatpush1.msra.mxu0 0.0
  %2176 = vmatprep.subr.mxu0 0.0
  %2177 = vmatpush1.msra.mxu0 0.0
  %2178 = vmatprep.subr.mxu0 0.0
  %2179 = vmatpush1.msra.mxu0 0.0
  %2180 = vmatprep.subr.mxu0 0.0
  %2181 = vmatpush1.msra.mxu0 0.0
  %2182 = vmatprep.subr.mxu0 0.0
  %2183 = vmatpush1.msra.mxu0 0.0
  %2184 = vmatprep.subr.mxu0 0.0
  %2185 = vmatpush1.msra.mxu0 0.0
  %2186 = vmatprep.mubr.f32.mxu0 0.0
  %2187 = vmatmul.mubr.f32.gmra.mrb[0].mxu0 %v2120
  %v2188 = vpop.f32.mrb[0].mxu0
  %v2189 = vadd.f32 0.0, %v2188
  %v2190 = vpop.f32.mrb[0].mxu0
  %2191 = vdwg.mxu0
  %v2192 = vadd.f32 %v1906, %v558
  %v2193 = vadd.f32 %v1906, %v567
  %2195 = vrot.lane.b32.xlu0 %v2193, 120
  %v2196 = vpop.permute.xlu0 %2195
  %v2197 = vsel %vm253, %v2196, 0
  %2199 = vmatprep.subr.mxu0 0.0
  %2200 = vmatpush1.xpose.msra.mxu0 %v581
  %2201 = vmatprep.subr.mxu0 0.0
  %2202 = vmatpush1.xpose.msra.mxu0 %v583
  %2203 = vmatprep.subr.mxu0 0.0
  %2204 = vmatpush1.xpose.msra.mxu0 %v585
  %2205 = vmatprep.subr.mxu0 0.0
  %2206 = vmatpush1.xpose.msra.mxu0 0.0
  %2207 = vmatprep.subr.mxu0 0.0
  %2208 = vmatpush1.xpose.msra.mxu0 0.0
  %2209 = vmatprep.subr.mxu0 0.0
  %2210 = vmatpush1.xpose.msra.mxu0 0.0
  %2211 = vmatprep.subr.mxu0 0.0
  %2212 = vmatpush1.xpose.msra.mxu0 0.0
  %2213 = vmatprep.subr.mxu0 0.0
  %2214 = vmatpush1.xpose.msra.mxu0 0.0
  %2215 = vmatprep.subr.mxu0 0.0
  %2216 = vmatpush1.xpose.msra.mxu0 0.0
  %2217 = vmatprep.subr.mxu0 0.0
  %2218 = vmatpush1.xpose.msra.mxu0 0.0
  %2219 = vmatprep.subr.mxu0 0.0
  %2220 = vmatpush1.xpose.msra.mxu0 0.0
  %2221 = vmatprep.subr.mxu0 0.0
  %2222 = vmatpush1.xpose.msra.mxu0 0.0
  %2223 = vmatprep.subr.mxu0 0.0
  %2224 = vmatpush1.xpose.msra.mxu0 0.0
  %2225 = vmatprep.subr.mxu0 0.0
  %2226 = vmatpush1.xpose.msra.mxu0 0.0
  %2227 = vmatprep.subr.mxu0 0.0
  %2228 = vmatpush1.xpose.msra.mxu0 0.0
  %2229 = vmatprep.subr.mxu0 0.0
  %2230 = vmatpush1.xpose.msra.mxu0 0.0
  %2231 = vmatprep.subr.mxu0 0.0
  %2232 = vmatpush1.xpose.msra.mxu0 0.0
  %2233 = vmatprep.subr.mxu0 0.0
  %2234 = vmatpush1.xpose.msra.mxu0 0.0
  %2235 = vmatprep.subr.mxu0 0.0
  %2236 = vmatpush1.xpose.msra.mxu0 0.0
  %2237 = vmatprep.subr.mxu0 0.0
  %2238 = vmatpush1.xpose.msra.mxu0 0.0
  %2239 = vmatprep.subr.mxu0 0.0
  %2240 = vmatpush1.xpose.msra.mxu0 0.0
  %2241 = vmatprep.subr.mxu0 0.0
  %2242 = vmatpush1.xpose.msra.mxu0 0.0
  %2243 = vmatprep.subr.mxu0 0.0
  %2244 = vmatpush1.xpose.msra.mxu0 0.0
  %2245 = vmatprep.subr.mxu0 0.0
  %2246 = vmatpush1.xpose.msra.mxu0 0.0
  %2247 = vmatprep.subr.mxu0 0.0
  %2248 = vmatpush1.xpose.msra.mxu0 0.0
  %2249 = vmatprep.subr.mxu0 0.0
  %2250 = vmatpush1.xpose.msra.mxu0 0.0
  %2251 = vmatprep.subr.mxu0 0.0
  %2252 = vmatpush1.xpose.msra.mxu0 0.0
  %2253 = vmatprep.subr.mxu0 0.0
  %2254 = vmatpush1.xpose.msra.mxu0 0.0
  %2255 = vmatprep.subr.mxu0 0.0
  %2256 = vmatpush1.xpose.msra.mxu0 0.0
  %2257 = vmatprep.subr.mxu0 0.0
  %2258 = vmatpush1.xpose.msra.mxu0 0.0
  %2259 = vmatprep.subr.mxu0 0.0
  %2260 = vmatpush1.xpose.msra.mxu0 0.0
  %2261 = vmatprep.subr.mxu0 0.0
  %2262 = vmatpush1.xpose.msra.mxu0 0.0
  %2263 = vmatprep.mubr.f32.mxu0 0.0
  %2264 = vmatmul.mubr.f32.gmra.mrb[0].mxu0 %v2197
  %v2265 = vpop.f32.mrb[0].mxu0
  %v2266 = vadd.f32 0.0, %v2265
  %v2267 = vpop.f32.mrb[0].mxu0
  %2268 = vdwg.mxu0
  %2270 = vrot.lane.b32.xlu0 %v2266, 1
  %v2271 = vpop.permute.xlu0 %2270
  %2273 = vrot.lane.b32.xlu0 %v2266, 2
  %v2274 = vpop.permute.xlu0 %2273
  %2276 = vrot.lane.b32.xlu0 %v2266, 3
  %v2277 = vpop.permute.xlu0 %2276
  %2279 = vrot.lane.b32.xlu0 %v2266, 4
  %v2280 = vpop.permute.xlu0 %2279
  %2282 = vrot.lane.b32.xlu0 %v2266, 5
  %v2283 = vpop.permute.xlu0 %2282
  %2285 = vrot.lane.b32.xlu0 %v2266, 6
  %v2286 = vpop.permute.xlu0 %2285
  %2288 = vrot.lane.b32.xlu0 %v2266, 7
  %v2289 = vpop.permute.xlu0 %2288
  %v2291 = vsel %vm358, %v2266, %v2271
  %v2292 = vsel %vm360, %v2291, %v2274
  %v2293 = vsel %vm362, %v2292, %v2277
  %v2294 = vsel %vm364, %v2293, %v2280
  %v2295 = vsel %vm366, %v2294, %v2283
  %v2296 = vsel %vm368, %v2295, %v2286
  %v2297 = vsel %vm370, %v2296, %v2289
  %2299 = vrot.lane.b32.xlu0 %v2192, 120
  %v2300 = vpop.permute.xlu0 %2299
  %2301 = vrot.lane.b32.xlu0 %v1901, 88
  %v2302 = vpop.permute.xlu0 %2301
  %2303 = vrot.lane.b32.xlu0 %v1906, 88
  %v2304 = vpop.permute.xlu0 %2303
  %2306 = vrot.lane.b32.xlu0 %v2297, 121
  %v2307 = vpop.permute.xlu0 %2306
  %v2309 = vsel %vm253, %v2300, 0
  %v2311 = vsel %vm253, %v2302, 0
  %v2313 = vsel %vm253, %v2304, 0
  %2315 = vmatprep.subr.mxu0 0.0
  %2316 = vmatpush1.xpose.msra.mxu0 %v2311
  %2317 = vmatprep.subr.mxu0 0.0
  %2318 = vmatpush1.xpose.msra.mxu0 %v2313
  %2319 = vmatprep.subr.mxu0 0.0
  %2320 = vmatpush1.xpose.msra.mxu0 0.0
  %2321 = vmatprep.subr.mxu0 0.0
  %2322 = vmatpush1.xpose.msra.mxu0 0.0
  %2323 = vmatprep.subr.mxu0 0.0
  %2324 = vmatpush1.xpose.msra.mxu0 0.0
  %2325 = vmatprep.subr.mxu0 0.0
  %2326 = vmatpush1.xpose.msra.mxu0 0.0
  %2327 = vmatprep.subr.mxu0 0.0
  %2328 = vmatpush1.xpose.msra.mxu0 0.0
  %2329 = vmatprep.subr.mxu0 0.0
  %2330 = vmatpush1.xpose.msra.mxu0 0.0
  %2331 = vmatprep.subr.mxu0 0.0
  %2332 = vmatpush1.xpose.msra.mxu0 0.0
  %2333 = vmatprep.subr.mxu0 0.0
  %2334 = vmatpush1.xpose.msra.mxu0 0.0
  %2335 = vmatprep.subr.mxu0 0.0
  %2336 = vmatpush1.xpose.msra.mxu0 0.0
  %2337 = vmatprep.subr.mxu0 0.0
  %2338 = vmatpush1.xpose.msra.mxu0 0.0
  %2339 = vmatprep.subr.mxu0 0.0
  %2340 = vmatpush1.xpose.msra.mxu0 0.0
  %2341 = vmatprep.subr.mxu0 0.0
  %2342 = vmatpush1.xpose.msra.mxu0 0.0
  %2343 = vmatprep.subr.mxu0 0.0
  %2344 = vmatpush1.xpose.msra.mxu0 0.0
  %2345 = vmatprep.subr.mxu0 0.0
  %2346 = vmatpush1.xpose.msra.mxu0 0.0
  %2347 = vmatprep.subr.mxu0 0.0
  %2348 = vmatpush1.xpose.msra.mxu0 0.0
  %2349 = vmatprep.subr.mxu0 0.0
  %2350 = vmatpush1.xpose.msra.mxu0 0.0
  %2351 = vmatprep.subr.mxu0 0.0
  %2352 = vmatpush1.xpose.msra.mxu0 0.0
  %2353 = vmatprep.subr.mxu0 0.0
  %2354 = vmatpush1.xpose.msra.mxu0 0.0
  %2355 = vmatprep.subr.mxu0 0.0
  %2356 = vmatpush1.xpose.msra.mxu0 0.0
  %2357 = vmatprep.subr.mxu0 0.0
  %2358 = vmatpush1.xpose.msra.mxu0 0.0
  %2359 = vmatprep.subr.mxu0 0.0
  %2360 = vmatpush1.xpose.msra.mxu0 0.0
  %2361 = vmatprep.subr.mxu0 0.0
  %2362 = vmatpush1.xpose.msra.mxu0 0.0
  %2363 = vmatprep.subr.mxu0 0.0
  %2364 = vmatpush1.xpose.msra.mxu0 0.0
  %2365 = vmatprep.subr.mxu0 0.0
  %2366 = vmatpush1.xpose.msra.mxu0 0.0
  %2367 = vmatprep.subr.mxu0 0.0
  %2368 = vmatpush1.xpose.msra.mxu0 0.0
  %2369 = vmatprep.subr.mxu0 0.0
  %2370 = vmatpush1.xpose.msra.mxu0 0.0
  %2371 = vmatprep.subr.mxu0 0.0
  %2372 = vmatpush1.xpose.msra.mxu0 0.0
  %2373 = vmatprep.subr.mxu0 0.0
  %2374 = vmatpush1.xpose.msra.mxu0 0.0
  %2375 = vmatprep.subr.mxu0 0.0
  %2376 = vmatpush1.xpose.msra.mxu0 0.0
  %2377 = vmatprep.subr.mxu0 0.0
  %2378 = vmatpush1.xpose.msra.mxu0 0.0
  %2379 = vmatprep.mubr.f32.mxu0 0.0
  %2380 = vmatmul.mubr.f32.gmra.mrb[0].mxu0 %v2309
  %v2381 = vpop.f32.mrb[0].mxu0
  %v2382 = vadd.f32 %v2307, %v2381
  %v2383 = vpop.f32.mrb[0].mxu0
  %2384 = vdwg.mxu0
  %v2385 = vmul.f32 %v2382, 0.35355338
  %v2386 = vadd.f32 %v2385, %v153
  %v2387 = vsel %vm461, %v2386, -inf
  %2388 = vmax.xlane.f32.xlu0 %v2387
  %v2389 = vpop.xlane.xlu0 %2388
  %v2390 = vsub.f32 %v2386, %v2389
  %v2391 = vmul.f32 %v2390, 1.442695
  %v2392 = vpow.pop %v2391
  %v2393 = vsel %vm461, %v2392, 0.0
  %2394 = vadd.xlane.f32.xlu0 %v2393
  %v2395 = vpop.xlane.xlu0 %2394
  %v2396 = vrcp.pop %v2395
  %v2397 = vmul.f32 %v2392, %v2396
  %2398 = vrot.lane.b32.xlu0 %v1901, 56
  %v2399 = vpop.permute.xlu0 %2398
  %2400 = vrot.lane.b32.xlu0 %v1906, 56
  %v2401 = vpop.permute.xlu0 %2400
  %v2405 = vsel %vm461, %v2397, 0
  %2407 = vmatprep.subr.mxu0 0.0
  %2408 = vmatpush1.msra.mxu0 %v2399
  %2409 = vmatprep.subr.mxu0 0.0
  %2410 = vmatpush1.msra.mxu0 %v2401
  %2411 = vmatprep.subr.mxu0 0.0
  %2412 = vmatpush1.msra.mxu0 0.0
  %2413 = vmatprep.subr.mxu0 0.0
  %2414 = vmatpush1.msra.mxu0 0.0
  %2415 = vmatprep.subr.mxu0 0.0
  %2416 = vmatpush1.msra.mxu0 0.0
  %2417 = vmatprep.subr.mxu0 0.0
  %2418 = vmatpush1.msra.mxu0 0.0
  %2419 = vmatprep.subr.mxu0 0.0
  %2420 = vmatpush1.msra.mxu0 0.0
  %2421 = vmatprep.subr.mxu0 0.0
  %2422 = vmatpush1.msra.mxu0 0.0
  %2423 = vmatprep.subr.mxu0 0.0
  %2424 = vmatpush1.msra.mxu0 0.0
  %2425 = vmatprep.subr.mxu0 0.0
  %2426 = vmatpush1.msra.mxu0 0.0
  %2427 = vmatprep.subr.mxu0 0.0
  %2428 = vmatpush1.msra.mxu0 0.0
  %2429 = vmatprep.subr.mxu0 0.0
  %2430 = vmatpush1.msra.mxu0 0.0
  %2431 = vmatprep.subr.mxu0 0.0
  %2432 = vmatpush1.msra.mxu0 0.0
  %2433 = vmatprep.subr.mxu0 0.0
  %2434 = vmatpush1.msra.mxu0 0.0
  %2435 = vmatprep.subr.mxu0 0.0
  %2436 = vmatpush1.msra.mxu0 0.0
  %2437 = vmatprep.subr.mxu0 0.0
  %2438 = vmatpush1.msra.mxu0 0.0
  %2439 = vmatprep.subr.mxu0 0.0
  %2440 = vmatpush1.msra.mxu0 0.0
  %2441 = vmatprep.subr.mxu0 0.0
  %2442 = vmatpush1.msra.mxu0 0.0
  %2443 = vmatprep.subr.mxu0 0.0
  %2444 = vmatpush1.msra.mxu0 0.0
  %2445 = vmatprep.subr.mxu0 0.0
  %2446 = vmatpush1.msra.mxu0 0.0
  %2447 = vmatprep.subr.mxu0 0.0
  %2448 = vmatpush1.msra.mxu0 0.0
  %2449 = vmatprep.subr.mxu0 0.0
  %2450 = vmatpush1.msra.mxu0 0.0
  %2451 = vmatprep.subr.mxu0 0.0
  %2452 = vmatpush1.msra.mxu0 0.0
  %2453 = vmatprep.subr.mxu0 0.0
  %2454 = vmatpush1.msra.mxu0 0.0
  %2455 = vmatprep.subr.mxu0 0.0
  %2456 = vmatpush1.msra.mxu0 0.0
  %2457 = vmatprep.subr.mxu0 0.0
  %2458 = vmatpush1.msra.mxu0 0.0
  %2459 = vmatprep.subr.mxu0 0.0
  %2460 = vmatpush1.msra.mxu0 0.0
  %2461 = vmatprep.subr.mxu0 0.0
  %2462 = vmatpush1.msra.mxu0 0.0
  %2463 = vmatprep.subr.mxu0 0.0
  %2464 = vmatpush1.msra.mxu0 0.0
  %2465 = vmatprep.subr.mxu0 0.0
  %2466 = vmatpush1.msra.mxu0 0.0
  %2467 = vmatprep.subr.mxu0 0.0
  %2468 = vmatpush1.msra.mxu0 0.0
  %2469 = vmatprep.subr.mxu0 0.0
  %2470 = vmatpush1.msra.mxu0 0.0
  %2471 = vmatprep.mubr.f32.mxu0 0.0
  %2472 = vmatmul.mubr.f32.gmra.mrb[0].mxu0 %v2405
  %v2473 = vpop.f32.mrb[0].mxu0
  %v2474 = vadd.f32 0.0, %v2473
  %v2475 = vpop.f32.mrb[0].mxu0
  %2476 = vdwg.mxu0
  %v2477 = vadd.f32 %v1906, %v871
  %v2478 = vadd.f32 %v1906, %v880
  %2480 = vrot.lane.b32.xlu0 %v2478, 112
  %v2481 = vpop.permute.xlu0 %2480
  %v2482 = vsel %vm253, %v2481, 0
  %2484 = vmatprep.subr.mxu0 0.0
  %2485 = vmatpush1.xpose.msra.mxu0 %v894
  %2486 = vmatprep.subr.mxu0 0.0
  %2487 = vmatpush1.xpose.msra.mxu0 %v896
  %2488 = vmatprep.subr.mxu0 0.0
  %2489 = vmatpush1.xpose.msra.mxu0 %v898
  %2490 = vmatprep.subr.mxu0 0.0
  %2491 = vmatpush1.xpose.msra.mxu0 0.0
  %2492 = vmatprep.subr.mxu0 0.0
  %2493 = vmatpush1.xpose.msra.mxu0 0.0
  %2494 = vmatprep.subr.mxu0 0.0
  %2495 = vmatpush1.xpose.msra.mxu0 0.0
  %2496 = vmatprep.subr.mxu0 0.0
  %2497 = vmatpush1.xpose.msra.mxu0 0.0
  %2498 = vmatprep.subr.mxu0 0.0
  %2499 = vmatpush1.xpose.msra.mxu0 0.0
  %2500 = vmatprep.subr.mxu0 0.0
  %2501 = vmatpush1.xpose.msra.mxu0 0.0
  %2502 = vmatprep.subr.mxu0 0.0
  %2503 = vmatpush1.xpose.msra.mxu0 0.0
  %2504 = vmatprep.subr.mxu0 0.0
  %2505 = vmatpush1.xpose.msra.mxu0 0.0
  %2506 = vmatprep.subr.mxu0 0.0
  %2507 = vmatpush1.xpose.msra.mxu0 0.0
  %2508 = vmatprep.subr.mxu0 0.0
  %2509 = vmatpush1.xpose.msra.mxu0 0.0
  %2510 = vmatprep.subr.mxu0 0.0
  %2511 = vmatpush1.xpose.msra.mxu0 0.0
  %2512 = vmatprep.subr.mxu0 0.0
  %2513 = vmatpush1.xpose.msra.mxu0 0.0
  %2514 = vmatprep.subr.mxu0 0.0
  %2515 = vmatpush1.xpose.msra.mxu0 0.0
  %2516 = vmatprep.subr.mxu0 0.0
  %2517 = vmatpush1.xpose.msra.mxu0 0.0
  %2518 = vmatprep.subr.mxu0 0.0
  %2519 = vmatpush1.xpose.msra.mxu0 0.0
  %2520 = vmatprep.subr.mxu0 0.0
  %2521 = vmatpush1.xpose.msra.mxu0 0.0
  %2522 = vmatprep.subr.mxu0 0.0
  %2523 = vmatpush1.xpose.msra.mxu0 0.0
  %2524 = vmatprep.subr.mxu0 0.0
  %2525 = vmatpush1.xpose.msra.mxu0 0.0
  %2526 = vmatprep.subr.mxu0 0.0
  %2527 = vmatpush1.xpose.msra.mxu0 0.0
  %2528 = vmatprep.subr.mxu0 0.0
  %2529 = vmatpush1.xpose.msra.mxu0 0.0
  %2530 = vmatprep.subr.mxu0 0.0
  %2531 = vmatpush1.xpose.msra.mxu0 0.0
  %2532 = vmatprep.subr.mxu0 0.0
  %2533 = vmatpush1.xpose.msra.mxu0 0.0
  %2534 = vmatprep.subr.mxu0 0.0
  %2535 = vmatpush1.xpose.msra.mxu0 0.0
  %2536 = vmatprep.subr.mxu0 0.0
  %2537 = vmatpush1.xpose.msra.mxu0 0.0
  %2538 = vmatprep.subr.mxu0 0.0
  %2539 = vmatpush1.xpose.msra.mxu0 0.0
  %2540 = vmatprep.subr.mxu0 0.0
  %2541 = vmatpush1.xpose.msra.mxu0 0.0
  %2542 = vmatprep.subr.mxu0 0.0
  %2543 = vmatpush1.xpose.msra.mxu0 0.0
  %2544 = vmatprep.subr.mxu0 0.0
  %2545 = vmatpush1.xpose.msra.mxu0 0.0
  %2546 = vmatprep.subr.mxu0 0.0
  %2547 = vmatpush1.xpose.msra.mxu0 0.0
  %2548 = vmatprep.mubr.f32.mxu0 0.0
  %2549 = vmatmul.mubr.f32.gmra.mrb[0].mxu0 %v2482
  %v2550 = vpop.f32.mrb[0].mxu0
  %v2551 = vadd.f32 0.0, %v2550
  %v2552 = vpop.f32.mrb[0].mxu0
  %2553 = vdwg.mxu0
  %2555 = vrot.lane.b32.xlu0 %v2551, 1
  %v2556 = vpop.permute.xlu0 %2555
  %2558 = vrot.lane.b32.xlu0 %v2551, 2
  %v2559 = vpop.permute.xlu0 %2558
  %2561 = vrot.lane.b32.xlu0 %v2551, 3
  %v2562 = vpop.permute.xlu0 %2561
  %2564 = vrot.lane.b32.xlu0 %v2551, 4
  %v2565 = vpop.permute.xlu0 %2564
  %2567 = vrot.lane.b32.xlu0 %v2551, 5
  %v2568 = vpop.permute.xlu0 %2567
  %2570 = vrot.lane.b32.xlu0 %v2551, 6
  %v2571 = vpop.permute.xlu0 %2570
  %2573 = vrot.lane.b32.xlu0 %v2551, 7
  %v2574 = vpop.permute.xlu0 %2573
  %v2576 = vsel %vm358, %v2551, %v2556
  %v2577 = vsel %vm360, %v2576, %v2559
  %v2578 = vsel %vm362, %v2577, %v2562
  %v2579 = vsel %vm364, %v2578, %v2565
  %v2580 = vsel %vm366, %v2579, %v2568
  %v2581 = vsel %vm368, %v2580, %v2571
  %v2582 = vsel %vm370, %v2581, %v2574
  %2584 = vrot.lane.b32.xlu0 %v2477, 112
  %v2585 = vpop.permute.xlu0 %2584
  %2586 = vrot.lane.b32.xlu0 %v1901, 80
  %v2587 = vpop.permute.xlu0 %2586
  %2588 = vrot.lane.b32.xlu0 %v1906, 80
  %v2589 = vpop.permute.xlu0 %2588
  %2591 = vrot.lane.b32.xlu0 %v2582, 121
  %v2592 = vpop.permute.xlu0 %2591
  %v2594 = vsel %vm253, %v2585, 0
  %v2596 = vsel %vm253, %v2587, 0
  %v2598 = vsel %vm253, %v2589, 0
  %2600 = vmatprep.subr.mxu0 0.0
  %2601 = vmatpush1.xpose.msra.mxu0 %v2596
  %2602 = vmatprep.subr.mxu0 0.0
  %2603 = vmatpush1.xpose.msra.mxu0 %v2598
  %2604 = vmatprep.subr.mxu0 0.0
  %2605 = vmatpush1.xpose.msra.mxu0 0.0
  %2606 = vmatprep.subr.mxu0 0.0
  %2607 = vmatpush1.xpose.msra.mxu0 0.0
  %2608 = vmatprep.subr.mxu0 0.0
  %2609 = vmatpush1.xpose.msra.mxu0 0.0
  %2610 = vmatprep.subr.mxu0 0.0
  %2611 = vmatpush1.xpose.msra.mxu0 0.0
  %2612 = vmatprep.subr.mxu0 0.0
  %2613 = vmatpush1.xpose.msra.mxu0 0.0
  %2614 = vmatprep.subr.mxu0 0.0
  %2615 = vmatpush1.xpose.msra.mxu0 0.0
  %2616 = vmatprep.subr.mxu0 0.0
  %2617 = vmatpush1.xpose.msra.mxu0 0.0
  %2618 = vmatprep.subr.mxu0 0.0
  %2619 = vmatpush1.xpose.msra.mxu0 0.0
  %2620 = vmatprep.subr.mxu0 0.0
  %2621 = vmatpush1.xpose.msra.mxu0 0.0
  %2622 = vmatprep.subr.mxu0 0.0
  %2623 = vmatpush1.xpose.msra.mxu0 0.0
  %2624 = vmatprep.subr.mxu0 0.0
  %2625 = vmatpush1.xpose.msra.mxu0 0.0
  %2626 = vmatprep.subr.mxu0 0.0
  %2627 = vmatpush1.xpose.msra.mxu0 0.0
  %2628 = vmatprep.subr.mxu0 0.0
  %2629 = vmatpush1.xpose.msra.mxu0 0.0
  %2630 = vmatprep.subr.mxu0 0.0
  %2631 = vmatpush1.xpose.msra.mxu0 0.0
  %2632 = vmatprep.subr.mxu0 0.0
  %2633 = vmatpush1.xpose.msra.mxu0 0.0
  %2634 = vmatprep.subr.mxu0 0.0
  %2635 = vmatpush1.xpose.msra.mxu0 0.0
  %2636 = vmatprep.subr.mxu0 0.0
  %2637 = vmatpush1.xpose.msra.mxu0 0.0
  %2638 = vmatprep.subr.mxu0 0.0
  %2639 = vmatpush1.xpose.msra.mxu0 0.0
  %2640 = vmatprep.subr.mxu0 0.0
  %2641 = vmatpush1.xpose.msra.mxu0 0.0
  %2642 = vmatprep.subr.mxu0 0.0
  %2643 = vmatpush1.xpose.msra.mxu0 0.0
  %2644 = vmatprep.subr.mxu0 0.0
  %2645 = vmatpush1.xpose.msra.mxu0 0.0
  %2646 = vmatprep.subr.mxu0 0.0
  %2647 = vmatpush1.xpose.msra.mxu0 0.0
  %2648 = vmatprep.subr.mxu0 0.0
  %2649 = vmatpush1.xpose.msra.mxu0 0.0
  %2650 = vmatprep.subr.mxu0 0.0
  %2651 = vmatpush1.xpose.msra.mxu0 0.0
  %2652 = vmatprep.subr.mxu0 0.0
  %2653 = vmatpush1.xpose.msra.mxu0 0.0
  %2654 = vmatprep.subr.mxu0 0.0
  %2655 = vmatpush1.xpose.msra.mxu0 0.0
  %2656 = vmatprep.subr.mxu0 0.0
  %2657 = vmatpush1.xpose.msra.mxu0 0.0
  %2658 = vmatprep.subr.mxu0 0.0
  %2659 = vmatpush1.xpose.msra.mxu0 0.0
  %2660 = vmatprep.subr.mxu0 0.0
  %2661 = vmatpush1.xpose.msra.mxu0 0.0
  %2662 = vmatprep.subr.mxu0 0.0
  %2663 = vmatpush1.xpose.msra.mxu0 0.0
  %2664 = vmatprep.mubr.f32.mxu0 0.0
  %2665 = vmatmul.mubr.f32.gmra.mrb[0].mxu0 %v2594
  %v2666 = vpop.f32.mrb[0].mxu0
  %v2667 = vadd.f32 %v2592, %v2666
  %v2668 = vpop.f32.mrb[0].mxu0
  %2669 = vdwg.mxu0
  %v2670 = vmul.f32 %v2667, 0.35355338
  %v2671 = vadd.f32 %v2670, %v153
  %v2672 = vsel %vm461, %v2671, -inf
  %2673 = vmax.xlane.f32.xlu0 %v2672
  %v2674 = vpop.xlane.xlu0 %2673
  %v2675 = vsub.f32 %v2671, %v2674
  %v2676 = vmul.f32 %v2675, 1.442695
  %v2677 = vpow.pop %v2676
  %v2678 = vsel %vm461, %v2677, 0.0
  %2679 = vadd.xlane.f32.xlu0 %v2678
  %v2680 = vpop.xlane.xlu0 %2679
  %v2681 = vrcp.pop %v2680
  %v2682 = vmul.f32 %v2677, %v2681
  %2683 = vrot.lane.b32.xlu0 %v1901, 48
  %v2684 = vpop.permute.xlu0 %2683
  %2685 = vrot.lane.b32.xlu0 %v1906, 48
  %v2686 = vpop.permute.xlu0 %2685
  %v2690 = vsel %vm461, %v2682, 0
  %2692 = vmatprep.subr.mxu0 0.0
  %2693 = vmatpush1.msra.mxu0 %v2684
  %2694 = vmatprep.subr.mxu0 0.0
  %2695 = vmatpush1.msra.mxu0 %v2686
  %2696 = vmatprep.subr.mxu0 0.0
  %2697 = vmatpush1.msra.mxu0 0.0
  %2698 = vmatprep.subr.mxu0 0.0
  %2699 = vmatpush1.msra.mxu0 0.0
  %2700 = vmatprep.subr.mxu0 0.0
  %2701 = vmatpush1.msra.mxu0 0.0
  %2702 = vmatprep.subr.mxu0 0.0
  %2703 = vmatpush1.msra.mxu0 0.0
  %2704 = vmatprep.subr.mxu0 0.0
  %2705 = vmatpush1.msra.mxu0 0.0
  %2706 = vmatprep.subr.mxu0 0.0
  %2707 = vmatpush1.msra.mxu0 0.0
  %2708 = vmatprep.subr.mxu0 0.0
  %2709 = vmatpush1.msra.mxu0 0.0
  %2710 = vmatprep.subr.mxu0 0.0
  %2711 = vmatpush1.msra.mxu0 0.0
  %2712 = vmatprep.subr.mxu0 0.0
  %2713 = vmatpush1.msra.mxu0 0.0
  %2714 = vmatprep.subr.mxu0 0.0
  %2715 = vmatpush1.msra.mxu0 0.0
  %2716 = vmatprep.subr.mxu0 0.0
  %2717 = vmatpush1.msra.mxu0 0.0
  %2718 = vmatprep.subr.mxu0 0.0
  %2719 = vmatpush1.msra.mxu0 0.0
  %2720 = vmatprep.subr.mxu0 0.0
  %2721 = vmatpush1.msra.mxu0 0.0
  %2722 = vmatprep.subr.mxu0 0.0
  %2723 = vmatpush1.msra.mxu0 0.0
  %2724 = vmatprep.subr.mxu0 0.0
  %2725 = vmatpush1.msra.mxu0 0.0
  %2726 = vmatprep.subr.mxu0 0.0
  %2727 = vmatpush1.msra.mxu0 0.0
  %2728 = vmatprep.subr.mxu0 0.0
  %2729 = vmatpush1.msra.mxu0 0.0
  %2730 = vmatprep.subr.mxu0 0.0
  %2731 = vmatpush1.msra.mxu0 0.0
  %2732 = vmatprep.subr.mxu0 0.0
  %2733 = vmatpush1.msra.mxu0 0.0
  %2734 = vmatprep.subr.mxu0 0.0
  %2735 = vmatpush1.msra.mxu0 0.0
  %2736 = vmatprep.subr.mxu0 0.0
  %2737 = vmatpush1.msra.mxu0 0.0
  %2738 = vmatprep.subr.mxu0 0.0
  %2739 = vmatpush1.msra.mxu0 0.0
  %2740 = vmatprep.subr.mxu0 0.0
  %2741 = vmatpush1.msra.mxu0 0.0
  %2742 = vmatprep.subr.mxu0 0.0
  %2743 = vmatpush1.msra.mxu0 0.0
  %2744 = vmatprep.subr.mxu0 0.0
  %2745 = vmatpush1.msra.mxu0 0.0
  %2746 = vmatprep.subr.mxu0 0.0
  %2747 = vmatpush1.msra.mxu0 0.0
  %2748 = vmatprep.subr.mxu0 0.0
  %2749 = vmatpush1.msra.mxu0 0.0
  %2750 = vmatprep.subr.mxu0 0.0
  %2751 = vmatpush1.msra.mxu0 0.0
  %2752 = vmatprep.subr.mxu0 0.0
  %2753 = vmatpush1.msra.mxu0 0.0
  %2754 = vmatprep.subr.mxu0 0.0
  %2755 = vmatpush1.msra.mxu0 0.0
  %2756 = vmatprep.mubr.f32.mxu0 0.0
  %2757 = vmatmul.mubr.f32.gmra.mrb[0].mxu0 %v2690
  %v2758 = vpop.f32.mrb[0].mxu0
  %v2759 = vadd.f32 0.0, %v2758
  %v2760 = vpop.f32.mrb[0].mxu0
  %2761 = vdwg.mxu0
  %v2762 = vadd.f32 %v1906, %v1184
  %v2763 = vadd.f32 %v1906, %v1193
  %2765 = vrot.lane.b32.xlu0 %v2763, 104
  %v2766 = vpop.permute.xlu0 %2765
  %v2767 = vsel %vm253, %v2766, 0
  %2769 = vmatprep.subr.mxu0 0.0
  %2770 = vmatpush1.xpose.msra.mxu0 %v1207
  %2771 = vmatprep.subr.mxu0 0.0
  %2772 = vmatpush1.xpose.msra.mxu0 %v1209
  %2773 = vmatprep.subr.mxu0 0.0
  %2774 = vmatpush1.xpose.msra.mxu0 %v1211
  %2775 = vmatprep.subr.mxu0 0.0
  %2776 = vmatpush1.xpose.msra.mxu0 0.0
  %2777 = vmatprep.subr.mxu0 0.0
  %2778 = vmatpush1.xpose.msra.mxu0 0.0
  %2779 = vmatprep.subr.mxu0 0.0
  %2780 = vmatpush1.xpose.msra.mxu0 0.0
  %2781 = vmatprep.subr.mxu0 0.0
  %2782 = vmatpush1.xpose.msra.mxu0 0.0
  %2783 = vmatprep.subr.mxu0 0.0
  %2784 = vmatpush1.xpose.msra.mxu0 0.0
  %2785 = vmatprep.subr.mxu0 0.0
  %2786 = vmatpush1.xpose.msra.mxu0 0.0
  %2787 = vmatprep.subr.mxu0 0.0
  %2788 = vmatpush1.xpose.msra.mxu0 0.0
  %2789 = vmatprep.subr.mxu0 0.0
  %2790 = vmatpush1.xpose.msra.mxu0 0.0
  %2791 = vmatprep.subr.mxu0 0.0
  %2792 = vmatpush1.xpose.msra.mxu0 0.0
  %2793 = vmatprep.subr.mxu0 0.0
  %2794 = vmatpush1.xpose.msra.mxu0 0.0
  %2795 = vmatprep.subr.mxu0 0.0
  %2796 = vmatpush1.xpose.msra.mxu0 0.0
  %2797 = vmatprep.subr.mxu0 0.0
  %2798 = vmatpush1.xpose.msra.mxu0 0.0
  %2799 = vmatprep.subr.mxu0 0.0
  %2800 = vmatpush1.xpose.msra.mxu0 0.0
  %2801 = vmatprep.subr.mxu0 0.0
  %2802 = vmatpush1.xpose.msra.mxu0 0.0
  %2803 = vmatprep.subr.mxu0 0.0
  %2804 = vmatpush1.xpose.msra.mxu0 0.0
  %2805 = vmatprep.subr.mxu0 0.0
  %2806 = vmatpush1.xpose.msra.mxu0 0.0
  %2807 = vmatprep.subr.mxu0 0.0
  %2808 = vmatpush1.xpose.msra.mxu0 0.0
  %2809 = vmatprep.subr.mxu0 0.0
  %2810 = vmatpush1.xpose.msra.mxu0 0.0
  %2811 = vmatprep.subr.mxu0 0.0
  %2812 = vmatpush1.xpose.msra.mxu0 0.0
  %2813 = vmatprep.subr.mxu0 0.0
  %2814 = vmatpush1.xpose.msra.mxu0 0.0
  %2815 = vmatprep.subr.mxu0 0.0
  %2816 = vmatpush1.xpose.msra.mxu0 0.0
  %2817 = vmatprep.subr.mxu0 0.0
  %2818 = vmatpush1.xpose.msra.mxu0 0.0
  %2819 = vmatprep.subr.mxu0 0.0
  %2820 = vmatpush1.xpose.msra.mxu0 0.0
  %2821 = vmatprep.subr.mxu0 0.0
  %2822 = vmatpush1.xpose.msra.mxu0 0.0
  %2823 = vmatprep.subr.mxu0 0.0
  %2824 = vmatpush1.xpose.msra.mxu0 0.0
  %2825 = vmatprep.subr.mxu0 0.0
  %2826 = vmatpush1.xpose.msra.mxu0 0.0
  %2827 = vmatprep.subr.mxu0 0.0
  %2828 = vmatpush1.xpose.msra.mxu0 0.0
  %2829 = vmatprep.subr.mxu0 0.0
  %2830 = vmatpush1.xpose.msra.mxu0 0.0
  %2831 = vmatprep.subr.mxu0 0.0
  %2832 = vmatpush1.xpose.msra.mxu0 0.0
  %2833 = vmatprep.mubr.f32.mxu0 0.0
  %2834 = vmatmul.mubr.f32.gmra.mrb[0].mxu0 %v2767
  %v2835 = vpop.f32.mrb[0].mxu0
  %v2836 = vadd.f32 0.0, %v2835
  %v2837 = vpop.f32.mrb[0].mxu0
  %2838 = vdwg.mxu0
  %2840 = vrot.lane.b32.xlu0 %v2836, 1
  %v2841 = vpop.permute.xlu0 %2840
  %2843 = vrot.lane.b32.xlu0 %v2836, 2
  %v2844 = vpop.permute.xlu0 %2843
  %2846 = vrot.lane.b32.xlu0 %v2836, 3
  %v2847 = vpop.permute.xlu0 %2846
  %2849 = vrot.lane.b32.xlu0 %v2836, 4
  %v2850 = vpop.permute.xlu0 %2849
  %2852 = vrot.lane.b32.xlu0 %v2836, 5
  %v2853 = vpop.permute.xlu0 %2852
  %2855 = vrot.lane.b32.xlu0 %v2836, 6
  %v2856 = vpop.permute.xlu0 %2855
  %2858 = vrot.lane.b32.xlu0 %v2836, 7
  %v2859 = vpop.permute.xlu0 %2858
  %v2861 = vsel %vm358, %v2836, %v2841
  %v2862 = vsel %vm360, %v2861, %v2844
  %v2863 = vsel %vm362, %v2862, %v2847
  %v2864 = vsel %vm364, %v2863, %v2850
  %v2865 = vsel %vm366, %v2864, %v2853
  %v2866 = vsel %vm368, %v2865, %v2856
  %v2867 = vsel %vm370, %v2866, %v2859
  %2869 = vrot.lane.b32.xlu0 %v2762, 104
  %v2870 = vpop.permute.xlu0 %2869
  %2871 = vrot.lane.b32.xlu0 %v1901, 72
  %v2872 = vpop.permute.xlu0 %2871
  %2873 = vrot.lane.b32.xlu0 %v1906, 72
  %v2874 = vpop.permute.xlu0 %2873
  %2876 = vrot.lane.b32.xlu0 %v2867, 121
  %v2877 = vpop.permute.xlu0 %2876
  %v2879 = vsel %vm253, %v2870, 0
  %v2881 = vsel %vm253, %v2872, 0
  %v2883 = vsel %vm253, %v2874, 0
  %2885 = vmatprep.subr.mxu0 0.0
  %2886 = vmatpush1.xpose.msra.mxu0 %v2881
  %2887 = vmatprep.subr.mxu0 0.0
  %2888 = vmatpush1.xpose.msra.mxu0 %v2883
  %2889 = vmatprep.subr.mxu0 0.0
  %2890 = vmatpush1.xpose.msra.mxu0 0.0
  %2891 = vmatprep.subr.mxu0 0.0
  %2892 = vmatpush1.xpose.msra.mxu0 0.0
  %2893 = vmatprep.subr.mxu0 0.0
  %2894 = vmatpush1.xpose.msra.mxu0 0.0
  %2895 = vmatprep.subr.mxu0 0.0
  %2896 = vmatpush1.xpose.msra.mxu0 0.0
  %2897 = vmatprep.subr.mxu0 0.0
  %2898 = vmatpush1.xpose.msra.mxu0 0.0
  %2899 = vmatprep.subr.mxu0 0.0
  %2900 = vmatpush1.xpose.msra.mxu0 0.0
  %2901 = vmatprep.subr.mxu0 0.0
  %2902 = vmatpush1.xpose.msra.mxu0 0.0
  %2903 = vmatprep.subr.mxu0 0.0
  %2904 = vmatpush1.xpose.msra.mxu0 0.0
  %2905 = vmatprep.subr.mxu0 0.0
  %2906 = vmatpush1.xpose.msra.mxu0 0.0
  %2907 = vmatprep.subr.mxu0 0.0
  %2908 = vmatpush1.xpose.msra.mxu0 0.0
  %2909 = vmatprep.subr.mxu0 0.0
  %2910 = vmatpush1.xpose.msra.mxu0 0.0
  %2911 = vmatprep.subr.mxu0 0.0
  %2912 = vmatpush1.xpose.msra.mxu0 0.0
  %2913 = vmatprep.subr.mxu0 0.0
  %2914 = vmatpush1.xpose.msra.mxu0 0.0
  %2915 = vmatprep.subr.mxu0 0.0
  %2916 = vmatpush1.xpose.msra.mxu0 0.0
  %2917 = vmatprep.subr.mxu0 0.0
  %2918 = vmatpush1.xpose.msra.mxu0 0.0
  %2919 = vmatprep.subr.mxu0 0.0
  %2920 = vmatpush1.xpose.msra.mxu0 0.0
  %2921 = vmatprep.subr.mxu0 0.0
  %2922 = vmatpush1.xpose.msra.mxu0 0.0
  %2923 = vmatprep.subr.mxu0 0.0
  %2924 = vmatpush1.xpose.msra.mxu0 0.0
  %2925 = vmatprep.subr.mxu0 0.0
  %2926 = vmatpush1.xpose.msra.mxu0 0.0
  %2927 = vmatprep.subr.mxu0 0.0
  %2928 = vmatpush1.xpose.msra.mxu0 0.0
  %2929 = vmatprep.subr.mxu0 0.0
  %2930 = vmatpush1.xpose.msra.mxu0 0.0
  %2931 = vmatprep.subr.mxu0 0.0
  %2932 = vmatpush1.xpose.msra.mxu0 0.0
  %2933 = vmatprep.subr.mxu0 0.0
  %2934 = vmatpush1.xpose.msra.mxu0 0.0
  %2935 = vmatprep.subr.mxu0 0.0
  %2936 = vmatpush1.xpose.msra.mxu0 0.0
  %2937 = vmatprep.subr.mxu0 0.0
  %2938 = vmatpush1.xpose.msra.mxu0 0.0
  %2939 = vmatprep.subr.mxu0 0.0
  %2940 = vmatpush1.xpose.msra.mxu0 0.0
  %2941 = vmatprep.subr.mxu0 0.0
  %2942 = vmatpush1.xpose.msra.mxu0 0.0
  %2943 = vmatprep.subr.mxu0 0.0
  %2944 = vmatpush1.xpose.msra.mxu0 0.0
  %2945 = vmatprep.subr.mxu0 0.0
  %2946 = vmatpush1.xpose.msra.mxu0 0.0
  %2947 = vmatprep.subr.mxu0 0.0
  %2948 = vmatpush1.xpose.msra.mxu0 0.0
  %2949 = vmatprep.mubr.f32.mxu0 0.0
  %2950 = vmatmul.mubr.f32.gmra.mrb[0].mxu0 %v2879
  %v2951 = vpop.f32.mrb[0].mxu0
  %v2952 = vadd.f32 %v2877, %v2951
  %v2953 = vpop.f32.mrb[0].mxu0
  %2954 = vdwg.mxu0
  %v2955 = vmul.f32 %v2952, 0.35355338
  %v2956 = vadd.f32 %v2955, %v153
  %v2957 = vsel %vm461, %v2956, -inf
  %2958 = vmax.xlane.f32.xlu0 %v2957
  %v2959 = vpop.xlane.xlu0 %2958
  %v2960 = vsub.f32 %v2956, %v2959
  %v2961 = vmul.f32 %v2960, 1.442695
  %v2962 = vpow.pop %v2961
  %v2963 = vsel %vm461, %v2962, 0.0
  %2964 = vadd.xlane.f32.xlu0 %v2963
  %v2965 = vpop.xlane.xlu0 %2964
  %v2966 = vrcp.pop %v2965
  %v2967 = vmul.f32 %v2962, %v2966
  %2968 = vrot.lane.b32.xlu0 %v1901, 40
  %v2969 = vpop.permute.xlu0 %2968
  %2970 = vrot.lane.b32.xlu0 %v1906, 40
  %v2971 = vpop.permute.xlu0 %2970
  %v2975 = vsel %vm461, %v2967, 0
  %2977 = vmatprep.subr.mxu0 0.0
  %2978 = vmatpush1.msra.mxu0 %v2969
  %2979 = vmatprep.subr.mxu0 0.0
  %2980 = vmatpush1.msra.mxu0 %v2971
  %2981 = vmatprep.subr.mxu0 0.0
  %2982 = vmatpush1.msra.mxu0 0.0
  %2983 = vmatprep.subr.mxu0 0.0
  %2984 = vmatpush1.msra.mxu0 0.0
  %2985 = vmatprep.subr.mxu0 0.0
  %2986 = vmatpush1.msra.mxu0 0.0
  %2987 = vmatprep.subr.mxu0 0.0
  %2988 = vmatpush1.msra.mxu0 0.0
  %2989 = vmatprep.subr.mxu0 0.0
  %2990 = vmatpush1.msra.mxu0 0.0
  %2991 = vmatprep.subr.mxu0 0.0
  %2992 = vmatpush1.msra.mxu0 0.0
  %2993 = vmatprep.subr.mxu0 0.0
  %2994 = vmatpush1.msra.mxu0 0.0
  %2995 = vmatprep.subr.mxu0 0.0
  %2996 = vmatpush1.msra.mxu0 0.0
  %2997 = vmatprep.subr.mxu0 0.0
  %2998 = vmatpush1.msra.mxu0 0.0
  %2999 = vmatprep.subr.mxu0 0.0
  %3000 = vmatpush1.msra.mxu0 0.0
  %3001 = vmatprep.subr.mxu0 0.0
  %3002 = vmatpush1.msra.mxu0 0.0
  %3003 = vmatprep.subr.mxu0 0.0
  %3004 = vmatpush1.msra.mxu0 0.0
  %3005 = vmatprep.subr.mxu0 0.0
  %3006 = vmatpush1.msra.mxu0 0.0
  %3007 = vmatprep.subr.mxu0 0.0
  %3008 = vmatpush1.msra.mxu0 0.0
  %3009 = vmatprep.subr.mxu0 0.0
  %3010 = vmatpush1.msra.mxu0 0.0
  %3011 = vmatprep.subr.mxu0 0.0
  %3012 = vmatpush1.msra.mxu0 0.0
  %3013 = vmatprep.subr.mxu0 0.0
  %3014 = vmatpush1.msra.mxu0 0.0
  %3015 = vmatprep.subr.mxu0 0.0
  %3016 = vmatpush1.msra.mxu0 0.0
  %3017 = vmatprep.subr.mxu0 0.0
  %3018 = vmatpush1.msra.mxu0 0.0
  %3019 = vmatprep.subr.mxu0 0.0
  %3020 = vmatpush1.msra.mxu0 0.0
  %3021 = vmatprep.subr.mxu0 0.0
  %3022 = vmatpush1.msra.mxu0 0.0
  %3023 = vmatprep.subr.mxu0 0.0
  %3024 = vmatpush1.msra.mxu0 0.0
  %3025 = vmatprep.subr.mxu0 0.0
  %3026 = vmatpush1.msra.mxu0 0.0
  %3027 = vmatprep.subr.mxu0 0.0
  %3028 = vmatpush1.msra.mxu0 0.0
  %3029 = vmatprep.subr.mxu0 0.0
  %3030 = vmatpush1.msra.mxu0 0.0
  %3031 = vmatprep.subr.mxu0 0.0
  %3032 = vmatpush1.msra.mxu0 0.0
  %3033 = vmatprep.subr.mxu0 0.0
  %3034 = vmatpush1.msra.mxu0 0.0
  %3035 = vmatprep.subr.mxu0 0.0
  %3036 = vmatpush1.msra.mxu0 0.0
  %3037 = vmatprep.subr.mxu0 0.0
  %3038 = vmatpush1.msra.mxu0 0.0
  %3039 = vmatprep.subr.mxu0 0.0
  %3040 = vmatpush1.msra.mxu0 0.0
  %3041 = vmatprep.mubr.f32.mxu0 0.0
  %3042 = vmatmul.mubr.f32.gmra.mrb[0].mxu0 %v2975
  %v3043 = vpop.f32.mrb[0].mxu0
  %v3044 = vadd.f32 0.0, %v3043
  %v3045 = vpop.f32.mrb[0].mxu0
  %3046 = vdwg.mxu0
  %3048 = vrot.lane.b32.xlu0 %v2474, 8
  %v3049 = vpop.permute.xlu0 %3048
  %3052 = vrot.lane.b32.xlu0 %v2759, 16
  %v3053 = vpop.permute.xlu0 %3052
  %3056 = vrot.lane.b32.xlu0 %v3044, 24
  %v3057 = vpop.permute.xlu0 %3056
  %v3059 = vsel %vm253, %v2189, %v3049
  %v3060 = vsel %vm461, %v3059, %v3053
  %v3061 = vsel %vm1505, %v3060, %v3057
  %v3062 = vld [vmem:[%s6] sm:$0xff]
  %v3063 = vld [vmem:[%s6 + $0x8] sm:$0xff]
  %v3064 = vld [vmem:[%s6 + $0x10] sm:$0xff]
  %v3065 = vld [vmem:[%s6 + $0x18] sm:$0xff]
  %v3067 = vsel %vm63, %v3061, 0
  %3069 = vmatprep.subr.mxu0 0.0
  %3070 = vmatpush1.msra.mxu0 %v3062
  %3071 = vmatprep.subr.mxu0 0.0
  %3072 = vmatpush1.msra.mxu0 %v3063
  %3073 = vmatprep.subr.mxu0 0.0
  %3074 = vmatpush1.msra.mxu0 %v3064
  %3075 = vmatprep.subr.mxu0 0.0
  %3076 = vmatpush1.msra.mxu0 %v3065
  %3077 = vmatprep.subr.mxu0 0.0
  %3078 = vmatpush1.msra.mxu0 0.0
  %3079 = vmatprep.subr.mxu0 0.0
  %3080 = vmatpush1.msra.mxu0 0.0
  %3081 = vmatprep.subr.mxu0 0.0
  %3082 = vmatpush1.msra.mxu0 0.0
  %3083 = vmatprep.subr.mxu0 0.0
  %3084 = vmatpush1.msra.mxu0 0.0
  %3085 = vmatprep.subr.mxu0 0.0
  %3086 = vmatpush1.msra.mxu0 0.0
  %3087 = vmatprep.subr.mxu0 0.0
  %3088 = vmatpush1.msra.mxu0 0.0
  %3089 = vmatprep.subr.mxu0 0.0
  %3090 = vmatpush1.msra.mxu0 0.0
  %3091 = vmatprep.subr.mxu0 0.0
  %3092 = vmatpush1.msra.mxu0 0.0
  %3093 = vmatprep.subr.mxu0 0.0
  %3094 = vmatpush1.msra.mxu0 0.0
  %3095 = vmatprep.subr.mxu0 0.0
  %3096 = vmatpush1.msra.mxu0 0.0
  %3097 = vmatprep.subr.mxu0 0.0
  %3098 = vmatpush1.msra.mxu0 0.0
  %3099 = vmatprep.subr.mxu0 0.0
  %3100 = vmatpush1.msra.mxu0 0.0
  %3101 = vmatprep.subr.mxu0 0.0
  %3102 = vmatpush1.msra.mxu0 0.0
  %3103 = vmatprep.subr.mxu0 0.0
  %3104 = vmatpush1.msra.mxu0 0.0
  %3105 = vmatprep.subr.mxu0 0.0
  %3106 = vmatpush1.msra.mxu0 0.0
  %3107 = vmatprep.subr.mxu0 0.0
  %3108 = vmatpush1.msra.mxu0 0.0
  %3109 = vmatprep.subr.mxu0 0.0
  %3110 = vmatpush1.msra.mxu0 0.0
  %3111 = vmatprep.subr.mxu0 0.0
  %3112 = vmatpush1.msra.mxu0 0.0
  %3113 = vmatprep.subr.mxu0 0.0
  %3114 = vmatpush1.msra.mxu0 0.0
  %3115 = vmatprep.subr.mxu0 0.0
  %3116 = vmatpush1.msra.mxu0 0.0
  %3117 = vmatprep.subr.mxu0 0.0
  %3118 = vmatpush1.msra.mxu0 0.0
  %3119 = vmatprep.subr.mxu0 0.0
  %3120 = vmatpush1.msra.mxu0 0.0
  %3121 = vmatprep.subr.mxu0 0.0
  %3122 = vmatpush1.msra.mxu0 0.0
  %3123 = vmatprep.subr.mxu0 0.0
  %3124 = vmatpush1.msra.mxu0 0.0
  %3125 = vmatprep.subr.mxu0 0.0
  %3126 = vmatpush1.msra.mxu0 0.0
  %3127 = vmatprep.subr.mxu0 0.0
  %3128 = vmatpush1.msra.mxu0 0.0
  %3129 = vmatprep.subr.mxu0 0.0
  %3130 = vmatpush1.msra.mxu0 0.0
  %3131 = vmatprep.subr.mxu0 0.0
  %3132 = vmatpush1.msra.mxu0 0.0
  %3133 = vmatprep.mubr.f32.mxu0 0.0
  %3134 = vmatmul.mubr.f32.gmra.mrb[0].mxu0 %v3067
  %v3135 = vpop.f32.mrb[0].mxu0
  %v3136 = vadd.f32 0.0, %v3135
  %v3137 = vpop.f32.mrb[0].mxu0
  %3138 = vdwg.mxu0
  %v3139 = vadd.f32 %v1821, %v3136
  %v3140 = vld [vmem:[%s9] sm:$0x1]
  %v3141 = vld [vmem:[%s10] sm:$0x1]
  %v3142 = vsel %vm63, %v3139, 0.0
  %3143 = vadd.xlane.f32.xlu0 %v3142
  %v3144 = vpop.xlane.xlu0 %3143
  %v3145 = vmul.f32 %v3144, %v1590
  %v3146 = vsub.f32 %v3139, %v3145
  %v3147 = vmul.f32 %v3146, %v3146
  %v3148 = vsel %vm63, %v3147, 0.0
  %3149 = vadd.xlane.f32.xlu0 %v3148
  %v3150 = vpop.xlane.xlu0 %3149
  %v3151 = vmul.f32 %v3150, %v1590
  %v3152 = vadd.f32 %v3151, 1e-05
  %v3153 = vrsqrt.pop %v3152
  %v3154 = vmul.f32 %v3146, %v3153
  %v3156 = vlaneseq
  %v3157 = vshrl.u32 %v3156, 7
  %v3158 = vsub.s32 0, %v3157
  %v3159 = vrot.slane %v3140, %v3158
  %v3161 = vmul.f32 %v3154, %v3159
  %v3163 = vlaneseq
  %v3164 = vshrl.u32 %v3163, 7
  %v3165 = vsub.s32 0, %v3164
  %v3166 = vrot.slane %v3141, %v3165
  %v3168 = vadd.f32 %v3161, %v3166
  %v3169 = vld [vmem:[%s11] sm:$0xff]
  %v3170 = vld [vmem:[%s11 + $0x8] sm:$0xff]
  %v3171 = vld [vmem:[%s11 + $0x10] sm:$0xff]
  %v3172 = vld [vmem:[%s11 + $0x18] sm:$0xff]
  %v3173 = vld [vmem:[%s12] sm:$0x1]
  %v3175 = vlaneseq
  %v3176 = vshrl.u32 %v3175, 7
  %v3177 = vsub.s32 0, %v3176
  %v3178 = vrot.slane %v3173, %v3177
  %v3181 = vsel %vm63, %v3168, 0
  %3183 = vmatprep.subr.mxu0 0.0
  %3184 = vmatpush1.msra.mxu0 %v3169
  %3185 = vmatprep.subr.mxu0 0.0
  %3186 = vmatpush1.msra.mxu0 %v3170
  %3187 = vmatprep.subr.mxu0 0.0
  %3188 = vmatpush1.msra.mxu0 %v3171
  %3189 = vmatprep.subr.mxu0 0.0
  %3190 = vmatpush1.msra.mxu0 %v3172
  %3191 = vmatprep.subr.mxu0 0.0
  %3192 = vmatpush1.msra.mxu0 0.0
  %3193 = vmatprep.subr.mxu0 0.0
  %3194 = vmatpush1.msra.mxu0 0.0
  %3195 = vmatprep.subr.mxu0 0.0
  %3196 = vmatpush1.msra.mxu0 0.0
  %3197 = vmatprep.subr.mxu0 0.0
  %3198 = vmatpush1.msra.mxu0 0.0
  %3199 = vmatprep.subr.mxu0 0.0
  %3200 = vmatpush1.msra.mxu0 0.0
  %3201 = vmatprep.subr.mxu0 0.0
  %3202 = vmatpush1.msra.mxu0 0.0
  %3203 = vmatprep.subr.mxu0 0.0
  %3204 = vmatpush1.msra.mxu0 0.0
  %3205 = vmatprep.subr.mxu0 0.0
  %3206 = vmatpush1.msra.mxu0 0.0
  %3207 = vmatprep.subr.mxu0 0.0
  %3208 = vmatpush1.msra.mxu0 0.0
  %3209 = vmatprep.subr.mxu0 0.0
  %3210 = vmatpush1.msra.mxu0 0.0
  %3211 = vmatprep.subr.mxu0 0.0
  %3212 = vmatpush1.msra.mxu0 0.0
  %3213 = vmatprep.subr.mxu0 0.0
  %3214 = vmatpush1.msra.mxu0 0.0
  %3215 = vmatprep.subr.mxu0 0.0
  %3216 = vmatpush1.msra.mxu0 0.0
  %3217 = vmatprep.subr.mxu0 0.0
  %3218 = vmatpush1.msra.mxu0 0.0
  %3219 = vmatprep.subr.mxu0 0.0
  %3220 = vmatpush1.msra.mxu0 0.0
  %3221 = vmatprep.subr.mxu0 0.0
  %3222 = vmatpush1.msra.mxu0 0.0
  %3223 = vmatprep.subr.mxu0 0.0
  %3224 = vmatpush1.msra.mxu0 0.0
  %3225 = vmatprep.subr.mxu0 0.0
  %3226 = vmatpush1.msra.mxu0 0.0
  %3227 = vmatprep.subr.mxu0 0.0
  %3228 = vmatpush1.msra.mxu0 0.0
  %3229 = vmatprep.subr.mxu0 0.0
  %3230 = vmatpush1.msra.mxu0 0.0
  %3231 = vmatprep.subr.mxu0 0.0
  %3232 = vmatpush1.msra.mxu0 0.0
  %3233 = vmatprep.subr.mxu0 0.0
  %3234 = vmatpush1.msra.mxu0 0.0
  %3235 = vmatprep.subr.mxu0 0.0
  %3236 = vmatpush1.msra.mxu0 0.0
  %3237 = vmatprep.subr.mxu0 0.0
  %3238 = vmatpush1.msra.mxu0 0.0
  %3239 = vmatprep.subr.mxu0 0.0
  %3240 = vmatpush1.msra.mxu0 0.0
  %3241 = vmatprep.subr.mxu0 0.0
  %3242 = vmatpush1.msra.mxu0 0.0
  %3243 = vmatprep.subr.mxu0 0.0
  %3244 = vmatpush1.msra.mxu0 0.0
  %3245 = vmatprep.subr.mxu0 0.0
  %3246 = vmatpush1.msra.mxu0 0.0
  %3247 = vmatprep.mubr.f32.mxu0 0.0
  %3248 = vmatmul.mubr.f32.gmra.mrb[0].mxu0 %v3181
  %v3249 = vpop.f32.mrb[0].mxu0
  %v3250 = vadd.f32 %v3178, %v3249
  %v3251 = vpop.f32.mrb[0].mxu0
  %3252 = vdwg.mxu0
  %v3253 = vmax.f32 %v3250, 0.0
  %v3254 = vld [vmem:[%s13] sm:$0xff]
  %v3255 = vld [vmem:[%s13 + $0x8] sm:$0xff]
  %v3256 = vld [vmem:[%s13 + $0x10] sm:$0xff]
  %v3257 = vld [vmem:[%s13 + $0x18] sm:$0xff]
  %v3258 = vld [vmem:[%s13 + $0x20] sm:$0xff]
  %v3259 = vld [vmem:[%s13 + $0x28] sm:$0xff]
  %v3260 = vld [vmem:[%s13 + $0x30] sm:$0xff]
  %v3261 = vld [vmem:[%s13 + $0x38] sm:$0xff]
  %v3262 = vld [vmem:[%s14] sm:$0x1]
  %v3264 = vlaneseq
  %v3265 = vshrl.u32 %v3264, 7
  %v3266 = vsub.s32 0, %v3265
  %v3267 = vrot.slane %v3262, %v3266
  %v3270 = vsel %vm1715, %v3253, 0
  %3272 = vmatprep.subr.mxu0 0.0
  %3273 = vmatpush1.msra.mxu0 %v3254
  %3274 = vmatprep.subr.mxu0 0.0
  %3275 = vmatpush1.msra.mxu0 %v3255
  %3276 = vmatprep.subr.mxu0 0.0
  %3277 = vmatpush1.msra.mxu0 %v3256
  %3278 = vmatprep.subr.mxu0 0.0
  %3279 = vmatpush1.msra.mxu0 %v3257
  %3280 = vmatprep.subr.mxu0 0.0
  %3281 = vmatpush1.msra.mxu0 %v3258
  %3282 = vmatprep.subr.mxu0 0.0
  %3283 = vmatpush1.msra.mxu0 %v3259
  %3284 = vmatprep.subr.mxu0 0.0
  %3285 = vmatpush1.msra.mxu0 %v3260
  %3286 = vmatprep.subr.mxu0 0.0
  %3287 = vmatpush1.msra.mxu0 %v3261
  %3288 = vmatprep.subr.mxu0 0.0
  %3289 = vmatpush1.msra.mxu0 0.0
  %3290 = vmatprep.subr.mxu0 0.0
  %3291 = vmatpush1.msra.mxu0 0.0
  %3292 = vmatprep.subr.mxu0 0.0
  %3293 = vmatpush1.msra.mxu0 0.0
  %3294 = vmatprep.subr.mxu0 0.0
  %3295 = vmatpush1.msra.mxu0 0.0
  %3296 = vmatprep.subr.mxu0 0.0
  %3297 = vmatpush1.msra.mxu0 0.0
  %3298 = vmatprep.subr.mxu0 0.0
  %3299 = vmatpush1.msra.mxu0 0.0
  %3300 = vmatprep.subr.mxu0 0.0
  %3301 = vmatpush1.msra.mxu0 0.0
  %3302 = vmatprep.subr.mxu0 0.0
  %3303 = vmatpush1.msra.mxu0 0.0
  %3304 = vmatprep.subr.mxu0 0.0
  %3305 = vmatpush1.msra.mxu0 0.0
  %3306 = vmatprep.subr.mxu0 0.0
  %3307 = vmatpush1.msra.mxu0 0.0
  %3308 = vmatprep.subr.mxu0 0.0
  %3309 = vmatpush1.msra.mxu0 0.0
  %3310 = vmatprep.subr.mxu0 0.0
  %3311 = vmatpush1.msra.mxu0 0.0
  %3312 = vmatprep.subr.mxu0 0.0
  %3313 = vmatpush1.msra.mxu0 0.0
  %3314 = vmatprep.subr.mxu0 0.0
  %3315 = vmatpush1.msra.mxu0 0.0
  %3316 = vmatprep.subr.mxu0 0.0
  %3317 = vmatpush1.msra.mxu0 0.0
  %3318 = vmatprep.subr.mxu0 0.0
  %3319 = vmatpush1.msra.mxu0 0.0
  %3320 = vmatprep.subr.mxu0 0.0
  %3321 = vmatpush1.msra.mxu0 0.0
  %3322 = vmatprep.subr.mxu0 0.0
  %3323 = vmatpush1.msra.mxu0 0.0
  %3324 = vmatprep.subr.mxu0 0.0
  %3325 = vmatpush1.msra.mxu0 0.0
  %3326 = vmatprep.subr.mxu0 0.0
  %3327 = vmatpush1.msra.mxu0 0.0
  %3328 = vmatprep.subr.mxu0 0.0
  %3329 = vmatpush1.msra.mxu0 0.0
  %3330 = vmatprep.subr.mxu0 0.0
  %3331 = vmatpush1.msra.mxu0 0.0
  %3332 = vmatprep.subr.mxu0 0.0
  %3333 = vmatpush1.msra.mxu0 0.0
  %3334 = vmatprep.subr.mxu0 0.0
  %3335 = vmatpush1.msra.mxu0 0.0
  %3336 = vmatprep.mubr.f32.mxu0 0.0
  %3337 = vmatmul.mubr.f32.gmra.mrb[0].mxu0 %v3270
  %v3338 = vpop.f32.mrb[0].mxu0
  %v3339 = vadd.f32 %v3267, %v3338
  %v3340 = vpop.f32.mrb[0].mxu0
  %3341 = vdwg.mxu0
  %v3342 = vadd.f32 %v3168, %v3339
  %v3343 = vld [vmem:[%s15] sm:$0x1]
  %v3344 = vld [vmem:[%s16] sm:$0x1]
  %v3345 = vsel %vm63, %v3342, 0.0
  %3346 = vadd.xlane.f32.xlu0 %v3345
  %v3347 = vpop.xlane.xlu0 %3346
  %v3348 = vmul.f32 %v3347, %v1590
  %v3349 = vsub.f32 %v3342, %v3348
  %v3350 = vmul.f32 %v3349, %v3349
  %v3351 = vsel %vm63, %v3350, 0.0
  %3352 = vadd.xlane.f32.xlu0 %v3351
  %v3353 = vpop.xlane.xlu0 %3352
  %v3354 = vmul.f32 %v3353, %v1590
  %v3355 = vadd.f32 %v3354, 1e-05
  %v3356 = vrsqrt.pop %v3355
  %v3357 = vmul.f32 %v3349, %v3356
  %v3359 = vlaneseq
  %v3360 = vshrl.u32 %v3359, 7
  %v3361 = vsub.s32 0, %v3360
  %v3362 = vrot.slane %v3343, %v3361
  %v3364 = vmul.f32 %v3357, %v3362
  %v3366 = vlaneseq
  %v3367 = vshrl.u32 %v3366, 7
  %v3368 = vsub.s32 0, %v3367
  %v3369 = vrot.slane %v3344, %v3368
  %v3371 = vadd.f32 %v3364, %v3369
  %s3372 = scalar_lea.vmem %s17, 8
  %3373 = vst.msk [vmem:[%s3372] sm:$0xff] %vm63, %v3371
  // Predicated region
  $region70: #{erc_transfo_xl_forward.3} parent=0 // pred_check
    _
  $region71: #{erc_transfo_xl_forward.3} parent=0 // pred_check_branch
    %3375 = sbr.rel (0) target = $region73
  $region72: #{erc_transfo_xl_forward.3} parent=0 // pred_region
    _
  $region73: #{erc_transfo_xl_forward.3} parent=0 // pred_fallthru
    _
  // Predicated region
  $region74: #{erc_transfo_xl_forward.3} parent=0 // pred_check
    _
  $region75: #{erc_transfo_xl_forward.3} parent=0 // pred_check_branch
    %3377 = sbr.rel (0) target = $region77
  $region76: #{erc_transfo_xl_forward.3} parent=0 // pred_region
    _
  $region77: #{erc_transfo_xl_forward.3} parent=0 // pred_fallthru
    _

</llo_original>
